<compile_context>
chip_gen: v6e
topology: v6e:2x2x1
jax: 0.10.0
libtpu: 0.0.40
codegen_flags: <defaults>
</compile_context>

<pallas_src>
import jax
import jax.numpy as jnp
from jax.experimental import pallas as pl
from jax.experimental.pallas import tpu as pltpu

BN_EPS = 1e-5
C_OUT = 16


def vae_block_kernel(w_ref, gamma_ref, beta_ref, x_ref, eps_ref, z_ref):
    """Fused 1x1 conv + train-mode BN + width-slice + rsample for one channel group.

    w_ref/gamma_ref/beta_ref : SMEM scalar-prefetch refs, shapes (C_OUT*Cin,), (C_OUT,), (C_OUT,)
    x_ref   : (N, Cin, H, W)      full input, W=256 in lanes
    eps_ref : (N, cg, H, W//2)    reparameterization noise for this channel group
    z_ref   : (N, cg, H, W//2)    output for this channel group
    """
    n, cin, h, w = x_ref.shape
    cg = eps_ref.shape[1]
    half = eps_ref.shape[3]
    inv_m = 1.0 / float(n * h * w)
    base = pl.program_id(0) * cg            # first global output channel of this block

    # ---- shared prologue: load each input plane once, fold the BN mean into the conv.
    # y_ch - mean(y_ch) = sum_i w[ch,i] * (x_i - mean(x_i))  (conv is linear; bias cancels).
    cx = []
    for i in range(cin):
        xi = x_ref[:, i, :, :]                              # (N, H, W) lane-dense plane
        mi = jnp.sum(xi, keepdims=True) * inv_m             # (1, 1, 1)
        cx.append(xi - mi)

    # Optional covariance ("Gram") trick for the variance: 10 shared reductions instead
    # of one full-plane reduction per output channel.  Numerically safe (centered data).
    use_gram = cg >= 12
    if use_gram:
        S = {}
        for i in range(cin):
            for j in range(i, cin):
                S[(i, j)] = jnp.sum(cx[i] * cx[j], keepdims=True) * inv_m   # (1, 1, 1)

    # ---- per-output-channel work: centered conv, BN affine, mu/std slice, rsample.
    for oc in range(cg):
        ch = base + oc
        wts = [w_ref[ch * cin + i] for i in range(cin)]     # SMEM scalar weights

        # Centered 1x1-conv output for channel `ch` (VPU broadcast-FMAs on hoisted planes).
        c = cx[0] * wts[0]
        for i in range(1, cin):
            c = c + cx[i] * wts[i]

        if use_gram:
            # var_ch = sum_i w_i^2 S_ii + 2 * sum_{i<j} w_i w_j S_ij   (scalar-weight math)
            var = S[(0, 0)] * (wts[0] * wts[0])
            for i in range(1, cin):
                var = var + S[(i, i)] * (wts[i] * wts[i])
            for i in range(cin):
                for j in range(i + 1, cin):
                    var = var + S[(i, j)] * (2.0 * wts[i] * wts[j])
        else:
            var = jnp.sum(c * c, keepdims=True) * inv_m     # (1, 1, 1)

        scale = gamma_ref[ch] * jax.lax.rsqrt(var + BN_EPS)
        yn = c * scale + beta_ref[ch]

        # Width slice into mu/std halves (static lane slices at the 128 boundary are free)
        # and reparameterized sample z = mu + eps * std.
        z_ref[:, oc, :, :] = yn[:, :, :half] + eps_ref[:, oc, :, :] * yn[:, :, half:]


def _two_tensorcores_per_chip():
    """Best-effort detection of chips exposing 2 TensorCores per device (v4/v5p megacore, v7x)."""
    try:
        kind = jax.devices()[0].device_kind.lower()
    except Exception:
        return False
    if "lite" in kind or "v5e" in kind or "v6e" in kind:
        return False
    return any(tag in kind for tag in ("v7", "v4", "v5p", "v5 p"))


def vae_block_forward(x, w_conv, b_conv, gamma, beta, eps_noise, *, channels_per_block=None):
    N, Cin, H, W = x.shape
    assert W == 256, "forward slices the width into [..., :128] (mu) and [..., 128:] (std)"
    assert w_conv.shape[:2] == (C_OUT, Cin)

    if channels_per_block is None:
        # Single-TC chips (v5e/v6e): grid=(1,) — at ~640 KiB of traffic the kernel is
        # step-overhead bound, so one grid step is best.  2-TC chips: grid=(2,) so each
        # TensorCore takes an independent 8-channel group.
        channels_per_block = C_OUT // 2 if _two_tensorcores_per_chip() else C_OUT
    cg = channels_per_block
    assert C_OUT % cg == 0
    half = W // 2

    # Conv bias is a per-channel constant and cancels exactly under train-mode BatchNorm,
    # so it is not fed to the kernel at all.
    del b_conv
    w_flat = w_conv.reshape(C_OUT * Cin).astype(jnp.float32)    # row-major: [o*Cin + i]

    return pl.pallas_call(
        vae_block_kernel,
        out_shape=jax.ShapeDtypeStruct((N, C_OUT, H, half), jnp.float32),
        grid_spec=pltpu.PrefetchScalarGridSpec(
            num_scalar_prefetch=3,                 # w, gamma, beta -> SMEM
            grid=(C_OUT // cg,),                   # independent output-channel groups
            in_specs=[
                # Full x every step (block index constant -> fetched once, stays resident).
                pl.BlockSpec((N, Cin, H, W), lambda g, _w, _g, _b: (0, 0, 0, 0)),
                # Reparameterization noise for this channel group only.
                pl.BlockSpec((N, cg, H, half), lambda g, _w, _g, _b: (0, g, 0, 0)),
            ],
            out_specs=pl.BlockSpec((N, cg, H, half), lambda g, _w, _g, _b: (0, g, 0, 0)),
        ),
        compiler_params=pltpu.CompilerParams(
            dimension_semantics=("parallel",),     # no cross-step state -> megacore-safe
            vmem_limit_bytes=32 * 1024 * 1024,
        ),
    )(w_flat, gamma.astype(jnp.float32), beta.astype(jnp.float32),
      x.astype(jnp.float32), eps_noise.astype(jnp.float32))


def reference_forward(x, w_conv, b_conv, gamma, beta, eps_noise):
    """Pure-JAX reference mirroring the PyTorch forward (BatchNorm in train mode, with bias)."""
    y = jnp.einsum("nihw,oi->nohw", x, w_conv.reshape(C_OUT, -1)) + b_conv[None, :, None, None]
    mean = y.mean(axis=(0, 2, 3))
    var = jnp.var(y, axis=(0, 2, 3))   # biased, as BatchNorm uses for normalization
    yn = (y - mean[None, :, None, None]) * jax.lax.rsqrt(var + BN_EPS)[None, :, None, None]
    yn = gamma[None, :, None, None] * yn + beta[None, :, None, None]
    mu = yn[..., :128]
    std = yn[..., 128:]
    return mu + eps_noise * std


if __name__ == "__main__":
    key = jax.random.PRNGKey(0)
    k1, k2, k3, k4, k5, k6 = jax.random.split(key, 6)

    N, Cin, H, W = 2, 4, 16, 256   # W must be 256 so [..., :128] / [..., 128:] split evenly
    x = jax.random.normal(k1, (N, Cin, H, W), jnp.float32)
    w_conv = 0.5 * jax.random.normal(k2, (C_OUT, Cin, 1, 1), jnp.float32)
    b_conv = 0.1 * jax.random.normal(k3, (C_OUT,), jnp.float32)
    gamma = 1.0 + 0.1 * jax.random.normal(k4, (C_OUT,), jnp.float32)
    beta = 0.1 * jax.random.normal(k5, (C_OUT,), jnp.float32)
    # Reparameterization noise for Normal(mu, std).rsample().
    # TODO(synk): PyTorch's RNG stream is not reproduced bit-exactly; eps is drawn with jax.random
    # (in-kernel pltpu.prng_* generation would remove this HBM stream if bit-exactness is not needed).
    eps_noise = jax.random.normal(k6, (N, C_OUT, H, 128), jnp.float32)

    # TODO(synk): BatchNorm running_mean/running_var side-effect updates are not emitted
    # (the module's forward only returns z, which is what this kernel reproduces).
    z = vae_block_forward(x, w_conv, b_conv, gamma, beta, eps_noise)
    z = jax.block_until_ready(z)

    z_ref = reference_forward(x, w_conv, b_conv, gamma, beta, eps_noise)
    assert z.shape == (N, C_OUT, H, 128) and z.dtype == jnp.float32
    assert jnp.allclose(z, z_ref, atol=1e-3, rtol=1e-3), float(jnp.max(jnp.abs(z - z_ref)))
    print("KERNEL_OK")
</pallas_src>

<mosaic_0001>
module attributes {stable_mosaic.version = 11 : i64} {
  func.func @vae_block_kernel(%arg0: i32, %arg1: memref<64xf32, #tpu.memory_space<smem>>, %arg2: memref<16xf32, #tpu.memory_space<smem>>, %arg3: memref<16xf32, #tpu.memory_space<smem>>, %arg4: memref<2x4x16x256xf32, #tpu.memory_space<vmem>>, %arg5: memref<2x16x16x128xf32, #tpu.memory_space<vmem>>, %arg6: memref<2x16x16x128xf32, #tpu.memory_space<vmem>>) attributes {dimension_semantics = [#tpu.dimension_semantics<parallel>], iteration_bounds = array<i64: 1>, scalar_prefetch = 3 : i64, scratch_operands = 0 : i64, tpu.core_type = #tpu.core_type<tc>, window_params = [{pipeline_mode = #tpu.pipeline_mode<synchronous>, transform_indices = @transform_0, window_bounds = array<i64: 2, 4, 16, 256>}, {transform_indices = @transform_1, window_bounds = array<i64: 2, 16, 16, 128>}, {transform_indices = @transform_2, window_bounds = array<i64: 2, 16, 16, 128>}]} {
    %c16_i32 = arith.constant 16 : i32
    %0 = arith.muli %arg0, %c16_i32 : i32
    %c0 = arith.constant 0 : index
    %c0_0 = arith.constant 0 : index
    %c0_1 = arith.constant 0 : index
    %c0_2 = arith.constant 0 : index
    %1 = vector.load %arg4[%c0, %c0_0, %c0_1, %c0_2] : memref<2x4x16x256xf32, #tpu.memory_space<vmem>>, vector<2x1x16x256xf32>
    %2 = vector.shape_cast %1 : vector<2x1x16x256xf32> to vector<2x16x256xf32>
    %3 = vector.shape_cast %2 : vector<2x16x256xf32> to vector<1x2x16x256xf32>
    %cst = arith.constant dense<0.000000e+00> : vector<1xf32>
    %4 = vector.multi_reduction <add>, %3, %cst [1, 2, 3] : vector<1x2x16x256xf32> to vector<1xf32>
    %5 = vector.shape_cast %4 : vector<1xf32> to vector<1x1x1x1xf32>
    %6 = vector.extract %5[0, 0, 0, 0] : f32 from vector<1x1x1x1xf32>
    %7 = vector.broadcast %6 : f32 to vector<1x1x1xf32>
    %cst_3 = arith.constant 1.22070313E-4 : f32
    %8 = vector.broadcast %cst_3 : f32 to vector<1x1x1xf32>
    %9 = arith.mulf %7, %8 : vector<1x1x1xf32>
    %10 = vector.broadcast %9 : vector<1x1x1xf32> to vector<2x16x256xf32>
    %11 = arith.subf %2, %10 : vector<2x16x256xf32>
    %c0_4 = arith.constant 0 : index
    %c1 = arith.constant 1 : index
    %c0_5 = arith.constant 0 : index
    %c0_6 = arith.constant 0 : index
    %12 = vector.load %arg4[%c0_4, %c1, %c0_5, %c0_6] : memref<2x4x16x256xf32, #tpu.memory_space<vmem>>, vector<2x1x16x256xf32>
    %13 = vector.shape_cast %12 : vector<2x1x16x256xf32> to vector<2x16x256xf32>
    %14 = vector.shape_cast %13 : vector<2x16x256xf32> to vector<1x2x16x256xf32>
    %cst_7 = arith.constant dense<0.000000e+00> : vector<1xf32>
    %15 = vector.multi_reduction <add>, %14, %cst_7 [1, 2, 3] : vector<1x2x16x256xf32> to vector<1xf32>
    %16 = vector.shape_cast %15 : vector<1xf32> to vector<1x1x1x1xf32>
    %17 = vector.extract %16[0, 0, 0, 0] : f32 from vector<1x1x1x1xf32>
    %18 = vector.broadcast %17 : f32 to vector<1x1x1xf32>
    %cst_8 = arith.constant 1.22070313E-4 : f32
    %19 = vector.broadcast %cst_8 : f32 to vector<1x1x1xf32>
    %20 = arith.mulf %18, %19 : vector<1x1x1xf32>
    %21 = vector.broadcast %20 : vector<1x1x1xf32> to vector<2x16x256xf32>
    %22 = arith.subf %13, %21 : vector<2x16x256xf32>
    %c0_9 = arith.constant 0 : index
    %c2 = arith.constant 2 : index
    %c0_10 = arith.constant 0 : index
    %c0_11 = arith.constant 0 : index
    %23 = vector.load %arg4[%c0_9, %c2, %c0_10, %c0_11] : memref<2x4x16x256xf32, #tpu.memory_space<vmem>>, vector<2x1x16x256xf32>
    %24 = vector.shape_cast %23 : vector<2x1x16x256xf32> to vector<2x16x256xf32>
    %25 = vector.shape_cast %24 : vector<2x16x256xf32> to vector<1x2x16x256xf32>
    %cst_12 = arith.constant dense<0.000000e+00> : vector<1xf32>
    %26 = vector.multi_reduction <add>, %25, %cst_12 [1, 2, 3] : vector<1x2x16x256xf32> to vector<1xf32>
    %27 = vector.shape_cast %26 : vector<1xf32> to vector<1x1x1x1xf32>
    %28 = vector.extract %27[0, 0, 0, 0] : f32 from vector<1x1x1x1xf32>
    %29 = vector.broadcast %28 : f32 to vector<1x1x1xf32>
    %cst_13 = arith.constant 1.22070313E-4 : f32
    %30 = vector.broadcast %cst_13 : f32 to vector<1x1x1xf32>
    %31 = arith.mulf %29, %30 : vector<1x1x1xf32>
    %32 = vector.broadcast %31 : vector<1x1x1xf32> to vector<2x16x256xf32>
    %33 = arith.subf %24, %32 : vector<2x16x256xf32>
    %c0_14 = arith.constant 0 : index
    %c3 = arith.constant 3 : index
    %c0_15 = arith.constant 0 : index
    %c0_16 = arith.constant 0 : index
    %34 = vector.load %arg4[%c0_14, %c3, %c0_15, %c0_16] : memref<2x4x16x256xf32, #tpu.memory_space<vmem>>, vector<2x1x16x256xf32>
    %35 = vector.shape_cast %34 : vector<2x1x16x256xf32> to vector<2x16x256xf32>
    %36 = vector.shape_cast %35 : vector<2x16x256xf32> to vector<1x2x16x256xf32>
    %cst_17 = arith.constant dense<0.000000e+00> : vector<1xf32>
    %37 = vector.multi_reduction <add>, %36, %cst_17 [1, 2, 3] : vector<1x2x16x256xf32> to vector<1xf32>
    %38 = vector.shape_cast %37 : vector<1xf32> to vector<1x1x1x1xf32>
    %39 = vector.extract %38[0, 0, 0, 0] : f32 from vector<1x1x1x1xf32>
    %40 = vector.broadcast %39 : f32 to vector<1x1x1xf32>
    %cst_18 = arith.constant 1.22070313E-4 : f32
    %41 = vector.broadcast %cst_18 : f32 to vector<1x1x1xf32>
    %42 = arith.mulf %40, %41 : vector<1x1x1xf32>
    %43 = vector.broadcast %42 : vector<1x1x1xf32> to vector<2x16x256xf32>
    %44 = arith.subf %35, %43 : vector<2x16x256xf32>
    %45 = arith.mulf %11, %11 : vector<2x16x256xf32>
    %46 = vector.shape_cast %45 : vector<2x16x256xf32> to vector<1x2x16x256xf32>
    %cst_19 = arith.constant dense<0.000000e+00> : vector<1xf32>
    %47 = vector.multi_reduction <add>, %46, %cst_19 [1, 2, 3] : vector<1x2x16x256xf32> to vector<1xf32>
    %48 = vector.shape_cast %47 : vector<1xf32> to vector<1x1x1x1xf32>
    %49 = vector.extract %48[0, 0, 0, 0] : f32 from vector<1x1x1x1xf32>
    %50 = vector.broadcast %49 : f32 to vector<1x1x1xf32>
    %cst_20 = arith.constant 1.22070313E-4 : f32
    %51 = vector.broadcast %cst_20 : f32 to vector<1x1x1xf32>
    %52 = arith.mulf %50, %51 : vector<1x1x1xf32>
    %53 = arith.mulf %11, %22 : vector<2x16x256xf32>
    %54 = vector.shape_cast %53 : vector<2x16x256xf32> to vector<1x2x16x256xf32>
    %cst_21 = arith.constant dense<0.000000e+00> : vector<1xf32>
    %55 = vector.multi_reduction <add>, %54, %cst_21 [1, 2, 3] : vector<1x2x16x256xf32> to vector<1xf32>
    %56 = vector.shape_cast %55 : vector<1xf32> to vector<1x1x1x1xf32>
    %57 = vector.extract %56[0, 0, 0, 0] : f32 from vector<1x1x1x1xf32>
    %58 = vector.broadcast %57 : f32 to vector<1x1x1xf32>
    %cst_22 = arith.constant 1.22070313E-4 : f32
    %59 = vector.broadcast %cst_22 : f32 to vector<1x1x1xf32>
    %60 = arith.mulf %58, %59 : vector<1x1x1xf32>
    %61 = arith.mulf %11, %33 : vector<2x16x256xf32>
    %62 = vector.shape_cast %61 : vector<2x16x256xf32> to vector<1x2x16x256xf32>
    %cst_23 = arith.constant dense<0.000000e+00> : vector<1xf32>
    %63 = vector.multi_reduction <add>, %62, %cst_23 [1, 2, 3] : vector<1x2x16x256xf32> to vector<1xf32>
    %64 = vector.shape_cast %63 : vector<1xf32> to vector<1x1x1x1xf32>
    %65 = vector.extract %64[0, 0, 0, 0] : f32 from vector<1x1x1x1xf32>
    %66 = vector.broadcast %65 : f32 to vector<1x1x1xf32>
    %cst_24 = arith.constant 1.22070313E-4 : f32
    %67 = vector.broadcast %cst_24 : f32 to vector<1x1x1xf32>
    %68 = arith.mulf %66, %67 : vector<1x1x1xf32>
    %69 = arith.mulf %11, %44 : vector<2x16x256xf32>
    %70 = vector.shape_cast %69 : vector<2x16x256xf32> to vector<1x2x16x256xf32>
    %cst_25 = arith.constant dense<0.000000e+00> : vector<1xf32>
    %71 = vector.multi_reduction <add>, %70, %cst_25 [1, 2, 3] : vector<1x2x16x256xf32> to vector<1xf32>
    %72 = vector.shape_cast %71 : vector<1xf32> to vector<1x1x1x1xf32>
    %73 = vector.extract %72[0, 0, 0, 0] : f32 from vector<1x1x1x1xf32>
    %74 = vector.broadcast %73 : f32 to vector<1x1x1xf32>
    %cst_26 = arith.constant 1.22070313E-4 : f32
    %75 = vector.broadcast %cst_26 : f32 to vector<1x1x1xf32>
    %76 = arith.mulf %74, %75 : vector<1x1x1xf32>
    %77 = arith.mulf %22, %22 : vector<2x16x256xf32>
    %78 = vector.shape_cast %77 : vector<2x16x256xf32> to vector<1x2x16x256xf32>
    %cst_27 = arith.constant dense<0.000000e+00> : vector<1xf32>
    %79 = vector.multi_reduction <add>, %78, %cst_27 [1, 2, 3] : vector<1x2x16x256xf32> to vector<1xf32>
    %80 = vector.shape_cast %79 : vector<1xf32> to vector<1x1x1x1xf32>
    %81 = vector.extract %80[0, 0, 0, 0] : f32 from vector<1x1x1x1xf32>
    %82 = vector.broadcast %81 : f32 to vector<1x1x1xf32>
    %cst_28 = arith.constant 1.22070313E-4 : f32
    %83 = vector.broadcast %cst_28 : f32 to vector<1x1x1xf32>
    %84 = arith.mulf %82, %83 : vector<1x1x1xf32>
    %85 = arith.mulf %22, %33 : vector<2x16x256xf32>
    %86 = vector.shape_cast %85 : vector<2x16x256xf32> to vector<1x2x16x256xf32>
    %cst_29 = arith.constant dense<0.000000e+00> : vector<1xf32>
    %87 = vector.multi_reduction <add>, %86, %cst_29 [1, 2, 3] : vector<1x2x16x256xf32> to vector<1xf32>
    %88 = vector.shape_cast %87 : vector<1xf32> to vector<1x1x1x1xf32>
    %89 = vector.extract %88[0, 0, 0, 0] : f32 from vector<1x1x1x1xf32>
    %90 = vector.broadcast %89 : f32 to vector<1x1x1xf32>
    %cst_30 = arith.constant 1.22070313E-4 : f32
    %91 = vector.broadcast %cst_30 : f32 to vector<1x1x1xf32>
    %92 = arith.mulf %90, %91 : vector<1x1x1xf32>
    %93 = arith.mulf %22, %44 : vector<2x16x256xf32>
    %94 = vector.shape_cast %93 : vector<2x16x256xf32> to vector<1x2x16x256xf32>
    %cst_31 = arith.constant dense<0.000000e+00> : vector<1xf32>
    %95 = vector.multi_reduction <add>, %94, %cst_31 [1, 2, 3] : vector<1x2x16x256xf32> to vector<1xf32>
    %96 = vector.shape_cast %95 : vector<1xf32> to vector<1x1x1x1xf32>
    %97 = vector.extract %96[0, 0, 0, 0] : f32 from vector<1x1x1x1xf32>
    %98 = vector.broadcast %97 : f32 to vector<1x1x1xf32>
    %cst_32 = arith.constant 1.22070313E-4 : f32
    %99 = vector.broadcast %cst_32 : f32 to vector<1x1x1xf32>
    %100 = arith.mulf %98, %99 : vector<1x1x1xf32>
    %101 = arith.mulf %33, %33 : vector<2x16x256xf32>
    %102 = vector.shape_cast %101 : vector<2x16x256xf32> to vector<1x2x16x256xf32>
    %cst_33 = arith.constant dense<0.000000e+00> : vector<1xf32>
    %103 = vector.multi_reduction <add>, %102, %cst_33 [1, 2, 3] : vector<1x2x16x256xf32> to vector<1xf32>
    %104 = vector.shape_cast %103 : vector<1xf32> to vector<1x1x1x1xf32>
    %105 = vector.extract %104[0, 0, 0, 0] : f32 from vector<1x1x1x1xf32>
    %106 = vector.broadcast %105 : f32 to vector<1x1x1xf32>
    %cst_34 = arith.constant 1.22070313E-4 : f32
    %107 = vector.broadcast %cst_34 : f32 to vector<1x1x1xf32>
    %108 = arith.mulf %106, %107 : vector<1x1x1xf32>
    %109 = arith.mulf %33, %44 : vector<2x16x256xf32>
    %110 = vector.shape_cast %109 : vector<2x16x256xf32> to vector<1x2x16x256xf32>
    %cst_35 = arith.constant dense<0.000000e+00> : vector<1xf32>
    %111 = vector.multi_reduction <add>, %110, %cst_35 [1, 2, 3] : vector<1x2x16x256xf32> to vector<1xf32>
    %112 = vector.shape_cast %111 : vector<1xf32> to vector<1x1x1x1xf32>
    %113 = vector.extract %112[0, 0, 0, 0] : f32 from vector<1x1x1x1xf32>
    %114 = vector.broadcast %113 : f32 to vector<1x1x1xf32>
    %cst_36 = arith.constant 1.22070313E-4 : f32
    %115 = vector.broadcast %cst_36 : f32 to vector<1x1x1xf32>
    %116 = arith.mulf %114, %115 : vector<1x1x1xf32>
    %117 = arith.mulf %44, %44 : vector<2x16x256xf32>
    %118 = vector.shape_cast %117 : vector<2x16x256xf32> to vector<1x2x16x256xf32>
    %cst_37 = arith.constant dense<0.000000e+00> : vector<1xf32>
    %119 = vector.multi_reduction <add>, %118, %cst_37 [1, 2, 3] : vector<1x2x16x256xf32> to vector<1xf32>
    %120 = vector.shape_cast %119 : vector<1xf32> to vector<1x1x1x1xf32>
    %121 = vector.extract %120[0, 0, 0, 0] : f32 from vector<1x1x1x1xf32>
    %122 = vector.broadcast %121 : f32 to vector<1x1x1xf32>
    %cst_38 = arith.constant 1.22070313E-4 : f32
    %123 = vector.broadcast %cst_38 : f32 to vector<1x1x1xf32>
    %124 = arith.mulf %122, %123 : vector<1x1x1xf32>
    %c0_i32 = arith.constant 0 : i32
    %125 = arith.addi %0, %c0_i32 : i32
    %c4_i32 = arith.constant 4 : i32
    %126 = arith.muli %125, %c4_i32 : i32
    %c0_i32_39 = arith.constant 0 : i32
    %127 = arith.addi %126, %c0_i32_39 : i32
    %128 = arith.index_cast %127 : i32 to index
    %129 = memref.load %arg1[%128] : memref<64xf32, #tpu.memory_space<smem>>
    %c4_i32_40 = arith.constant 4 : i32
    %130 = arith.muli %125, %c4_i32_40 : i32
    %c1_i32 = arith.constant 1 : i32
    %131 = arith.addi %130, %c1_i32 : i32
    %132 = arith.index_cast %131 : i32 to index
    %133 = memref.load %arg1[%132] : memref<64xf32, #tpu.memory_space<smem>>
    %c4_i32_41 = arith.constant 4 : i32
    %134 = arith.muli %125, %c4_i32_41 : i32
    %c2_i32 = arith.constant 2 : i32
    %135 = arith.addi %134, %c2_i32 : i32
    %136 = arith.index_cast %135 : i32 to index
    %137 = memref.load %arg1[%136] : memref<64xf32, #tpu.memory_space<smem>>
    %c4_i32_42 = arith.constant 4 : i32
    %138 = arith.muli %125, %c4_i32_42 : i32
    %c3_i32 = arith.constant 3 : i32
    %139 = arith.addi %138, %c3_i32 : i32
    %140 = arith.index_cast %139 : i32 to index
    %141 = memref.load %arg1[%140] : memref<64xf32, #tpu.memory_space<smem>>
    %142 = vector.broadcast %129 : f32 to vector<2x16x256xf32>
    %143 = arith.mulf %11, %142 : vector<2x16x256xf32>
    %144 = vector.broadcast %133 : f32 to vector<2x16x256xf32>
    %145 = arith.mulf %22, %144 : vector<2x16x256xf32>
    %146 = arith.addf %143, %145 : vector<2x16x256xf32>
    %147 = vector.broadcast %137 : f32 to vector<2x16x256xf32>
    %148 = arith.mulf %33, %147 : vector<2x16x256xf32>
    %149 = arith.addf %146, %148 : vector<2x16x256xf32>
    %150 = vector.broadcast %141 : f32 to vector<2x16x256xf32>
    %151 = arith.mulf %44, %150 : vector<2x16x256xf32>
    %152 = arith.addf %149, %151 : vector<2x16x256xf32>
    %153 = arith.mulf %129, %129 : f32
    %154 = vector.broadcast %153 : f32 to vector<1x1x1xf32>
    %155 = arith.mulf %52, %154 : vector<1x1x1xf32>
    %156 = arith.mulf %133, %133 : f32
    %157 = vector.broadcast %156 : f32 to vector<1x1x1xf32>
    %158 = arith.mulf %84, %157 : vector<1x1x1xf32>
    %159 = arith.addf %155, %158 : vector<1x1x1xf32>
    %160 = arith.mulf %137, %137 : f32
    %161 = vector.broadcast %160 : f32 to vector<1x1x1xf32>
    %162 = arith.mulf %108, %161 : vector<1x1x1xf32>
    %163 = arith.addf %159, %162 : vector<1x1x1xf32>
    %164 = arith.mulf %141, %141 : f32
    %165 = vector.broadcast %164 : f32 to vector<1x1x1xf32>
    %166 = arith.mulf %124, %165 : vector<1x1x1xf32>
    %167 = arith.addf %163, %166 : vector<1x1x1xf32>
    %cst_43 = arith.constant 2.000000e+00 : f32
    %168 = arith.mulf %cst_43, %129 : f32
    %169 = arith.mulf %168, %133 : f32
    %170 = vector.broadcast %169 : f32 to vector<1x1x1xf32>
    %171 = arith.mulf %60, %170 : vector<1x1x1xf32>
    %172 = arith.addf %167, %171 : vector<1x1x1xf32>
    %cst_44 = arith.constant 2.000000e+00 : f32
    %173 = arith.mulf %cst_44, %129 : f32
    %174 = arith.mulf %173, %137 : f32
    %175 = vector.broadcast %174 : f32 to vector<1x1x1xf32>
    %176 = arith.mulf %68, %175 : vector<1x1x1xf32>
    %177 = arith.addf %172, %176 : vector<1x1x1xf32>
    %cst_45 = arith.constant 2.000000e+00 : f32
    %178 = arith.mulf %cst_45, %129 : f32
    %179 = arith.mulf %178, %141 : f32
    %180 = vector.broadcast %179 : f32 to vector<1x1x1xf32>
    %181 = arith.mulf %76, %180 : vector<1x1x1xf32>
    %182 = arith.addf %177, %181 : vector<1x1x1xf32>
    %cst_46 = arith.constant 2.000000e+00 : f32
    %183 = arith.mulf %cst_46, %133 : f32
    %184 = arith.mulf %183, %137 : f32
    %185 = vector.broadcast %184 : f32 to vector<1x1x1xf32>
    %186 = arith.mulf %92, %185 : vector<1x1x1xf32>
    %187 = arith.addf %182, %186 : vector<1x1x1xf32>
    %cst_47 = arith.constant 2.000000e+00 : f32
    %188 = arith.mulf %cst_47, %133 : f32
    %189 = arith.mulf %188, %141 : f32
    %190 = vector.broadcast %189 : f32 to vector<1x1x1xf32>
    %191 = arith.mulf %100, %190 : vector<1x1x1xf32>
    %192 = arith.addf %187, %191 : vector<1x1x1xf32>
    %cst_48 = arith.constant 2.000000e+00 : f32
    %193 = arith.mulf %cst_48, %137 : f32
    %194 = arith.mulf %193, %141 : f32
    %195 = vector.broadcast %194 : f32 to vector<1x1x1xf32>
    %196 = arith.mulf %116, %195 : vector<1x1x1xf32>
    %197 = arith.addf %192, %196 : vector<1x1x1xf32>
    %198 = arith.index_cast %125 : i32 to index
    %199 = memref.load %arg2[%198] : memref<16xf32, #tpu.memory_space<smem>>
    %cst_49 = arith.constant 9.99999974E-6 : f32
    %200 = vector.broadcast %cst_49 : f32 to vector<1x1x1xf32>
    %201 = arith.addf %197, %200 : vector<1x1x1xf32>
    %202 = math.rsqrt %201 : vector<1x1x1xf32>
    %203 = vector.broadcast %199 : f32 to vector<1x1x1xf32>
    %204 = arith.mulf %203, %202 : vector<1x1x1xf32>
    %205 = vector.broadcast %204 : vector<1x1x1xf32> to vector<2x16x256xf32>
    %206 = arith.mulf %152, %205 : vector<2x16x256xf32>
    %207 = arith.index_cast %125 : i32 to index
    %208 = memref.load %arg3[%207] : memref<16xf32, #tpu.memory_space<smem>>
    %209 = vector.broadcast %208 : f32 to vector<2x16x256xf32>
    %210 = arith.addf %206, %209 : vector<2x16x256xf32>
    %211 = vector.extract_strided_slice %210 {offsets = [0, 0, 0], sizes = [2, 16, 128], strides = [1, 1, 1]} : vector<2x16x256xf32> to vector<2x16x128xf32>
    %c0_50 = arith.constant 0 : index
    %c0_51 = arith.constant 0 : index
    %c0_52 = arith.constant 0 : index
    %c0_53 = arith.constant 0 : index
    %212 = vector.load %arg5[%c0_50, %c0_51, %c0_52, %c0_53] : memref<2x16x16x128xf32, #tpu.memory_space<vmem>>, vector<2x1x16x128xf32>
    %213 = vector.shape_cast %212 : vector<2x1x16x128xf32> to vector<2x16x128xf32>
    %214 = vector.extract_strided_slice %210 {offsets = [0, 0, 128], sizes = [2, 16, 128], strides = [1, 1, 1]} : vector<2x16x256xf32> to vector<2x16x128xf32>
    %215 = arith.mulf %213, %214 : vector<2x16x128xf32>
    %216 = arith.addf %211, %215 : vector<2x16x128xf32>
    %c0_54 = arith.constant 0 : index
    %c0_55 = arith.constant 0 : index
    %c0_56 = arith.constant 0 : index
    %c0_57 = arith.constant 0 : index
    %217 = vector.load %arg6[%c0_54, %c0_55, %c0_56, %c0_57] : memref<2x16x16x128xf32, #tpu.memory_space<vmem>>, vector<2x1x16x128xf32>
    %218 = vector.shape_cast %217 : vector<2x1x16x128xf32> to vector<2x16x128xf32>
    %219 = vector.shape_cast %216 : vector<2x16x128xf32> to vector<2x1x16x128xf32>
    tpu.vector_store %arg6[%c0_54, %c0_55, %c0_56, %c0_57], %219 {strides = array<i32>} : memref<2x16x16x128xf32, #tpu.memory_space<vmem>>, vector<2x1x16x128xf32>,
    %c1_i32_58 = arith.constant 1 : i32
    %220 = arith.addi %0, %c1_i32_58 : i32
    %c4_i32_59 = arith.constant 4 : i32
    %221 = arith.muli %220, %c4_i32_59 : i32
    %c0_i32_60 = arith.constant 0 : i32
    %222 = arith.addi %221, %c0_i32_60 : i32
    %223 = arith.index_cast %222 : i32 to index
    %224 = memref.load %arg1[%223] : memref<64xf32, #tpu.memory_space<smem>>
    %c4_i32_61 = arith.constant 4 : i32
    %225 = arith.muli %220, %c4_i32_61 : i32
    %c1_i32_62 = arith.constant 1 : i32
    %226 = arith.addi %225, %c1_i32_62 : i32
    %227 = arith.index_cast %226 : i32 to index
    %228 = memref.load %arg1[%227] : memref<64xf32, #tpu.memory_space<smem>>
    %c4_i32_63 = arith.constant 4 : i32
    %229 = arith.muli %220, %c4_i32_63 : i32
    %c2_i32_64 = arith.constant 2 : i32
    %230 = arith.addi %229, %c2_i32_64 : i32
    %231 = arith.index_cast %230 : i32 to index
    %232 = memref.load %arg1[%231] : memref<64xf32, #tpu.memory_space<smem>>
    %c4_i32_65 = arith.constant 4 : i32
    %233 = arith.muli %220, %c4_i32_65 : i32
    %c3_i32_66 = arith.constant 3 : i32
    %234 = arith.addi %233, %c3_i32_66 : i32
    %235 = arith.index_cast %234 : i32 to index
    %236 = memref.load %arg1[%235] : memref<64xf32, #tpu.memory_space<smem>>
    %237 = vector.broadcast %224 : f32 to vector<2x16x256xf32>
    %238 = arith.mulf %11, %237 : vector<2x16x256xf32>
    %239 = vector.broadcast %228 : f32 to vector<2x16x256xf32>
    %240 = arith.mulf %22, %239 : vector<2x16x256xf32>
    %241 = arith.addf %238, %240 : vector<2x16x256xf32>
    %242 = vector.broadcast %232 : f32 to vector<2x16x256xf32>
    %243 = arith.mulf %33, %242 : vector<2x16x256xf32>
    %244 = arith.addf %241, %243 : vector<2x16x256xf32>
    %245 = vector.broadcast %236 : f32 to vector<2x16x256xf32>
    %246 = arith.mulf %44, %245 : vector<2x16x256xf32>
    %247 = arith.addf %244, %246 : vector<2x16x256xf32>
    %248 = arith.mulf %224, %224 : f32
    %249 = vector.broadcast %248 : f32 to vector<1x1x1xf32>
    %250 = arith.mulf %52, %249 : vector<1x1x1xf32>
    %251 = arith.mulf %228, %228 : f32
    %252 = vector.broadcast %251 : f32 to vector<1x1x1xf32>
    %253 = arith.mulf %84, %252 : vector<1x1x1xf32>
    %254 = arith.addf %250, %253 : vector<1x1x1xf32>
    %255 = arith.mulf %232, %232 : f32
    %256 = vector.broadcast %255 : f32 to vector<1x1x1xf32>
    %257 = arith.mulf %108, %256 : vector<1x1x1xf32>
    %258 = arith.addf %254, %257 : vector<1x1x1xf32>
    %259 = arith.mulf %236, %236 : f32
    %260 = vector.broadcast %259 : f32 to vector<1x1x1xf32>
    %261 = arith.mulf %124, %260 : vector<1x1x1xf32>
    %262 = arith.addf %258, %261 : vector<1x1x1xf32>
    %cst_67 = arith.constant 2.000000e+00 : f32
    %263 = arith.mulf %cst_67, %224 : f32
    %264 = arith.mulf %263, %228 : f32
    %265 = vector.broadcast %264 : f32 to vector<1x1x1xf32>
    %266 = arith.mulf %60, %265 : vector<1x1x1xf32>
    %267 = arith.addf %262, %266 : vector<1x1x1xf32>
    %cst_68 = arith.constant 2.000000e+00 : f32
    %268 = arith.mulf %cst_68, %224 : f32
    %269 = arith.mulf %268, %232 : f32
    %270 = vector.broadcast %269 : f32 to vector<1x1x1xf32>
    %271 = arith.mulf %68, %270 : vector<1x1x1xf32>
    %272 = arith.addf %267, %271 : vector<1x1x1xf32>
    %cst_69 = arith.constant 2.000000e+00 : f32
    %273 = arith.mulf %cst_69, %224 : f32
    %274 = arith.mulf %273, %236 : f32
    %275 = vector.broadcast %274 : f32 to vector<1x1x1xf32>
    %276 = arith.mulf %76, %275 : vector<1x1x1xf32>
    %277 = arith.addf %272, %276 : vector<1x1x1xf32>
    %cst_70 = arith.constant 2.000000e+00 : f32
    %278 = arith.mulf %cst_70, %228 : f32
    %279 = arith.mulf %278, %232 : f32
    %280 = vector.broadcast %279 : f32 to vector<1x1x1xf32>
    %281 = arith.mulf %92, %280 : vector<1x1x1xf32>
    %282 = arith.addf %277, %281 : vector<1x1x1xf32>
    %cst_71 = arith.constant 2.000000e+00 : f32
    %283 = arith.mulf %cst_71, %228 : f32
    %284 = arith.mulf %283, %236 : f32
    %285 = vector.broadcast %284 : f32 to vector<1x1x1xf32>
    %286 = arith.mulf %100, %285 : vector<1x1x1xf32>
    %287 = arith.addf %282, %286 : vector<1x1x1xf32>
    %cst_72 = arith.constant 2.000000e+00 : f32
    %288 = arith.mulf %cst_72, %232 : f32
    %289 = arith.mulf %288, %236 : f32
    %290 = vector.broadcast %289 : f32 to vector<1x1x1xf32>
    %291 = arith.mulf %116, %290 : vector<1x1x1xf32>
    %292 = arith.addf %287, %291 : vector<1x1x1xf32>
    %293 = arith.index_cast %220 : i32 to index
    %294 = memref.load %arg2[%293] : memref<16xf32, #tpu.memory_space<smem>>
    %cst_73 = arith.constant 9.99999974E-6 : f32
    %295 = vector.broadcast %cst_73 : f32 to vector<1x1x1xf32>
    %296 = arith.addf %292, %295 : vector<1x1x1xf32>
    %297 = math.rsqrt %296 : vector<1x1x1xf32>
    %298 = vector.broadcast %294 : f32 to vector<1x1x1xf32>
    %299 = arith.mulf %298, %297 : vector<1x1x1xf32>
    %300 = vector.broadcast %299 : vector<1x1x1xf32> to vector<2x16x256xf32>
    %301 = arith.mulf %247, %300 : vector<2x16x256xf32>
    %302 = arith.index_cast %220 : i32 to index
    %303 = memref.load %arg3[%302] : memref<16xf32, #tpu.memory_space<smem>>
    %304 = vector.broadcast %303 : f32 to vector<2x16x256xf32>
    %305 = arith.addf %301, %304 : vector<2x16x256xf32>
    %306 = vector.extract_strided_slice %305 {offsets = [0, 0, 0], sizes = [2, 16, 128], strides = [1, 1, 1]} : vector<2x16x256xf32> to vector<2x16x128xf32>
    %c0_74 = arith.constant 0 : index
    %c1_75 = arith.constant 1 : index
    %c0_76 = arith.constant 0 : index
    %c0_77 = arith.constant 0 : index
    %307 = vector.load %arg5[%c0_74, %c1_75, %c0_76, %c0_77] : memref<2x16x16x128xf32, #tpu.memory_space<vmem>>, vector<2x1x16x128xf32>
    %308 = vector.shape_cast %307 : vector<2x1x16x128xf32> to vector<2x16x128xf32>
    %309 = vector.extract_strided_slice %305 {offsets = [0, 0, 128], sizes = [2, 16, 128], strides = [1, 1, 1]} : vector<2x16x256xf32> to vector<2x16x128xf32>
    %310 = arith.mulf %308, %309 : vector<2x16x128xf32>
    %311 = arith.addf %306, %310 : vector<2x16x128xf32>
    %c0_78 = arith.constant 0 : index
    %c1_79 = arith.constant 1 : index
    %c0_80 = arith.constant 0 : index
    %c0_81 = arith.constant 0 : index
    %312 = vector.load %arg6[%c0_78, %c1_79, %c0_80, %c0_81] : memref<2x16x16x128xf32, #tpu.memory_space<vmem>>, vector<2x1x16x128xf32>
    %313 = vector.shape_cast %312 : vector<2x1x16x128xf32> to vector<2x16x128xf32>
    %314 = vector.shape_cast %311 : vector<2x16x128xf32> to vector<2x1x16x128xf32>
    tpu.vector_store %arg6[%c0_78, %c1_79, %c0_80, %c0_81], %314 {strides = array<i32>} : memref<2x16x16x128xf32, #tpu.memory_space<vmem>>, vector<2x1x16x128xf32>,
    %c2_i32_82 = arith.constant 2 : i32
    %315 = arith.addi %0, %c2_i32_82 : i32
    %c4_i32_83 = arith.constant 4 : i32
    %316 = arith.muli %315, %c4_i32_83 : i32
    %c0_i32_84 = arith.constant 0 : i32
    %317 = arith.addi %316, %c0_i32_84 : i32
    %318 = arith.index_cast %317 : i32 to index
    %319 = memref.load %arg1[%318] : memref<64xf32, #tpu.memory_space<smem>>
    %c4_i32_85 = arith.constant 4 : i32
    %320 = arith.muli %315, %c4_i32_85 : i32
    %c1_i32_86 = arith.constant 1 : i32
    %321 = arith.addi %320, %c1_i32_86 : i32
    %322 = arith.index_cast %321 : i32 to index
    %323 = memref.load %arg1[%322] : memref<64xf32, #tpu.memory_space<smem>>
    %c4_i32_87 = arith.constant 4 : i32
    %324 = arith.muli %315, %c4_i32_87 : i32
    %c2_i32_88 = arith.constant 2 : i32
    %325 = arith.addi %324, %c2_i32_88 : i32
    %326 = arith.index_cast %325 : i32 to index
    %327 = memref.load %arg1[%326] : memref<64xf32, #tpu.memory_space<smem>>
    %c4_i32_89 = arith.constant 4 : i32
    %328 = arith.muli %315, %c4_i32_89 : i32
    %c3_i32_90 = arith.constant 3 : i32
    %329 = arith.addi %328, %c3_i32_90 : i32
    %330 = arith.index_cast %329 : i32 to index
    %331 = memref.load %arg1[%330] : memref<64xf32, #tpu.memory_space<smem>>
    %332 = vector.broadcast %319 : f32 to vector<2x16x256xf32>
    %333 = arith.mulf %11, %332 : vector<2x16x256xf32>
    %334 = vector.broadcast %323 : f32 to vector<2x16x256xf32>
    %335 = arith.mulf %22, %334 : vector<2x16x256xf32>
    %336 = arith.addf %333, %335 : vector<2x16x256xf32>
    %337 = vector.broadcast %327 : f32 to vector<2x16x256xf32>
    %338 = arith.mulf %33, %337 : vector<2x16x256xf32>
    %339 = arith.addf %336, %338 : vector<2x16x256xf32>
    %340 = vector.broadcast %331 : f32 to vector<2x16x256xf32>
    %341 = arith.mulf %44, %340 : vector<2x16x256xf32>
    %342 = arith.addf %339, %341 : vector<2x16x256xf32>
    %343 = arith.mulf %319, %319 : f32
    %344 = vector.broadcast %343 : f32 to vector<1x1x1xf32>
    %345 = arith.mulf %52, %344 : vector<1x1x1xf32>
    %346 = arith.mulf %323, %323 : f32
    %347 = vector.broadcast %346 : f32 to vector<1x1x1xf32>
    %348 = arith.mulf %84, %347 : vector<1x1x1xf32>
    %349 = arith.addf %345, %348 : vector<1x1x1xf32>
    %350 = arith.mulf %327, %327 : f32
    %351 = vector.broadcast %350 : f32 to vector<1x1x1xf32>
    %352 = arith.mulf %108, %351 : vector<1x1x1xf32>
    %353 = arith.addf %349, %352 : vector<1x1x1xf32>
    %354 = arith.mulf %331, %331 : f32
    %355 = vector.broadcast %354 : f32 to vector<1x1x1xf32>
    %356 = arith.mulf %124, %355 : vector<1x1x1xf32>
    %357 = arith.addf %353, %356 : vector<1x1x1xf32>
    %cst_91 = arith.constant 2.000000e+00 : f32
    %358 = arith.mulf %cst_91, %319 : f32
    %359 = arith.mulf %358, %323 : f32
    %360 = vector.broadcast %359 : f32 to vector<1x1x1xf32>
    %361 = arith.mulf %60, %360 : vector<1x1x1xf32>
    %362 = arith.addf %357, %361 : vector<1x1x1xf32>
    %cst_92 = arith.constant 2.000000e+00 : f32
    %363 = arith.mulf %cst_92, %319 : f32
    %364 = arith.mulf %363, %327 : f32
    %365 = vector.broadcast %364 : f32 to vector<1x1x1xf32>
    %366 = arith.mulf %68, %365 : vector<1x1x1xf32>
    %367 = arith.addf %362, %366 : vector<1x1x1xf32>
    %cst_93 = arith.constant 2.000000e+00 : f32
    %368 = arith.mulf %cst_93, %319 : f32
    %369 = arith.mulf %368, %331 : f32
    %370 = vector.broadcast %369 : f32 to vector<1x1x1xf32>
    %371 = arith.mulf %76, %370 : vector<1x1x1xf32>
    %372 = arith.addf %367, %371 : vector<1x1x1xf32>
    %cst_94 = arith.constant 2.000000e+00 : f32
    %373 = arith.mulf %cst_94, %323 : f32
    %374 = arith.mulf %373, %327 : f32
    %375 = vector.broadcast %374 : f32 to vector<1x1x1xf32>
    %376 = arith.mulf %92, %375 : vector<1x1x1xf32>
    %377 = arith.addf %372, %376 : vector<1x1x1xf32>
    %cst_95 = arith.constant 2.000000e+00 : f32
    %378 = arith.mulf %cst_95, %323 : f32
    %379 = arith.mulf %378, %331 : f32
    %380 = vector.broadcast %379 : f32 to vector<1x1x1xf32>
    %381 = arith.mulf %100, %380 : vector<1x1x1xf32>
    %382 = arith.addf %377, %381 : vector<1x1x1xf32>
    %cst_96 = arith.constant 2.000000e+00 : f32
    %383 = arith.mulf %cst_96, %327 : f32
    %384 = arith.mulf %383, %331 : f32
    %385 = vector.broadcast %384 : f32 to vector<1x1x1xf32>
    %386 = arith.mulf %116, %385 : vector<1x1x1xf32>
    %387 = arith.addf %382, %386 : vector<1x1x1xf32>
    %388 = arith.index_cast %315 : i32 to index
    %389 = memref.load %arg2[%388] : memref<16xf32, #tpu.memory_space<smem>>
    %cst_97 = arith.constant 9.99999974E-6 : f32
    %390 = vector.broadcast %cst_97 : f32 to vector<1x1x1xf32>
    %391 = arith.addf %387, %390 : vector<1x1x1xf32>
    %392 = math.rsqrt %391 : vector<1x1x1xf32>
    %393 = vector.broadcast %389 : f32 to vector<1x1x1xf32>
    %394 = arith.mulf %393, %392 : vector<1x1x1xf32>
    %395 = vector.broadcast %394 : vector<1x1x1xf32> to vector<2x16x256xf32>
    %396 = arith.mulf %342, %395 : vector<2x16x256xf32>
    %397 = arith.index_cast %315 : i32 to index
    %398 = memref.load %arg3[%397] : memref<16xf32, #tpu.memory_space<smem>>
    %399 = vector.broadcast %398 : f32 to vector<2x16x256xf32>
    %400 = arith.addf %396, %399 : vector<2x16x256xf32>
    %401 = vector.extract_strided_slice %400 {offsets = [0, 0, 0], sizes = [2, 16, 128], strides = [1, 1, 1]} : vector<2x16x256xf32> to vector<2x16x128xf32>
    %c0_98 = arith.constant 0 : index
    %c2_99 = arith.constant 2 : index
    %c0_100 = arith.constant 0 : index
    %c0_101 = arith.constant 0 : index
    %402 = vector.load %arg5[%c0_98, %c2_99, %c0_100, %c0_101] : memref<2x16x16x128xf32, #tpu.memory_space<vmem>>, vector<2x1x16x128xf32>
    %403 = vector.shape_cast %402 : vector<2x1x16x128xf32> to vector<2x16x128xf32>
    %404 = vector.extract_strided_slice %400 {offsets = [0, 0, 128], sizes = [2, 16, 128], strides = [1, 1, 1]} : vector<2x16x256xf32> to vector<2x16x128xf32>
    %405 = arith.mulf %403, %404 : vector<2x16x128xf32>
    %406 = arith.addf %401, %405 : vector<2x16x128xf32>
    %c0_102 = arith.constant 0 : index
    %c2_103 = arith.constant 2 : index
    %c0_104 = arith.constant 0 : index
    %c0_105 = arith.constant 0 : index
    %407 = vector.load %arg6[%c0_102, %c2_103, %c0_104, %c0_105] : memref<2x16x16x128xf32, #tpu.memory_space<vmem>>, vector<2x1x16x128xf32>
    %408 = vector.shape_cast %407 : vector<2x1x16x128xf32> to vector<2x16x128xf32>
    %409 = vector.shape_cast %406 : vector<2x16x128xf32> to vector<2x1x16x128xf32>
    tpu.vector_store %arg6[%c0_102, %c2_103, %c0_104, %c0_105], %409 {strides = array<i32>} : memref<2x16x16x128xf32, #tpu.memory_space<vmem>>, vector<2x1x16x128xf32>,
    %c3_i32_106 = arith.constant 3 : i32
    %410 = arith.addi %0, %c3_i32_106 : i32
    %c4_i32_107 = arith.constant 4 : i32
    %411 = arith.muli %410, %c4_i32_107 : i32
    %c0_i32_108 = arith.constant 0 : i32
    %412 = arith.addi %411, %c0_i32_108 : i32
    %413 = arith.index_cast %412 : i32 to index
    %414 = memref.load %arg1[%413] : memref<64xf32, #tpu.memory_space<smem>>
    %c4_i32_109 = arith.constant 4 : i32
    %415 = arith.muli %410, %c4_i32_109 : i32
    %c1_i32_110 = arith.constant 1 : i32
    %416 = arith.addi %415, %c1_i32_110 : i32
    %417 = arith.index_cast %416 : i32 to index
    %418 = memref.load %arg1[%417] : memref<64xf32, #tpu.memory_space<smem>>
    %c4_i32_111 = arith.constant 4 : i32
    %419 = arith.muli %410, %c4_i32_111 : i32
    %c2_i32_112 = arith.constant 2 : i32
    %420 = arith.addi %419, %c2_i32_112 : i32
    %421 = arith.index_cast %420 : i32 to index
    %422 = memref.load %arg1[%421] : memref<64xf32, #tpu.memory_space<smem>>
    %c4_i32_113 = arith.constant 4 : i32
    %423 = arith.muli %410, %c4_i32_113 : i32
    %c3_i32_114 = arith.constant 3 : i32
    %424 = arith.addi %423, %c3_i32_114 : i32
    %425 = arith.index_cast %424 : i32 to index
    %426 = memref.load %arg1[%425] : memref<64xf32, #tpu.memory_space<smem>>
    %427 = vector.broadcast %414 : f32 to vector<2x16x256xf32>
    %428 = arith.mulf %11, %427 : vector<2x16x256xf32>
    %429 = vector.broadcast %418 : f32 to vector<2x16x256xf32>
    %430 = arith.mulf %22, %429 : vector<2x16x256xf32>
    %431 = arith.addf %428, %430 : vector<2x16x256xf32>
    %432 = vector.broadcast %422 : f32 to vector<2x16x256xf32>
    %433 = arith.mulf %33, %432 : vector<2x16x256xf32>
    %434 = arith.addf %431, %433 : vector<2x16x256xf32>
    %435 = vector.broadcast %426 : f32 to vector<2x16x256xf32>
    %436 = arith.mulf %44, %435 : vector<2x16x256xf32>
    %437 = arith.addf %434, %436 : vector<2x16x256xf32>
    %438 = arith.mulf %414, %414 : f32
    %439 = vector.broadcast %438 : f32 to vector<1x1x1xf32>
    %440 = arith.mulf %52, %439 : vector<1x1x1xf32>
    %441 = arith.mulf %418, %418 : f32
    %442 = vector.broadcast %441 : f32 to vector<1x1x1xf32>
    %443 = arith.mulf %84, %442 : vector<1x1x1xf32>
    %444 = arith.addf %440, %443 : vector<1x1x1xf32>
    %445 = arith.mulf %422, %422 : f32
    %446 = vector.broadcast %445 : f32 to vector<1x1x1xf32>
    %447 = arith.mulf %108, %446 : vector<1x1x1xf32>
    %448 = arith.addf %444, %447 : vector<1x1x1xf32>
    %449 = arith.mulf %426, %426 : f32
    %450 = vector.broadcast %449 : f32 to vector<1x1x1xf32>
    %451 = arith.mulf %124, %450 : vector<1x1x1xf32>
    %452 = arith.addf %448, %451 : vector<1x1x1xf32>
    %cst_115 = arith.constant 2.000000e+00 : f32
    %453 = arith.mulf %cst_115, %414 : f32
    %454 = arith.mulf %453, %418 : f32
    %455 = vector.broadcast %454 : f32 to vector<1x1x1xf32>
    %456 = arith.mulf %60, %455 : vector<1x1x1xf32>
    %457 = arith.addf %452, %456 : vector<1x1x1xf32>
    %cst_116 = arith.constant 2.000000e+00 : f32
    %458 = arith.mulf %cst_116, %414 : f32
    %459 = arith.mulf %458, %422 : f32
    %460 = vector.broadcast %459 : f32 to vector<1x1x1xf32>
    %461 = arith.mulf %68, %460 : vector<1x1x1xf32>
    %462 = arith.addf %457, %461 : vector<1x1x1xf32>
    %cst_117 = arith.constant 2.000000e+00 : f32
    %463 = arith.mulf %cst_117, %414 : f32
    %464 = arith.mulf %463, %426 : f32
    %465 = vector.broadcast %464 : f32 to vector<1x1x1xf32>
    %466 = arith.mulf %76, %465 : vector<1x1x1xf32>
    %467 = arith.addf %462, %466 : vector<1x1x1xf32>
    %cst_118 = arith.constant 2.000000e+00 : f32
    %468 = arith.mulf %cst_118, %418 : f32
    %469 = arith.mulf %468, %422 : f32
    %470 = vector.broadcast %469 : f32 to vector<1x1x1xf32>
    %471 = arith.mulf %92, %470 : vector<1x1x1xf32>
    %472 = arith.addf %467, %471 : vector<1x1x1xf32>
    %cst_119 = arith.constant 2.000000e+00 : f32
    %473 = arith.mulf %cst_119, %418 : f32
    %474 = arith.mulf %473, %426 : f32
    %475 = vector.broadcast %474 : f32 to vector<1x1x1xf32>
    %476 = arith.mulf %100, %475 : vector<1x1x1xf32>
    %477 = arith.addf %472, %476 : vector<1x1x1xf32>
    %cst_120 = arith.constant 2.000000e+00 : f32
    %478 = arith.mulf %cst_120, %422 : f32
    %479 = arith.mulf %478, %426 : f32
    %480 = vector.broadcast %479 : f32 to vector<1x1x1xf32>
    %481 = arith.mulf %116, %480 : vector<1x1x1xf32>
    %482 = arith.addf %477, %481 : vector<1x1x1xf32>
    %483 = arith.index_cast %410 : i32 to index
    %484 = memref.load %arg2[%483] : memref<16xf32, #tpu.memory_space<smem>>
    %cst_121 = arith.constant 9.99999974E-6 : f32
    %485 = vector.broadcast %cst_121 : f32 to vector<1x1x1xf32>
    %486 = arith.addf %482, %485 : vector<1x1x1xf32>
    %487 = math.rsqrt %486 : vector<1x1x1xf32>
    %488 = vector.broadcast %484 : f32 to vector<1x1x1xf32>
    %489 = arith.mulf %488, %487 : vector<1x1x1xf32>
    %490 = vector.broadcast %489 : vector<1x1x1xf32> to vector<2x16x256xf32>
    %491 = arith.mulf %437, %490 : vector<2x16x256xf32>
    %492 = arith.index_cast %410 : i32 to index
    %493 = memref.load %arg3[%492] : memref<16xf32, #tpu.memory_space<smem>>
    %494 = vector.broadcast %493 : f32 to vector<2x16x256xf32>
    %495 = arith.addf %491, %494 : vector<2x16x256xf32>
    %496 = vector.extract_strided_slice %495 {offsets = [0, 0, 0], sizes = [2, 16, 128], strides = [1, 1, 1]} : vector<2x16x256xf32> to vector<2x16x128xf32>
    %c0_122 = arith.constant 0 : index
    %c3_123 = arith.constant 3 : index
    %c0_124 = arith.constant 0 : index
    %c0_125 = arith.constant 0 : index
    %497 = vector.load %arg5[%c0_122, %c3_123, %c0_124, %c0_125] : memref<2x16x16x128xf32, #tpu.memory_space<vmem>>, vector<2x1x16x128xf32>
    %498 = vector.shape_cast %497 : vector<2x1x16x128xf32> to vector<2x16x128xf32>
    %499 = vector.extract_strided_slice %495 {offsets = [0, 0, 128], sizes = [2, 16, 128], strides = [1, 1, 1]} : vector<2x16x256xf32> to vector<2x16x128xf32>
    %500 = arith.mulf %498, %499 : vector<2x16x128xf32>
    %501 = arith.addf %496, %500 : vector<2x16x128xf32>
    %c0_126 = arith.constant 0 : index
    %c3_127 = arith.constant 3 : index
    %c0_128 = arith.constant 0 : index
    %c0_129 = arith.constant 0 : index
    %502 = vector.load %arg6[%c0_126, %c3_127, %c0_128, %c0_129] : memref<2x16x16x128xf32, #tpu.memory_space<vmem>>, vector<2x1x16x128xf32>
    %503 = vector.shape_cast %502 : vector<2x1x16x128xf32> to vector<2x16x128xf32>
    %504 = vector.shape_cast %501 : vector<2x16x128xf32> to vector<2x1x16x128xf32>
    tpu.vector_store %arg6[%c0_126, %c3_127, %c0_128, %c0_129], %504 {strides = array<i32>} : memref<2x16x16x128xf32, #tpu.memory_space<vmem>>, vector<2x1x16x128xf32>,
    %c4_i32_130 = arith.constant 4 : i32
    %505 = arith.addi %0, %c4_i32_130 : i32
    %c4_i32_131 = arith.constant 4 : i32
    %506 = arith.muli %505, %c4_i32_131 : i32
    %c0_i32_132 = arith.constant 0 : i32
    %507 = arith.addi %506, %c0_i32_132 : i32
    %508 = arith.index_cast %507 : i32 to index
    %509 = memref.load %arg1[%508] : memref<64xf32, #tpu.memory_space<smem>>
    %c4_i32_133 = arith.constant 4 : i32
    %510 = arith.muli %505, %c4_i32_133 : i32
    %c1_i32_134 = arith.constant 1 : i32
    %511 = arith.addi %510, %c1_i32_134 : i32
    %512 = arith.index_cast %511 : i32 to index
    %513 = memref.load %arg1[%512] : memref<64xf32, #tpu.memory_space<smem>>
    %c4_i32_135 = arith.constant 4 : i32
    %514 = arith.muli %505, %c4_i32_135 : i32
    %c2_i32_136 = arith.constant 2 : i32
    %515 = arith.addi %514, %c2_i32_136 : i32
    %516 = arith.index_cast %515 : i32 to index
    %517 = memref.load %arg1[%516] : memref<64xf32, #tpu.memory_space<smem>>
    %c4_i32_137 = arith.constant 4 : i32
    %518 = arith.muli %505, %c4_i32_137 : i32
    %c3_i32_138 = arith.constant 3 : i32
    %519 = arith.addi %518, %c3_i32_138 : i32
    %520 = arith.index_cast %519 : i32 to index
    %521 = memref.load %arg1[%520] : memref<64xf32, #tpu.memory_space<smem>>
    %522 = vector.broadcast %509 : f32 to vector<2x16x256xf32>
    %523 = arith.mulf %11, %522 : vector<2x16x256xf32>
    %524 = vector.broadcast %513 : f32 to vector<2x16x256xf32>
    %525 = arith.mulf %22, %524 : vector<2x16x256xf32>
    %526 = arith.addf %523, %525 : vector<2x16x256xf32>
    %527 = vector.broadcast %517 : f32 to vector<2x16x256xf32>
    %528 = arith.mulf %33, %527 : vector<2x16x256xf32>
    %529 = arith.addf %526, %528 : vector<2x16x256xf32>
    %530 = vector.broadcast %521 : f32 to vector<2x16x256xf32>
    %531 = arith.mulf %44, %530 : vector<2x16x256xf32>
    %532 = arith.addf %529, %531 : vector<2x16x256xf32>
    %533 = arith.mulf %509, %509 : f32
    %534 = vector.broadcast %533 : f32 to vector<1x1x1xf32>
    %535 = arith.mulf %52, %534 : vector<1x1x1xf32>
    %536 = arith.mulf %513, %513 : f32
    %537 = vector.broadcast %536 : f32 to vector<1x1x1xf32>
    %538 = arith.mulf %84, %537 : vector<1x1x1xf32>
    %539 = arith.addf %535, %538 : vector<1x1x1xf32>
    %540 = arith.mulf %517, %517 : f32
    %541 = vector.broadcast %540 : f32 to vector<1x1x1xf32>
    %542 = arith.mulf %108, %541 : vector<1x1x1xf32>
    %543 = arith.addf %539, %542 : vector<1x1x1xf32>
    %544 = arith.mulf %521, %521 : f32
    %545 = vector.broadcast %544 : f32 to vector<1x1x1xf32>
    %546 = arith.mulf %124, %545 : vector<1x1x1xf32>
    %547 = arith.addf %543, %546 : vector<1x1x1xf32>
    %cst_139 = arith.constant 2.000000e+00 : f32
    %548 = arith.mulf %cst_139, %509 : f32
    %549 = arith.mulf %548, %513 : f32
    %550 = vector.broadcast %549 : f32 to vector<1x1x1xf32>
    %551 = arith.mulf %60, %550 : vector<1x1x1xf32>
    %552 = arith.addf %547, %551 : vector<1x1x1xf32>
    %cst_140 = arith.constant 2.000000e+00 : f32
    %553 = arith.mulf %cst_140, %509 : f32
    %554 = arith.mulf %553, %517 : f32
    %555 = vector.broadcast %554 : f32 to vector<1x1x1xf32>
    %556 = arith.mulf %68, %555 : vector<1x1x1xf32>
    %557 = arith.addf %552, %556 : vector<1x1x1xf32>
    %cst_141 = arith.constant 2.000000e+00 : f32
    %558 = arith.mulf %cst_141, %509 : f32
    %559 = arith.mulf %558, %521 : f32
    %560 = vector.broadcast %559 : f32 to vector<1x1x1xf32>
    %561 = arith.mulf %76, %560 : vector<1x1x1xf32>
    %562 = arith.addf %557, %561 : vector<1x1x1xf32>
    %cst_142 = arith.constant 2.000000e+00 : f32
    %563 = arith.mulf %cst_142, %513 : f32
    %564 = arith.mulf %563, %517 : f32
    %565 = vector.broadcast %564 : f32 to vector<1x1x1xf32>
    %566 = arith.mulf %92, %565 : vector<1x1x1xf32>
    %567 = arith.addf %562, %566 : vector<1x1x1xf32>
    %cst_143 = arith.constant 2.000000e+00 : f32
    %568 = arith.mulf %cst_143, %513 : f32
    %569 = arith.mulf %568, %521 : f32
    %570 = vector.broadcast %569 : f32 to vector<1x1x1xf32>
    %571 = arith.mulf %100, %570 : vector<1x1x1xf32>
    %572 = arith.addf %567, %571 : vector<1x1x1xf32>
    %cst_144 = arith.constant 2.000000e+00 : f32
    %573 = arith.mulf %cst_144, %517 : f32
    %574 = arith.mulf %573, %521 : f32
    %575 = vector.broadcast %574 : f32 to vector<1x1x1xf32>
    %576 = arith.mulf %116, %575 : vector<1x1x1xf32>
    %577 = arith.addf %572, %576 : vector<1x1x1xf32>
    %578 = arith.index_cast %505 : i32 to index
    %579 = memref.load %arg2[%578] : memref<16xf32, #tpu.memory_space<smem>>
    %cst_145 = arith.constant 9.99999974E-6 : f32
    %580 = vector.broadcast %cst_145 : f32 to vector<1x1x1xf32>
    %581 = arith.addf %577, %580 : vector<1x1x1xf32>
    %582 = math.rsqrt %581 : vector<1x1x1xf32>
    %583 = vector.broadcast %579 : f32 to vector<1x1x1xf32>
    %584 = arith.mulf %583, %582 : vector<1x1x1xf32>
    %585 = vector.broadcast %584 : vector<1x1x1xf32> to vector<2x16x256xf32>
    %586 = arith.mulf %532, %585 : vector<2x16x256xf32>
    %587 = arith.index_cast %505 : i32 to index
    %588 = memref.load %arg3[%587] : memref<16xf32, #tpu.memory_space<smem>>
    %589 = vector.broadcast %588 : f32 to vector<2x16x256xf32>
    %590 = arith.addf %586, %589 : vector<2x16x256xf32>
    %591 = vector.extract_strided_slice %590 {offsets = [0, 0, 0], sizes = [2, 16, 128], strides = [1, 1, 1]} : vector<2x16x256xf32> to vector<2x16x128xf32>
    %c0_146 = arith.constant 0 : index
    %c4 = arith.constant 4 : index
    %c0_147 = arith.constant 0 : index
    %c0_148 = arith.constant 0 : index
    %592 = vector.load %arg5[%c0_146, %c4, %c0_147, %c0_148] : memref<2x16x16x128xf32, #tpu.memory_space<vmem>>, vector<2x1x16x128xf32>
    %593 = vector.shape_cast %592 : vector<2x1x16x128xf32> to vector<2x16x128xf32>
    %594 = vector.extract_strided_slice %590 {offsets = [0, 0, 128], sizes = [2, 16, 128], strides = [1, 1, 1]} : vector<2x16x256xf32> to vector<2x16x128xf32>
    %595 = arith.mulf %593, %594 : vector<2x16x128xf32>
    %596 = arith.addf %591, %595 : vector<2x16x128xf32>
    %c0_149 = arith.constant 0 : index
    %c4_150 = arith.constant 4 : index
    %c0_151 = arith.constant 0 : index
    %c0_152 = arith.constant 0 : index
    %597 = vector.load %arg6[%c0_149, %c4_150, %c0_151, %c0_152] : memref<2x16x16x128xf32, #tpu.memory_space<vmem>>, vector<2x1x16x128xf32>
    %598 = vector.shape_cast %597 : vector<2x1x16x128xf32> to vector<2x16x128xf32>
    %599 = vector.shape_cast %596 : vector<2x16x128xf32> to vector<2x1x16x128xf32>
    tpu.vector_store %arg6[%c0_149, %c4_150, %c0_151, %c0_152], %599 {strides = array<i32>} : memref<2x16x16x128xf32, #tpu.memory_space<vmem>>, vector<2x1x16x128xf32>,
    %c5_i32 = arith.constant 5 : i32
    %600 = arith.addi %0, %c5_i32 : i32
    %c4_i32_153 = arith.constant 4 : i32
    %601 = arith.muli %600, %c4_i32_153 : i32
    %c0_i32_154 = arith.constant 0 : i32
    %602 = arith.addi %601, %c0_i32_154 : i32
    %603 = arith.index_cast %602 : i32 to index
    %604 = memref.load %arg1[%603] : memref<64xf32, #tpu.memory_space<smem>>
    %c4_i32_155 = arith.constant 4 : i32
    %605 = arith.muli %600, %c4_i32_155 : i32
    %c1_i32_156 = arith.constant 1 : i32
    %606 = arith.addi %605, %c1_i32_156 : i32
    %607 = arith.index_cast %606 : i32 to index
    %608 = memref.load %arg1[%607] : memref<64xf32, #tpu.memory_space<smem>>
    %c4_i32_157 = arith.constant 4 : i32
    %609 = arith.muli %600, %c4_i32_157 : i32
    %c2_i32_158 = arith.constant 2 : i32
    %610 = arith.addi %609, %c2_i32_158 : i32
    %611 = arith.index_cast %610 : i32 to index
    %612 = memref.load %arg1[%611] : memref<64xf32, #tpu.memory_space<smem>>
    %c4_i32_159 = arith.constant 4 : i32
    %613 = arith.muli %600, %c4_i32_159 : i32
    %c3_i32_160 = arith.constant 3 : i32
    %614 = arith.addi %613, %c3_i32_160 : i32
    %615 = arith.index_cast %614 : i32 to index
    %616 = memref.load %arg1[%615] : memref<64xf32, #tpu.memory_space<smem>>
    %617 = vector.broadcast %604 : f32 to vector<2x16x256xf32>
    %618 = arith.mulf %11, %617 : vector<2x16x256xf32>
    %619 = vector.broadcast %608 : f32 to vector<2x16x256xf32>
    %620 = arith.mulf %22, %619 : vector<2x16x256xf32>
    %621 = arith.addf %618, %620 : vector<2x16x256xf32>
    %622 = vector.broadcast %612 : f32 to vector<2x16x256xf32>
    %623 = arith.mulf %33, %622 : vector<2x16x256xf32>
    %624 = arith.addf %621, %623 : vector<2x16x256xf32>
    %625 = vector.broadcast %616 : f32 to vector<2x16x256xf32>
    %626 = arith.mulf %44, %625 : vector<2x16x256xf32>
    %627 = arith.addf %624, %626 : vector<2x16x256xf32>
    %628 = arith.mulf %604, %604 : f32
    %629 = vector.broadcast %628 : f32 to vector<1x1x1xf32>
    %630 = arith.mulf %52, %629 : vector<1x1x1xf32>
    %631 = arith.mulf %608, %608 : f32
    %632 = vector.broadcast %631 : f32 to vector<1x1x1xf32>
    %633 = arith.mulf %84, %632 : vector<1x1x1xf32>
    %634 = arith.addf %630, %633 : vector<1x1x1xf32>
    %635 = arith.mulf %612, %612 : f32
    %636 = vector.broadcast %635 : f32 to vector<1x1x1xf32>
    %637 = arith.mulf %108, %636 : vector<1x1x1xf32>
    %638 = arith.addf %634, %637 : vector<1x1x1xf32>
    %639 = arith.mulf %616, %616 : f32
    %640 = vector.broadcast %639 : f32 to vector<1x1x1xf32>
    %641 = arith.mulf %124, %640 : vector<1x1x1xf32>
    %642 = arith.addf %638, %641 : vector<1x1x1xf32>
    %cst_161 = arith.constant 2.000000e+00 : f32
    %643 = arith.mulf %cst_161, %604 : f32
    %644 = arith.mulf %643, %608 : f32
    %645 = vector.broadcast %644 : f32 to vector<1x1x1xf32>
    %646 = arith.mulf %60, %645 : vector<1x1x1xf32>
    %647 = arith.addf %642, %646 : vector<1x1x1xf32>
    %cst_162 = arith.constant 2.000000e+00 : f32
    %648 = arith.mulf %cst_162, %604 : f32
    %649 = arith.mulf %648, %612 : f32
    %650 = vector.broadcast %649 : f32 to vector<1x1x1xf32>
    %651 = arith.mulf %68, %650 : vector<1x1x1xf32>
    %652 = arith.addf %647, %651 : vector<1x1x1xf32>
    %cst_163 = arith.constant 2.000000e+00 : f32
    %653 = arith.mulf %cst_163, %604 : f32
    %654 = arith.mulf %653, %616 : f32
    %655 = vector.broadcast %654 : f32 to vector<1x1x1xf32>
    %656 = arith.mulf %76, %655 : vector<1x1x1xf32>
    %657 = arith.addf %652, %656 : vector<1x1x1xf32>
    %cst_164 = arith.constant 2.000000e+00 : f32
    %658 = arith.mulf %cst_164, %608 : f32
    %659 = arith.mulf %658, %612 : f32
    %660 = vector.broadcast %659 : f32 to vector<1x1x1xf32>
    %661 = arith.mulf %92, %660 : vector<1x1x1xf32>
    %662 = arith.addf %657, %661 : vector<1x1x1xf32>
    %cst_165 = arith.constant 2.000000e+00 : f32
    %663 = arith.mulf %cst_165, %608 : f32
    %664 = arith.mulf %663, %616 : f32
    %665 = vector.broadcast %664 : f32 to vector<1x1x1xf32>
    %666 = arith.mulf %100, %665 : vector<1x1x1xf32>
    %667 = arith.addf %662, %666 : vector<1x1x1xf32>
    %cst_166 = arith.constant 2.000000e+00 : f32
    %668 = arith.mulf %cst_166, %612 : f32
    %669 = arith.mulf %668, %616 : f32
    %670 = vector.broadcast %669 : f32 to vector<1x1x1xf32>
    %671 = arith.mulf %116, %670 : vector<1x1x1xf32>
    %672 = arith.addf %667, %671 : vector<1x1x1xf32>
    %673 = arith.index_cast %600 : i32 to index
    %674 = memref.load %arg2[%673] : memref<16xf32, #tpu.memory_space<smem>>
    %cst_167 = arith.constant 9.99999974E-6 : f32
    %675 = vector.broadcast %cst_167 : f32 to vector<1x1x1xf32>
    %676 = arith.addf %672, %675 : vector<1x1x1xf32>
    %677 = math.rsqrt %676 : vector<1x1x1xf32>
    %678 = vector.broadcast %674 : f32 to vector<1x1x1xf32>
    %679 = arith.mulf %678, %677 : vector<1x1x1xf32>
    %680 = vector.broadcast %679 : vector<1x1x1xf32> to vector<2x16x256xf32>
    %681 = arith.mulf %627, %680 : vector<2x16x256xf32>
    %682 = arith.index_cast %600 : i32 to index
    %683 = memref.load %arg3[%682] : memref<16xf32, #tpu.memory_space<smem>>
    %684 = vector.broadcast %683 : f32 to vector<2x16x256xf32>
    %685 = arith.addf %681, %684 : vector<2x16x256xf32>
    %686 = vector.extract_strided_slice %685 {offsets = [0, 0, 0], sizes = [2, 16, 128], strides = [1, 1, 1]} : vector<2x16x256xf32> to vector<2x16x128xf32>
    %c0_168 = arith.constant 0 : index
    %c5 = arith.constant 5 : index
    %c0_169 = arith.constant 0 : index
    %c0_170 = arith.constant 0 : index
    %687 = vector.load %arg5[%c0_168, %c5, %c0_169, %c0_170] : memref<2x16x16x128xf32, #tpu.memory_space<vmem>>, vector<2x1x16x128xf32>
    %688 = vector.shape_cast %687 : vector<2x1x16x128xf32> to vector<2x16x128xf32>
    %689 = vector.extract_strided_slice %685 {offsets = [0, 0, 128], sizes = [2, 16, 128], strides = [1, 1, 1]} : vector<2x16x256xf32> to vector<2x16x128xf32>
    %690 = arith.mulf %688, %689 : vector<2x16x128xf32>
    %691 = arith.addf %686, %690 : vector<2x16x128xf32>
    %c0_171 = arith.constant 0 : index
    %c5_172 = arith.constant 5 : index
    %c0_173 = arith.constant 0 : index
    %c0_174 = arith.constant 0 : index
    %692 = vector.load %arg6[%c0_171, %c5_172, %c0_173, %c0_174] : memref<2x16x16x128xf32, #tpu.memory_space<vmem>>, vector<2x1x16x128xf32>
    %693 = vector.shape_cast %692 : vector<2x1x16x128xf32> to vector<2x16x128xf32>
    %694 = vector.shape_cast %691 : vector<2x16x128xf32> to vector<2x1x16x128xf32>
    tpu.vector_store %arg6[%c0_171, %c5_172, %c0_173, %c0_174], %694 {strides = array<i32>} : memref<2x16x16x128xf32, #tpu.memory_space<vmem>>, vector<2x1x16x128xf32>,
    %c6_i32 = arith.constant 6 : i32
    %695 = arith.addi %0, %c6_i32 : i32
    %c4_i32_175 = arith.constant 4 : i32
    %696 = arith.muli %695, %c4_i32_175 : i32
    %c0_i32_176 = arith.constant 0 : i32
    %697 = arith.addi %696, %c0_i32_176 : i32
    %698 = arith.index_cast %697 : i32 to index
    %699 = memref.load %arg1[%698] : memref<64xf32, #tpu.memory_space<smem>>
    %c4_i32_177 = arith.constant 4 : i32
    %700 = arith.muli %695, %c4_i32_177 : i32
    %c1_i32_178 = arith.constant 1 : i32
    %701 = arith.addi %700, %c1_i32_178 : i32
    %702 = arith.index_cast %701 : i32 to index
    %703 = memref.load %arg1[%702] : memref<64xf32, #tpu.memory_space<smem>>
    %c4_i32_179 = arith.constant 4 : i32
    %704 = arith.muli %695, %c4_i32_179 : i32
    %c2_i32_180 = arith.constant 2 : i32
    %705 = arith.addi %704, %c2_i32_180 : i32
    %706 = arith.index_cast %705 : i32 to index
    %707 = memref.load %arg1[%706] : memref<64xf32, #tpu.memory_space<smem>>
    %c4_i32_181 = arith.constant 4 : i32
    %708 = arith.muli %695, %c4_i32_181 : i32
    %c3_i32_182 = arith.constant 3 : i32
    %709 = arith.addi %708, %c3_i32_182 : i32
    %710 = arith.index_cast %709 : i32 to index
    %711 = memref.load %arg1[%710] : memref<64xf32, #tpu.memory_space<smem>>
    %712 = vector.broadcast %699 : f32 to vector<2x16x256xf32>
    %713 = arith.mulf %11, %712 : vector<2x16x256xf32>
    %714 = vector.broadcast %703 : f32 to vector<2x16x256xf32>
    %715 = arith.mulf %22, %714 : vector<2x16x256xf32>
    %716 = arith.addf %713, %715 : vector<2x16x256xf32>
    %717 = vector.broadcast %707 : f32 to vector<2x16x256xf32>
    %718 = arith.mulf %33, %717 : vector<2x16x256xf32>
    %719 = arith.addf %716, %718 : vector<2x16x256xf32>
    %720 = vector.broadcast %711 : f32 to vector<2x16x256xf32>
    %721 = arith.mulf %44, %720 : vector<2x16x256xf32>
    %722 = arith.addf %719, %721 : vector<2x16x256xf32>
    %723 = arith.mulf %699, %699 : f32
    %724 = vector.broadcast %723 : f32 to vector<1x1x1xf32>
    %725 = arith.mulf %52, %724 : vector<1x1x1xf32>
    %726 = arith.mulf %703, %703 : f32
    %727 = vector.broadcast %726 : f32 to vector<1x1x1xf32>
    %728 = arith.mulf %84, %727 : vector<1x1x1xf32>
    %729 = arith.addf %725, %728 : vector<1x1x1xf32>
    %730 = arith.mulf %707, %707 : f32
    %731 = vector.broadcast %730 : f32 to vector<1x1x1xf32>
    %732 = arith.mulf %108, %731 : vector<1x1x1xf32>
    %733 = arith.addf %729, %732 : vector<1x1x1xf32>
    %734 = arith.mulf %711, %711 : f32
    %735 = vector.broadcast %734 : f32 to vector<1x1x1xf32>
    %736 = arith.mulf %124, %735 : vector<1x1x1xf32>
    %737 = arith.addf %733, %736 : vector<1x1x1xf32>
    %cst_183 = arith.constant 2.000000e+00 : f32
    %738 = arith.mulf %cst_183, %699 : f32
    %739 = arith.mulf %738, %703 : f32
    %740 = vector.broadcast %739 : f32 to vector<1x1x1xf32>
    %741 = arith.mulf %60, %740 : vector<1x1x1xf32>
    %742 = arith.addf %737, %741 : vector<1x1x1xf32>
    %cst_184 = arith.constant 2.000000e+00 : f32
    %743 = arith.mulf %cst_184, %699 : f32
    %744 = arith.mulf %743, %707 : f32
    %745 = vector.broadcast %744 : f32 to vector<1x1x1xf32>
    %746 = arith.mulf %68, %745 : vector<1x1x1xf32>
    %747 = arith.addf %742, %746 : vector<1x1x1xf32>
    %cst_185 = arith.constant 2.000000e+00 : f32
    %748 = arith.mulf %cst_185, %699 : f32
    %749 = arith.mulf %748, %711 : f32
    %750 = vector.broadcast %749 : f32 to vector<1x1x1xf32>
    %751 = arith.mulf %76, %750 : vector<1x1x1xf32>
    %752 = arith.addf %747, %751 : vector<1x1x1xf32>
    %cst_186 = arith.constant 2.000000e+00 : f32
    %753 = arith.mulf %cst_186, %703 : f32
    %754 = arith.mulf %753, %707 : f32
    %755 = vector.broadcast %754 : f32 to vector<1x1x1xf32>
    %756 = arith.mulf %92, %755 : vector<1x1x1xf32>
    %757 = arith.addf %752, %756 : vector<1x1x1xf32>
    %cst_187 = arith.constant 2.000000e+00 : f32
    %758 = arith.mulf %cst_187, %703 : f32
    %759 = arith.mulf %758, %711 : f32
    %760 = vector.broadcast %759 : f32 to vector<1x1x1xf32>
    %761 = arith.mulf %100, %760 : vector<1x1x1xf32>
    %762 = arith.addf %757, %761 : vector<1x1x1xf32>
    %cst_188 = arith.constant 2.000000e+00 : f32
    %763 = arith.mulf %cst_188, %707 : f32
    %764 = arith.mulf %763, %711 : f32
    %765 = vector.broadcast %764 : f32 to vector<1x1x1xf32>
    %766 = arith.mulf %116, %765 : vector<1x1x1xf32>
    %767 = arith.addf %762, %766 : vector<1x1x1xf32>
    %768 = arith.index_cast %695 : i32 to index
    %769 = memref.load %arg2[%768] : memref<16xf32, #tpu.memory_space<smem>>
    %cst_189 = arith.constant 9.99999974E-6 : f32
    %770 = vector.broadcast %cst_189 : f32 to vector<1x1x1xf32>
    %771 = arith.addf %767, %770 : vector<1x1x1xf32>
    %772 = math.rsqrt %771 : vector<1x1x1xf32>
    %773 = vector.broadcast %769 : f32 to vector<1x1x1xf32>
    %774 = arith.mulf %773, %772 : vector<1x1x1xf32>
    %775 = vector.broadcast %774 : vector<1x1x1xf32> to vector<2x16x256xf32>
    %776 = arith.mulf %722, %775 : vector<2x16x256xf32>
    %777 = arith.index_cast %695 : i32 to index
    %778 = memref.load %arg3[%777] : memref<16xf32, #tpu.memory_space<smem>>
    %779 = vector.broadcast %778 : f32 to vector<2x16x256xf32>
    %780 = arith.addf %776, %779 : vector<2x16x256xf32>
    %781 = vector.extract_strided_slice %780 {offsets = [0, 0, 0], sizes = [2, 16, 128], strides = [1, 1, 1]} : vector<2x16x256xf32> to vector<2x16x128xf32>
    %c0_190 = arith.constant 0 : index
    %c6 = arith.constant 6 : index
    %c0_191 = arith.constant 0 : index
    %c0_192 = arith.constant 0 : index
    %782 = vector.load %arg5[%c0_190, %c6, %c0_191, %c0_192] : memref<2x16x16x128xf32, #tpu.memory_space<vmem>>, vector<2x1x16x128xf32>
    %783 = vector.shape_cast %782 : vector<2x1x16x128xf32> to vector<2x16x128xf32>
    %784 = vector.extract_strided_slice %780 {offsets = [0, 0, 128], sizes = [2, 16, 128], strides = [1, 1, 1]} : vector<2x16x256xf32> to vector<2x16x128xf32>
    %785 = arith.mulf %783, %784 : vector<2x16x128xf32>
    %786 = arith.addf %781, %785 : vector<2x16x128xf32>
    %c0_193 = arith.constant 0 : index
    %c6_194 = arith.constant 6 : index
    %c0_195 = arith.constant 0 : index
    %c0_196 = arith.constant 0 : index
    %787 = vector.load %arg6[%c0_193, %c6_194, %c0_195, %c0_196] : memref<2x16x16x128xf32, #tpu.memory_space<vmem>>, vector<2x1x16x128xf32>
    %788 = vector.shape_cast %787 : vector<2x1x16x128xf32> to vector<2x16x128xf32>
    %789 = vector.shape_cast %786 : vector<2x16x128xf32> to vector<2x1x16x128xf32>
    tpu.vector_store %arg6[%c0_193, %c6_194, %c0_195, %c0_196], %789 {strides = array<i32>} : memref<2x16x16x128xf32, #tpu.memory_space<vmem>>, vector<2x1x16x128xf32>,
    %c7_i32 = arith.constant 7 : i32
    %790 = arith.addi %0, %c7_i32 : i32
    %c4_i32_197 = arith.constant 4 : i32
    %791 = arith.muli %790, %c4_i32_197 : i32
    %c0_i32_198 = arith.constant 0 : i32
    %792 = arith.addi %791, %c0_i32_198 : i32
    %793 = arith.index_cast %792 : i32 to index
    %794 = memref.load %arg1[%793] : memref<64xf32, #tpu.memory_space<smem>>
    %c4_i32_199 = arith.constant 4 : i32
    %795 = arith.muli %790, %c4_i32_199 : i32
    %c1_i32_200 = arith.constant 1 : i32
    %796 = arith.addi %795, %c1_i32_200 : i32
    %797 = arith.index_cast %796 : i32 to index
    %798 = memref.load %arg1[%797] : memref<64xf32, #tpu.memory_space<smem>>
    %c4_i32_201 = arith.constant 4 : i32
    %799 = arith.muli %790, %c4_i32_201 : i32
    %c2_i32_202 = arith.constant 2 : i32
    %800 = arith.addi %799, %c2_i32_202 : i32
    %801 = arith.index_cast %800 : i32 to index
    %802 = memref.load %arg1[%801] : memref<64xf32, #tpu.memory_space<smem>>
    %c4_i32_203 = arith.constant 4 : i32
    %803 = arith.muli %790, %c4_i32_203 : i32
    %c3_i32_204 = arith.constant 3 : i32
    %804 = arith.addi %803, %c3_i32_204 : i32
    %805 = arith.index_cast %804 : i32 to index
    %806 = memref.load %arg1[%805] : memref<64xf32, #tpu.memory_space<smem>>
    %807 = vector.broadcast %794 : f32 to vector<2x16x256xf32>
    %808 = arith.mulf %11, %807 : vector<2x16x256xf32>
    %809 = vector.broadcast %798 : f32 to vector<2x16x256xf32>
    %810 = arith.mulf %22, %809 : vector<2x16x256xf32>
    %811 = arith.addf %808, %810 : vector<2x16x256xf32>
    %812 = vector.broadcast %802 : f32 to vector<2x16x256xf32>
    %813 = arith.mulf %33, %812 : vector<2x16x256xf32>
    %814 = arith.addf %811, %813 : vector<2x16x256xf32>
    %815 = vector.broadcast %806 : f32 to vector<2x16x256xf32>
    %816 = arith.mulf %44, %815 : vector<2x16x256xf32>
    %817 = arith.addf %814, %816 : vector<2x16x256xf32>
    %818 = arith.mulf %794, %794 : f32
    %819 = vector.broadcast %818 : f32 to vector<1x1x1xf32>
    %820 = arith.mulf %52, %819 : vector<1x1x1xf32>
    %821 = arith.mulf %798, %798 : f32
    %822 = vector.broadcast %821 : f32 to vector<1x1x1xf32>
    %823 = arith.mulf %84, %822 : vector<1x1x1xf32>
    %824 = arith.addf %820, %823 : vector<1x1x1xf32>
    %825 = arith.mulf %802, %802 : f32
    %826 = vector.broadcast %825 : f32 to vector<1x1x1xf32>
    %827 = arith.mulf %108, %826 : vector<1x1x1xf32>
    %828 = arith.addf %824, %827 : vector<1x1x1xf32>
    %829 = arith.mulf %806, %806 : f32
    %830 = vector.broadcast %829 : f32 to vector<1x1x1xf32>
    %831 = arith.mulf %124, %830 : vector<1x1x1xf32>
    %832 = arith.addf %828, %831 : vector<1x1x1xf32>
    %cst_205 = arith.constant 2.000000e+00 : f32
    %833 = arith.mulf %cst_205, %794 : f32
    %834 = arith.mulf %833, %798 : f32
    %835 = vector.broadcast %834 : f32 to vector<1x1x1xf32>
    %836 = arith.mulf %60, %835 : vector<1x1x1xf32>
    %837 = arith.addf %832, %836 : vector<1x1x1xf32>
    %cst_206 = arith.constant 2.000000e+00 : f32
    %838 = arith.mulf %cst_206, %794 : f32
    %839 = arith.mulf %838, %802 : f32
    %840 = vector.broadcast %839 : f32 to vector<1x1x1xf32>
    %841 = arith.mulf %68, %840 : vector<1x1x1xf32>
    %842 = arith.addf %837, %841 : vector<1x1x1xf32>
    %cst_207 = arith.constant 2.000000e+00 : f32
    %843 = arith.mulf %cst_207, %794 : f32
    %844 = arith.mulf %843, %806 : f32
    %845 = vector.broadcast %844 : f32 to vector<1x1x1xf32>
    %846 = arith.mulf %76, %845 : vector<1x1x1xf32>
    %847 = arith.addf %842, %846 : vector<1x1x1xf32>
    %cst_208 = arith.constant 2.000000e+00 : f32
    %848 = arith.mulf %cst_208, %798 : f32
    %849 = arith.mulf %848, %802 : f32
    %850 = vector.broadcast %849 : f32 to vector<1x1x1xf32>
    %851 = arith.mulf %92, %850 : vector<1x1x1xf32>
    %852 = arith.addf %847, %851 : vector<1x1x1xf32>
    %cst_209 = arith.constant 2.000000e+00 : f32
    %853 = arith.mulf %cst_209, %798 : f32
    %854 = arith.mulf %853, %806 : f32
    %855 = vector.broadcast %854 : f32 to vector<1x1x1xf32>
    %856 = arith.mulf %100, %855 : vector<1x1x1xf32>
    %857 = arith.addf %852, %856 : vector<1x1x1xf32>
    %cst_210 = arith.constant 2.000000e+00 : f32
    %858 = arith.mulf %cst_210, %802 : f32
    %859 = arith.mulf %858, %806 : f32
    %860 = vector.broadcast %859 : f32 to vector<1x1x1xf32>
    %861 = arith.mulf %116, %860 : vector<1x1x1xf32>
    %862 = arith.addf %857, %861 : vector<1x1x1xf32>
    %863 = arith.index_cast %790 : i32 to index
    %864 = memref.load %arg2[%863] : memref<16xf32, #tpu.memory_space<smem>>
    %cst_211 = arith.constant 9.99999974E-6 : f32
    %865 = vector.broadcast %cst_211 : f32 to vector<1x1x1xf32>
    %866 = arith.addf %862, %865 : vector<1x1x1xf32>
    %867 = math.rsqrt %866 : vector<1x1x1xf32>
    %868 = vector.broadcast %864 : f32 to vector<1x1x1xf32>
    %869 = arith.mulf %868, %867 : vector<1x1x1xf32>
    %870 = vector.broadcast %869 : vector<1x1x1xf32> to vector<2x16x256xf32>
    %871 = arith.mulf %817, %870 : vector<2x16x256xf32>
    %872 = arith.index_cast %790 : i32 to index
    %873 = memref.load %arg3[%872] : memref<16xf32, #tpu.memory_space<smem>>
    %874 = vector.broadcast %873 : f32 to vector<2x16x256xf32>
    %875 = arith.addf %871, %874 : vector<2x16x256xf32>
    %876 = vector.extract_strided_slice %875 {offsets = [0, 0, 0], sizes = [2, 16, 128], strides = [1, 1, 1]} : vector<2x16x256xf32> to vector<2x16x128xf32>
    %c0_212 = arith.constant 0 : index
    %c7 = arith.constant 7 : index
    %c0_213 = arith.constant 0 : index
    %c0_214 = arith.constant 0 : index
    %877 = vector.load %arg5[%c0_212, %c7, %c0_213, %c0_214] : memref<2x16x16x128xf32, #tpu.memory_space<vmem>>, vector<2x1x16x128xf32>
    %878 = vector.shape_cast %877 : vector<2x1x16x128xf32> to vector<2x16x128xf32>
    %879 = vector.extract_strided_slice %875 {offsets = [0, 0, 128], sizes = [2, 16, 128], strides = [1, 1, 1]} : vector<2x16x256xf32> to vector<2x16x128xf32>
    %880 = arith.mulf %878, %879 : vector<2x16x128xf32>
    %881 = arith.addf %876, %880 : vector<2x16x128xf32>
    %c0_215 = arith.constant 0 : index
    %c7_216 = arith.constant 7 : index
    %c0_217 = arith.constant 0 : index
    %c0_218 = arith.constant 0 : index
    %882 = vector.load %arg6[%c0_215, %c7_216, %c0_217, %c0_218] : memref<2x16x16x128xf32, #tpu.memory_space<vmem>>, vector<2x1x16x128xf32>
    %883 = vector.shape_cast %882 : vector<2x1x16x128xf32> to vector<2x16x128xf32>
    %884 = vector.shape_cast %881 : vector<2x16x128xf32> to vector<2x1x16x128xf32>
    tpu.vector_store %arg6[%c0_215, %c7_216, %c0_217, %c0_218], %884 {strides = array<i32>} : memref<2x16x16x128xf32, #tpu.memory_space<vmem>>, vector<2x1x16x128xf32>,
    %c8_i32 = arith.constant 8 : i32
    %885 = arith.addi %0, %c8_i32 : i32
    %c4_i32_219 = arith.constant 4 : i32
    %886 = arith.muli %885, %c4_i32_219 : i32
    %c0_i32_220 = arith.constant 0 : i32
    %887 = arith.addi %886, %c0_i32_220 : i32
    %888 = arith.index_cast %887 : i32 to index
    %889 = memref.load %arg1[%888] : memref<64xf32, #tpu.memory_space<smem>>
    %c4_i32_221 = arith.constant 4 : i32
    %890 = arith.muli %885, %c4_i32_221 : i32
    %c1_i32_222 = arith.constant 1 : i32
    %891 = arith.addi %890, %c1_i32_222 : i32
    %892 = arith.index_cast %891 : i32 to index
    %893 = memref.load %arg1[%892] : memref<64xf32, #tpu.memory_space<smem>>
    %c4_i32_223 = arith.constant 4 : i32
    %894 = arith.muli %885, %c4_i32_223 : i32
    %c2_i32_224 = arith.constant 2 : i32
    %895 = arith.addi %894, %c2_i32_224 : i32
    %896 = arith.index_cast %895 : i32 to index
    %897 = memref.load %arg1[%896] : memref<64xf32, #tpu.memory_space<smem>>
    %c4_i32_225 = arith.constant 4 : i32
    %898 = arith.muli %885, %c4_i32_225 : i32
    %c3_i32_226 = arith.constant 3 : i32
    %899 = arith.addi %898, %c3_i32_226 : i32
    %900 = arith.index_cast %899 : i32 to index
    %901 = memref.load %arg1[%900] : memref<64xf32, #tpu.memory_space<smem>>
    %902 = vector.broadcast %889 : f32 to vector<2x16x256xf32>
    %903 = arith.mulf %11, %902 : vector<2x16x256xf32>
    %904 = vector.broadcast %893 : f32 to vector<2x16x256xf32>
    %905 = arith.mulf %22, %904 : vector<2x16x256xf32>
    %906 = arith.addf %903, %905 : vector<2x16x256xf32>
    %907 = vector.broadcast %897 : f32 to vector<2x16x256xf32>
    %908 = arith.mulf %33, %907 : vector<2x16x256xf32>
    %909 = arith.addf %906, %908 : vector<2x16x256xf32>
    %910 = vector.broadcast %901 : f32 to vector<2x16x256xf32>
    %911 = arith.mulf %44, %910 : vector<2x16x256xf32>
    %912 = arith.addf %909, %911 : vector<2x16x256xf32>
    %913 = arith.mulf %889, %889 : f32
    %914 = vector.broadcast %913 : f32 to vector<1x1x1xf32>
    %915 = arith.mulf %52, %914 : vector<1x1x1xf32>
    %916 = arith.mulf %893, %893 : f32
    %917 = vector.broadcast %916 : f32 to vector<1x1x1xf32>
    %918 = arith.mulf %84, %917 : vector<1x1x1xf32>
    %919 = arith.addf %915, %918 : vector<1x1x1xf32>
    %920 = arith.mulf %897, %897 : f32
    %921 = vector.broadcast %920 : f32 to vector<1x1x1xf32>
    %922 = arith.mulf %108, %921 : vector<1x1x1xf32>
    %923 = arith.addf %919, %922 : vector<1x1x1xf32>
    %924 = arith.mulf %901, %901 : f32
    %925 = vector.broadcast %924 : f32 to vector<1x1x1xf32>
    %926 = arith.mulf %124, %925 : vector<1x1x1xf32>
    %927 = arith.addf %923, %926 : vector<1x1x1xf32>
    %cst_227 = arith.constant 2.000000e+00 : f32
    %928 = arith.mulf %cst_227, %889 : f32
    %929 = arith.mulf %928, %893 : f32
    %930 = vector.broadcast %929 : f32 to vector<1x1x1xf32>
    %931 = arith.mulf %60, %930 : vector<1x1x1xf32>
    %932 = arith.addf %927, %931 : vector<1x1x1xf32>
    %cst_228 = arith.constant 2.000000e+00 : f32
    %933 = arith.mulf %cst_228, %889 : f32
    %934 = arith.mulf %933, %897 : f32
    %935 = vector.broadcast %934 : f32 to vector<1x1x1xf32>
    %936 = arith.mulf %68, %935 : vector<1x1x1xf32>
    %937 = arith.addf %932, %936 : vector<1x1x1xf32>
    %cst_229 = arith.constant 2.000000e+00 : f32
    %938 = arith.mulf %cst_229, %889 : f32
    %939 = arith.mulf %938, %901 : f32
    %940 = vector.broadcast %939 : f32 to vector<1x1x1xf32>
    %941 = arith.mulf %76, %940 : vector<1x1x1xf32>
    %942 = arith.addf %937, %941 : vector<1x1x1xf32>
    %cst_230 = arith.constant 2.000000e+00 : f32
    %943 = arith.mulf %cst_230, %893 : f32
    %944 = arith.mulf %943, %897 : f32
    %945 = vector.broadcast %944 : f32 to vector<1x1x1xf32>
    %946 = arith.mulf %92, %945 : vector<1x1x1xf32>
    %947 = arith.addf %942, %946 : vector<1x1x1xf32>
    %cst_231 = arith.constant 2.000000e+00 : f32
    %948 = arith.mulf %cst_231, %893 : f32
    %949 = arith.mulf %948, %901 : f32
    %950 = vector.broadcast %949 : f32 to vector<1x1x1xf32>
    %951 = arith.mulf %100, %950 : vector<1x1x1xf32>
    %952 = arith.addf %947, %951 : vector<1x1x1xf32>
    %cst_232 = arith.constant 2.000000e+00 : f32
    %953 = arith.mulf %cst_232, %897 : f32
    %954 = arith.mulf %953, %901 : f32
    %955 = vector.broadcast %954 : f32 to vector<1x1x1xf32>
    %956 = arith.mulf %116, %955 : vector<1x1x1xf32>
    %957 = arith.addf %952, %956 : vector<1x1x1xf32>
    %958 = arith.index_cast %885 : i32 to index
    %959 = memref.load %arg2[%958] : memref<16xf32, #tpu.memory_space<smem>>
    %cst_233 = arith.constant 9.99999974E-6 : f32
    %960 = vector.broadcast %cst_233 : f32 to vector<1x1x1xf32>
    %961 = arith.addf %957, %960 : vector<1x1x1xf32>
    %962 = math.rsqrt %961 : vector<1x1x1xf32>
    %963 = vector.broadcast %959 : f32 to vector<1x1x1xf32>
    %964 = arith.mulf %963, %962 : vector<1x1x1xf32>
    %965 = vector.broadcast %964 : vector<1x1x1xf32> to vector<2x16x256xf32>
    %966 = arith.mulf %912, %965 : vector<2x16x256xf32>
    %967 = arith.index_cast %885 : i32 to index
    %968 = memref.load %arg3[%967] : memref<16xf32, #tpu.memory_space<smem>>
    %969 = vector.broadcast %968 : f32 to vector<2x16x256xf32>
    %970 = arith.addf %966, %969 : vector<2x16x256xf32>
    %971 = vector.extract_strided_slice %970 {offsets = [0, 0, 0], sizes = [2, 16, 128], strides = [1, 1, 1]} : vector<2x16x256xf32> to vector<2x16x128xf32>
    %c0_234 = arith.constant 0 : index
    %c8 = arith.constant 8 : index
    %c0_235 = arith.constant 0 : index
    %c0_236 = arith.constant 0 : index
    %972 = vector.load %arg5[%c0_234, %c8, %c0_235, %c0_236] : memref<2x16x16x128xf32, #tpu.memory_space<vmem>>, vector<2x1x16x128xf32>
    %973 = vector.shape_cast %972 : vector<2x1x16x128xf32> to vector<2x16x128xf32>
    %974 = vector.extract_strided_slice %970 {offsets = [0, 0, 128], sizes = [2, 16, 128], strides = [1, 1, 1]} : vector<2x16x256xf32> to vector<2x16x128xf32>
    %975 = arith.mulf %973, %974 : vector<2x16x128xf32>
    %976 = arith.addf %971, %975 : vector<2x16x128xf32>
    %c0_237 = arith.constant 0 : index
    %c8_238 = arith.constant 8 : index
    %c0_239 = arith.constant 0 : index
    %c0_240 = arith.constant 0 : index
    %977 = vector.load %arg6[%c0_237, %c8_238, %c0_239, %c0_240] : memref<2x16x16x128xf32, #tpu.memory_space<vmem>>, vector<2x1x16x128xf32>
    %978 = vector.shape_cast %977 : vector<2x1x16x128xf32> to vector<2x16x128xf32>
    %979 = vector.shape_cast %976 : vector<2x16x128xf32> to vector<2x1x16x128xf32>
    tpu.vector_store %arg6[%c0_237, %c8_238, %c0_239, %c0_240], %979 {strides = array<i32>} : memref<2x16x16x128xf32, #tpu.memory_space<vmem>>, vector<2x1x16x128xf32>,
    %c9_i32 = arith.constant 9 : i32
    %980 = arith.addi %0, %c9_i32 : i32
    %c4_i32_241 = arith.constant 4 : i32
    %981 = arith.muli %980, %c4_i32_241 : i32
    %c0_i32_242 = arith.constant 0 : i32
    %982 = arith.addi %981, %c0_i32_242 : i32
    %983 = arith.index_cast %982 : i32 to index
    %984 = memref.load %arg1[%983] : memref<64xf32, #tpu.memory_space<smem>>
    %c4_i32_243 = arith.constant 4 : i32
    %985 = arith.muli %980, %c4_i32_243 : i32
    %c1_i32_244 = arith.constant 1 : i32
    %986 = arith.addi %985, %c1_i32_244 : i32
    %987 = arith.index_cast %986 : i32 to index
    %988 = memref.load %arg1[%987] : memref<64xf32, #tpu.memory_space<smem>>
    %c4_i32_245 = arith.constant 4 : i32
    %989 = arith.muli %980, %c4_i32_245 : i32
    %c2_i32_246 = arith.constant 2 : i32
    %990 = arith.addi %989, %c2_i32_246 : i32
    %991 = arith.index_cast %990 : i32 to index
    %992 = memref.load %arg1[%991] : memref<64xf32, #tpu.memory_space<smem>>
    %c4_i32_247 = arith.constant 4 : i32
    %993 = arith.muli %980, %c4_i32_247 : i32
    %c3_i32_248 = arith.constant 3 : i32
    %994 = arith.addi %993, %c3_i32_248 : i32
    %995 = arith.index_cast %994 : i32 to index
    %996 = memref.load %arg1[%995] : memref<64xf32, #tpu.memory_space<smem>>
    %997 = vector.broadcast %984 : f32 to vector<2x16x256xf32>
    %998 = arith.mulf %11, %997 : vector<2x16x256xf32>
    %999 = vector.broadcast %988 : f32 to vector<2x16x256xf32>
    %1000 = arith.mulf %22, %999 : vector<2x16x256xf32>
    %1001 = arith.addf %998, %1000 : vector<2x16x256xf32>
    %1002 = vector.broadcast %992 : f32 to vector<2x16x256xf32>
    %1003 = arith.mulf %33, %1002 : vector<2x16x256xf32>
    %1004 = arith.addf %1001, %1003 : vector<2x16x256xf32>
    %1005 = vector.broadcast %996 : f32 to vector<2x16x256xf32>
    %1006 = arith.mulf %44, %1005 : vector<2x16x256xf32>
    %1007 = arith.addf %1004, %1006 : vector<2x16x256xf32>
    %1008 = arith.mulf %984, %984 : f32
    %1009 = vector.broadcast %1008 : f32 to vector<1x1x1xf32>
    %1010 = arith.mulf %52, %1009 : vector<1x1x1xf32>
    %1011 = arith.mulf %988, %988 : f32
    %1012 = vector.broadcast %1011 : f32 to vector<1x1x1xf32>
    %1013 = arith.mulf %84, %1012 : vector<1x1x1xf32>
    %1014 = arith.addf %1010, %1013 : vector<1x1x1xf32>
    %1015 = arith.mulf %992, %992 : f32
    %1016 = vector.broadcast %1015 : f32 to vector<1x1x1xf32>
    %1017 = arith.mulf %108, %1016 : vector<1x1x1xf32>
    %1018 = arith.addf %1014, %1017 : vector<1x1x1xf32>
    %1019 = arith.mulf %996, %996 : f32
    %1020 = vector.broadcast %1019 : f32 to vector<1x1x1xf32>
    %1021 = arith.mulf %124, %1020 : vector<1x1x1xf32>
    %1022 = arith.addf %1018, %1021 : vector<1x1x1xf32>
    %cst_249 = arith.constant 2.000000e+00 : f32
    %1023 = arith.mulf %cst_249, %984 : f32
    %1024 = arith.mulf %1023, %988 : f32
    %1025 = vector.broadcast %1024 : f32 to vector<1x1x1xf32>
    %1026 = arith.mulf %60, %1025 : vector<1x1x1xf32>
    %1027 = arith.addf %1022, %1026 : vector<1x1x1xf32>
    %cst_250 = arith.constant 2.000000e+00 : f32
    %1028 = arith.mulf %cst_250, %984 : f32
    %1029 = arith.mulf %1028, %992 : f32
    %1030 = vector.broadcast %1029 : f32 to vector<1x1x1xf32>
    %1031 = arith.mulf %68, %1030 : vector<1x1x1xf32>
    %1032 = arith.addf %1027, %1031 : vector<1x1x1xf32>
    %cst_251 = arith.constant 2.000000e+00 : f32
    %1033 = arith.mulf %cst_251, %984 : f32
    %1034 = arith.mulf %1033, %996 : f32
    %1035 = vector.broadcast %1034 : f32 to vector<1x1x1xf32>
    %1036 = arith.mulf %76, %1035 : vector<1x1x1xf32>
    %1037 = arith.addf %1032, %1036 : vector<1x1x1xf32>
    %cst_252 = arith.constant 2.000000e+00 : f32
    %1038 = arith.mulf %cst_252, %988 : f32
    %1039 = arith.mulf %1038, %992 : f32
    %1040 = vector.broadcast %1039 : f32 to vector<1x1x1xf32>
    %1041 = arith.mulf %92, %1040 : vector<1x1x1xf32>
    %1042 = arith.addf %1037, %1041 : vector<1x1x1xf32>
    %cst_253 = arith.constant 2.000000e+00 : f32
    %1043 = arith.mulf %cst_253, %988 : f32
    %1044 = arith.mulf %1043, %996 : f32
    %1045 = vector.broadcast %1044 : f32 to vector<1x1x1xf32>
    %1046 = arith.mulf %100, %1045 : vector<1x1x1xf32>
    %1047 = arith.addf %1042, %1046 : vector<1x1x1xf32>
    %cst_254 = arith.constant 2.000000e+00 : f32
    %1048 = arith.mulf %cst_254, %992 : f32
    %1049 = arith.mulf %1048, %996 : f32
    %1050 = vector.broadcast %1049 : f32 to vector<1x1x1xf32>
    %1051 = arith.mulf %116, %1050 : vector<1x1x1xf32>
    %1052 = arith.addf %1047, %1051 : vector<1x1x1xf32>
    %1053 = arith.index_cast %980 : i32 to index
    %1054 = memref.load %arg2[%1053] : memref<16xf32, #tpu.memory_space<smem>>
    %cst_255 = arith.constant 9.99999974E-6 : f32
    %1055 = vector.broadcast %cst_255 : f32 to vector<1x1x1xf32>
    %1056 = arith.addf %1052, %1055 : vector<1x1x1xf32>
    %1057 = math.rsqrt %1056 : vector<1x1x1xf32>
    %1058 = vector.broadcast %1054 : f32 to vector<1x1x1xf32>
    %1059 = arith.mulf %1058, %1057 : vector<1x1x1xf32>
    %1060 = vector.broadcast %1059 : vector<1x1x1xf32> to vector<2x16x256xf32>
    %1061 = arith.mulf %1007, %1060 : vector<2x16x256xf32>
    %1062 = arith.index_cast %980 : i32 to index
    %1063 = memref.load %arg3[%1062] : memref<16xf32, #tpu.memory_space<smem>>
    %1064 = vector.broadcast %1063 : f32 to vector<2x16x256xf32>
    %1065 = arith.addf %1061, %1064 : vector<2x16x256xf32>
    %1066 = vector.extract_strided_slice %1065 {offsets = [0, 0, 0], sizes = [2, 16, 128], strides = [1, 1, 1]} : vector<2x16x256xf32> to vector<2x16x128xf32>
    %c0_256 = arith.constant 0 : index
    %c9 = arith.constant 9 : index
    %c0_257 = arith.constant 0 : index
    %c0_258 = arith.constant 0 : index
    %1067 = vector.load %arg5[%c0_256, %c9, %c0_257, %c0_258] : memref<2x16x16x128xf32, #tpu.memory_space<vmem>>, vector<2x1x16x128xf32>
    %1068 = vector.shape_cast %1067 : vector<2x1x16x128xf32> to vector<2x16x128xf32>
    %1069 = vector.extract_strided_slice %1065 {offsets = [0, 0, 128], sizes = [2, 16, 128], strides = [1, 1, 1]} : vector<2x16x256xf32> to vector<2x16x128xf32>
    %1070 = arith.mulf %1068, %1069 : vector<2x16x128xf32>
    %1071 = arith.addf %1066, %1070 : vector<2x16x128xf32>
    %c0_259 = arith.constant 0 : index
    %c9_260 = arith.constant 9 : index
    %c0_261 = arith.constant 0 : index
    %c0_262 = arith.constant 0 : index
    %1072 = vector.load %arg6[%c0_259, %c9_260, %c0_261, %c0_262] : memref<2x16x16x128xf32, #tpu.memory_space<vmem>>, vector<2x1x16x128xf32>
    %1073 = vector.shape_cast %1072 : vector<2x1x16x128xf32> to vector<2x16x128xf32>
    %1074 = vector.shape_cast %1071 : vector<2x16x128xf32> to vector<2x1x16x128xf32>
    tpu.vector_store %arg6[%c0_259, %c9_260, %c0_261, %c0_262], %1074 {strides = array<i32>} : memref<2x16x16x128xf32, #tpu.memory_space<vmem>>, vector<2x1x16x128xf32>,
    %c10_i32 = arith.constant 10 : i32
    %1075 = arith.addi %0, %c10_i32 : i32
    %c4_i32_263 = arith.constant 4 : i32
    %1076 = arith.muli %1075, %c4_i32_263 : i32
    %c0_i32_264 = arith.constant 0 : i32
    %1077 = arith.addi %1076, %c0_i32_264 : i32
    %1078 = arith.index_cast %1077 : i32 to index
    %1079 = memref.load %arg1[%1078] : memref<64xf32, #tpu.memory_space<smem>>
    %c4_i32_265 = arith.constant 4 : i32
    %1080 = arith.muli %1075, %c4_i32_265 : i32
    %c1_i32_266 = arith.constant 1 : i32
    %1081 = arith.addi %1080, %c1_i32_266 : i32
    %1082 = arith.index_cast %1081 : i32 to index
    %1083 = memref.load %arg1[%1082] : memref<64xf32, #tpu.memory_space<smem>>
    %c4_i32_267 = arith.constant 4 : i32
    %1084 = arith.muli %1075, %c4_i32_267 : i32
    %c2_i32_268 = arith.constant 2 : i32
    %1085 = arith.addi %1084, %c2_i32_268 : i32
    %1086 = arith.index_cast %1085 : i32 to index
    %1087 = memref.load %arg1[%1086] : memref<64xf32, #tpu.memory_space<smem>>
    %c4_i32_269 = arith.constant 4 : i32
    %1088 = arith.muli %1075, %c4_i32_269 : i32
    %c3_i32_270 = arith.constant 3 : i32
    %1089 = arith.addi %1088, %c3_i32_270 : i32
    %1090 = arith.index_cast %1089 : i32 to index
    %1091 = memref.load %arg1[%1090] : memref<64xf32, #tpu.memory_space<smem>>
    %1092 = vector.broadcast %1079 : f32 to vector<2x16x256xf32>
    %1093 = arith.mulf %11, %1092 : vector<2x16x256xf32>
    %1094 = vector.broadcast %1083 : f32 to vector<2x16x256xf32>
    %1095 = arith.mulf %22, %1094 : vector<2x16x256xf32>
    %1096 = arith.addf %1093, %1095 : vector<2x16x256xf32>
    %1097 = vector.broadcast %1087 : f32 to vector<2x16x256xf32>
    %1098 = arith.mulf %33, %1097 : vector<2x16x256xf32>
    %1099 = arith.addf %1096, %1098 : vector<2x16x256xf32>
    %1100 = vector.broadcast %1091 : f32 to vector<2x16x256xf32>
    %1101 = arith.mulf %44, %1100 : vector<2x16x256xf32>
    %1102 = arith.addf %1099, %1101 : vector<2x16x256xf32>
    %1103 = arith.mulf %1079, %1079 : f32
    %1104 = vector.broadcast %1103 : f32 to vector<1x1x1xf32>
    %1105 = arith.mulf %52, %1104 : vector<1x1x1xf32>
    %1106 = arith.mulf %1083, %1083 : f32
    %1107 = vector.broadcast %1106 : f32 to vector<1x1x1xf32>
    %1108 = arith.mulf %84, %1107 : vector<1x1x1xf32>
    %1109 = arith.addf %1105, %1108 : vector<1x1x1xf32>
    %1110 = arith.mulf %1087, %1087 : f32
    %1111 = vector.broadcast %1110 : f32 to vector<1x1x1xf32>
    %1112 = arith.mulf %108, %1111 : vector<1x1x1xf32>
    %1113 = arith.addf %1109, %1112 : vector<1x1x1xf32>
    %1114 = arith.mulf %1091, %1091 : f32
    %1115 = vector.broadcast %1114 : f32 to vector<1x1x1xf32>
    %1116 = arith.mulf %124, %1115 : vector<1x1x1xf32>
    %1117 = arith.addf %1113, %1116 : vector<1x1x1xf32>
    %cst_271 = arith.constant 2.000000e+00 : f32
    %1118 = arith.mulf %cst_271, %1079 : f32
    %1119 = arith.mulf %1118, %1083 : f32
    %1120 = vector.broadcast %1119 : f32 to vector<1x1x1xf32>
    %1121 = arith.mulf %60, %1120 : vector<1x1x1xf32>
    %1122 = arith.addf %1117, %1121 : vector<1x1x1xf32>
    %cst_272 = arith.constant 2.000000e+00 : f32
    %1123 = arith.mulf %cst_272, %1079 : f32
    %1124 = arith.mulf %1123, %1087 : f32
    %1125 = vector.broadcast %1124 : f32 to vector<1x1x1xf32>
    %1126 = arith.mulf %68, %1125 : vector<1x1x1xf32>
    %1127 = arith.addf %1122, %1126 : vector<1x1x1xf32>
    %cst_273 = arith.constant 2.000000e+00 : f32
    %1128 = arith.mulf %cst_273, %1079 : f32
    %1129 = arith.mulf %1128, %1091 : f32
    %1130 = vector.broadcast %1129 : f32 to vector<1x1x1xf32>
    %1131 = arith.mulf %76, %1130 : vector<1x1x1xf32>
    %1132 = arith.addf %1127, %1131 : vector<1x1x1xf32>
    %cst_274 = arith.constant 2.000000e+00 : f32
    %1133 = arith.mulf %cst_274, %1083 : f32
    %1134 = arith.mulf %1133, %1087 : f32
    %1135 = vector.broadcast %1134 : f32 to vector<1x1x1xf32>
    %1136 = arith.mulf %92, %1135 : vector<1x1x1xf32>
    %1137 = arith.addf %1132, %1136 : vector<1x1x1xf32>
    %cst_275 = arith.constant 2.000000e+00 : f32
    %1138 = arith.mulf %cst_275, %1083 : f32
    %1139 = arith.mulf %1138, %1091 : f32
    %1140 = vector.broadcast %1139 : f32 to vector<1x1x1xf32>
    %1141 = arith.mulf %100, %1140 : vector<1x1x1xf32>
    %1142 = arith.addf %1137, %1141 : vector<1x1x1xf32>
    %cst_276 = arith.constant 2.000000e+00 : f32
    %1143 = arith.mulf %cst_276, %1087 : f32
    %1144 = arith.mulf %1143, %1091 : f32
    %1145 = vector.broadcast %1144 : f32 to vector<1x1x1xf32>
    %1146 = arith.mulf %116, %1145 : vector<1x1x1xf32>
    %1147 = arith.addf %1142, %1146 : vector<1x1x1xf32>
    %1148 = arith.index_cast %1075 : i32 to index
    %1149 = memref.load %arg2[%1148] : memref<16xf32, #tpu.memory_space<smem>>
    %cst_277 = arith.constant 9.99999974E-6 : f32
    %1150 = vector.broadcast %cst_277 : f32 to vector<1x1x1xf32>
    %1151 = arith.addf %1147, %1150 : vector<1x1x1xf32>
    %1152 = math.rsqrt %1151 : vector<1x1x1xf32>
    %1153 = vector.broadcast %1149 : f32 to vector<1x1x1xf32>
    %1154 = arith.mulf %1153, %1152 : vector<1x1x1xf32>
    %1155 = vector.broadcast %1154 : vector<1x1x1xf32> to vector<2x16x256xf32>
    %1156 = arith.mulf %1102, %1155 : vector<2x16x256xf32>
    %1157 = arith.index_cast %1075 : i32 to index
    %1158 = memref.load %arg3[%1157] : memref<16xf32, #tpu.memory_space<smem>>
    %1159 = vector.broadcast %1158 : f32 to vector<2x16x256xf32>
    %1160 = arith.addf %1156, %1159 : vector<2x16x256xf32>
    %1161 = vector.extract_strided_slice %1160 {offsets = [0, 0, 0], sizes = [2, 16, 128], strides = [1, 1, 1]} : vector<2x16x256xf32> to vector<2x16x128xf32>
    %c0_278 = arith.constant 0 : index
    %c10 = arith.constant 10 : index
    %c0_279 = arith.constant 0 : index
    %c0_280 = arith.constant 0 : index
    %1162 = vector.load %arg5[%c0_278, %c10, %c0_279, %c0_280] : memref<2x16x16x128xf32, #tpu.memory_space<vmem>>, vector<2x1x16x128xf32>
    %1163 = vector.shape_cast %1162 : vector<2x1x16x128xf32> to vector<2x16x128xf32>
    %1164 = vector.extract_strided_slice %1160 {offsets = [0, 0, 128], sizes = [2, 16, 128], strides = [1, 1, 1]} : vector<2x16x256xf32> to vector<2x16x128xf32>
    %1165 = arith.mulf %1163, %1164 : vector<2x16x128xf32>
    %1166 = arith.addf %1161, %1165 : vector<2x16x128xf32>
    %c0_281 = arith.constant 0 : index
    %c10_282 = arith.constant 10 : index
    %c0_283 = arith.constant 0 : index
    %c0_284 = arith.constant 0 : index
    %1167 = vector.load %arg6[%c0_281, %c10_282, %c0_283, %c0_284] : memref<2x16x16x128xf32, #tpu.memory_space<vmem>>, vector<2x1x16x128xf32>
    %1168 = vector.shape_cast %1167 : vector<2x1x16x128xf32> to vector<2x16x128xf32>
    %1169 = vector.shape_cast %1166 : vector<2x16x128xf32> to vector<2x1x16x128xf32>
    tpu.vector_store %arg6[%c0_281, %c10_282, %c0_283, %c0_284], %1169 {strides = array<i32>} : memref<2x16x16x128xf32, #tpu.memory_space<vmem>>, vector<2x1x16x128xf32>,
    %c11_i32 = arith.constant 11 : i32
    %1170 = arith.addi %0, %c11_i32 : i32
    %c4_i32_285 = arith.constant 4 : i32
    %1171 = arith.muli %1170, %c4_i32_285 : i32
    %c0_i32_286 = arith.constant 0 : i32
    %1172 = arith.addi %1171, %c0_i32_286 : i32
    %1173 = arith.index_cast %1172 : i32 to index
    %1174 = memref.load %arg1[%1173] : memref<64xf32, #tpu.memory_space<smem>>
    %c4_i32_287 = arith.constant 4 : i32
    %1175 = arith.muli %1170, %c4_i32_287 : i32
    %c1_i32_288 = arith.constant 1 : i32
    %1176 = arith.addi %1175, %c1_i32_288 : i32
    %1177 = arith.index_cast %1176 : i32 to index
    %1178 = memref.load %arg1[%1177] : memref<64xf32, #tpu.memory_space<smem>>
    %c4_i32_289 = arith.constant 4 : i32
    %1179 = arith.muli %1170, %c4_i32_289 : i32
    %c2_i32_290 = arith.constant 2 : i32
    %1180 = arith.addi %1179, %c2_i32_290 : i32
    %1181 = arith.index_cast %1180 : i32 to index
    %1182 = memref.load %arg1[%1181] : memref<64xf32, #tpu.memory_space<smem>>
    %c4_i32_291 = arith.constant 4 : i32
    %1183 = arith.muli %1170, %c4_i32_291 : i32
    %c3_i32_292 = arith.constant 3 : i32
    %1184 = arith.addi %1183, %c3_i32_292 : i32
    %1185 = arith.index_cast %1184 : i32 to index
    %1186 = memref.load %arg1[%1185] : memref<64xf32, #tpu.memory_space<smem>>
    %1187 = vector.broadcast %1174 : f32 to vector<2x16x256xf32>
    %1188 = arith.mulf %11, %1187 : vector<2x16x256xf32>
    %1189 = vector.broadcast %1178 : f32 to vector<2x16x256xf32>
    %1190 = arith.mulf %22, %1189 : vector<2x16x256xf32>
    %1191 = arith.addf %1188, %1190 : vector<2x16x256xf32>
    %1192 = vector.broadcast %1182 : f32 to vector<2x16x256xf32>
    %1193 = arith.mulf %33, %1192 : vector<2x16x256xf32>
    %1194 = arith.addf %1191, %1193 : vector<2x16x256xf32>
    %1195 = vector.broadcast %1186 : f32 to vector<2x16x256xf32>
    %1196 = arith.mulf %44, %1195 : vector<2x16x256xf32>
    %1197 = arith.addf %1194, %1196 : vector<2x16x256xf32>
    %1198 = arith.mulf %1174, %1174 : f32
    %1199 = vector.broadcast %1198 : f32 to vector<1x1x1xf32>
    %1200 = arith.mulf %52, %1199 : vector<1x1x1xf32>
    %1201 = arith.mulf %1178, %1178 : f32
    %1202 = vector.broadcast %1201 : f32 to vector<1x1x1xf32>
    %1203 = arith.mulf %84, %1202 : vector<1x1x1xf32>
    %1204 = arith.addf %1200, %1203 : vector<1x1x1xf32>
    %1205 = arith.mulf %1182, %1182 : f32
    %1206 = vector.broadcast %1205 : f32 to vector<1x1x1xf32>
    %1207 = arith.mulf %108, %1206 : vector<1x1x1xf32>
    %1208 = arith.addf %1204, %1207 : vector<1x1x1xf32>
    %1209 = arith.mulf %1186, %1186 : f32
    %1210 = vector.broadcast %1209 : f32 to vector<1x1x1xf32>
    %1211 = arith.mulf %124, %1210 : vector<1x1x1xf32>
    %1212 = arith.addf %1208, %1211 : vector<1x1x1xf32>
    %cst_293 = arith.constant 2.000000e+00 : f32
    %1213 = arith.mulf %cst_293, %1174 : f32
    %1214 = arith.mulf %1213, %1178 : f32
    %1215 = vector.broadcast %1214 : f32 to vector<1x1x1xf32>
    %1216 = arith.mulf %60, %1215 : vector<1x1x1xf32>
    %1217 = arith.addf %1212, %1216 : vector<1x1x1xf32>
    %cst_294 = arith.constant 2.000000e+00 : f32
    %1218 = arith.mulf %cst_294, %1174 : f32
    %1219 = arith.mulf %1218, %1182 : f32
    %1220 = vector.broadcast %1219 : f32 to vector<1x1x1xf32>
    %1221 = arith.mulf %68, %1220 : vector<1x1x1xf32>
    %1222 = arith.addf %1217, %1221 : vector<1x1x1xf32>
    %cst_295 = arith.constant 2.000000e+00 : f32
    %1223 = arith.mulf %cst_295, %1174 : f32
    %1224 = arith.mulf %1223, %1186 : f32
    %1225 = vector.broadcast %1224 : f32 to vector<1x1x1xf32>
    %1226 = arith.mulf %76, %1225 : vector<1x1x1xf32>
    %1227 = arith.addf %1222, %1226 : vector<1x1x1xf32>
    %cst_296 = arith.constant 2.000000e+00 : f32
    %1228 = arith.mulf %cst_296, %1178 : f32
    %1229 = arith.mulf %1228, %1182 : f32
    %1230 = vector.broadcast %1229 : f32 to vector<1x1x1xf32>
    %1231 = arith.mulf %92, %1230 : vector<1x1x1xf32>
    %1232 = arith.addf %1227, %1231 : vector<1x1x1xf32>
    %cst_297 = arith.constant 2.000000e+00 : f32
    %1233 = arith.mulf %cst_297, %1178 : f32
    %1234 = arith.mulf %1233, %1186 : f32
    %1235 = vector.broadcast %1234 : f32 to vector<1x1x1xf32>
    %1236 = arith.mulf %100, %1235 : vector<1x1x1xf32>
    %1237 = arith.addf %1232, %1236 : vector<1x1x1xf32>
    %cst_298 = arith.constant 2.000000e+00 : f32
    %1238 = arith.mulf %cst_298, %1182 : f32
    %1239 = arith.mulf %1238, %1186 : f32
    %1240 = vector.broadcast %1239 : f32 to vector<1x1x1xf32>
    %1241 = arith.mulf %116, %1240 : vector<1x1x1xf32>
    %1242 = arith.addf %1237, %1241 : vector<1x1x1xf32>
    %1243 = arith.index_cast %1170 : i32 to index
    %1244 = memref.load %arg2[%1243] : memref<16xf32, #tpu.memory_space<smem>>
    %cst_299 = arith.constant 9.99999974E-6 : f32
    %1245 = vector.broadcast %cst_299 : f32 to vector<1x1x1xf32>
    %1246 = arith.addf %1242, %1245 : vector<1x1x1xf32>
    %1247 = math.rsqrt %1246 : vector<1x1x1xf32>
    %1248 = vector.broadcast %1244 : f32 to vector<1x1x1xf32>
    %1249 = arith.mulf %1248, %1247 : vector<1x1x1xf32>
    %1250 = vector.broadcast %1249 : vector<1x1x1xf32> to vector<2x16x256xf32>
    %1251 = arith.mulf %1197, %1250 : vector<2x16x256xf32>
    %1252 = arith.index_cast %1170 : i32 to index
    %1253 = memref.load %arg3[%1252] : memref<16xf32, #tpu.memory_space<smem>>
    %1254 = vector.broadcast %1253 : f32 to vector<2x16x256xf32>
    %1255 = arith.addf %1251, %1254 : vector<2x16x256xf32>
    %1256 = vector.extract_strided_slice %1255 {offsets = [0, 0, 0], sizes = [2, 16, 128], strides = [1, 1, 1]} : vector<2x16x256xf32> to vector<2x16x128xf32>
    %c0_300 = arith.constant 0 : index
    %c11 = arith.constant 11 : index
    %c0_301 = arith.constant 0 : index
    %c0_302 = arith.constant 0 : index
    %1257 = vector.load %arg5[%c0_300, %c11, %c0_301, %c0_302] : memref<2x16x16x128xf32, #tpu.memory_space<vmem>>, vector<2x1x16x128xf32>
    %1258 = vector.shape_cast %1257 : vector<2x1x16x128xf32> to vector<2x16x128xf32>
    %1259 = vector.extract_strided_slice %1255 {offsets = [0, 0, 128], sizes = [2, 16, 128], strides = [1, 1, 1]} : vector<2x16x256xf32> to vector<2x16x128xf32>
    %1260 = arith.mulf %1258, %1259 : vector<2x16x128xf32>
    %1261 = arith.addf %1256, %1260 : vector<2x16x128xf32>
    %c0_303 = arith.constant 0 : index
    %c11_304 = arith.constant 11 : index
    %c0_305 = arith.constant 0 : index
    %c0_306 = arith.constant 0 : index
    %1262 = vector.load %arg6[%c0_303, %c11_304, %c0_305, %c0_306] : memref<2x16x16x128xf32, #tpu.memory_space<vmem>>, vector<2x1x16x128xf32>
    %1263 = vector.shape_cast %1262 : vector<2x1x16x128xf32> to vector<2x16x128xf32>
    %1264 = vector.shape_cast %1261 : vector<2x16x128xf32> to vector<2x1x16x128xf32>
    tpu.vector_store %arg6[%c0_303, %c11_304, %c0_305, %c0_306], %1264 {strides = array<i32>} : memref<2x16x16x128xf32, #tpu.memory_space<vmem>>, vector<2x1x16x128xf32>,
    %c12_i32 = arith.constant 12 : i32
    %1265 = arith.addi %0, %c12_i32 : i32
    %c4_i32_307 = arith.constant 4 : i32
    %1266 = arith.muli %1265, %c4_i32_307 : i32
    %c0_i32_308 = arith.constant 0 : i32
    %1267 = arith.addi %1266, %c0_i32_308 : i32
    %1268 = arith.index_cast %1267 : i32 to index
    %1269 = memref.load %arg1[%1268] : memref<64xf32, #tpu.memory_space<smem>>
    %c4_i32_309 = arith.constant 4 : i32
    %1270 = arith.muli %1265, %c4_i32_309 : i32
    %c1_i32_310 = arith.constant 1 : i32
    %1271 = arith.addi %1270, %c1_i32_310 : i32
    %1272 = arith.index_cast %1271 : i32 to index
    %1273 = memref.load %arg1[%1272] : memref<64xf32, #tpu.memory_space<smem>>
    %c4_i32_311 = arith.constant 4 : i32
    %1274 = arith.muli %1265, %c4_i32_311 : i32
    %c2_i32_312 = arith.constant 2 : i32
    %1275 = arith.addi %1274, %c2_i32_312 : i32
    %1276 = arith.index_cast %1275 : i32 to index
    %1277 = memref.load %arg1[%1276] : memref<64xf32, #tpu.memory_space<smem>>
    %c4_i32_313 = arith.constant 4 : i32
    %1278 = arith.muli %1265, %c4_i32_313 : i32
    %c3_i32_314 = arith.constant 3 : i32
    %1279 = arith.addi %1278, %c3_i32_314 : i32
    %1280 = arith.index_cast %1279 : i32 to index
    %1281 = memref.load %arg1[%1280] : memref<64xf32, #tpu.memory_space<smem>>
    %1282 = vector.broadcast %1269 : f32 to vector<2x16x256xf32>
    %1283 = arith.mulf %11, %1282 : vector<2x16x256xf32>
    %1284 = vector.broadcast %1273 : f32 to vector<2x16x256xf32>
    %1285 = arith.mulf %22, %1284 : vector<2x16x256xf32>
    %1286 = arith.addf %1283, %1285 : vector<2x16x256xf32>
    %1287 = vector.broadcast %1277 : f32 to vector<2x16x256xf32>
    %1288 = arith.mulf %33, %1287 : vector<2x16x256xf32>
    %1289 = arith.addf %1286, %1288 : vector<2x16x256xf32>
    %1290 = vector.broadcast %1281 : f32 to vector<2x16x256xf32>
    %1291 = arith.mulf %44, %1290 : vector<2x16x256xf32>
    %1292 = arith.addf %1289, %1291 : vector<2x16x256xf32>
    %1293 = arith.mulf %1269, %1269 : f32
    %1294 = vector.broadcast %1293 : f32 to vector<1x1x1xf32>
    %1295 = arith.mulf %52, %1294 : vector<1x1x1xf32>
    %1296 = arith.mulf %1273, %1273 : f32
    %1297 = vector.broadcast %1296 : f32 to vector<1x1x1xf32>
    %1298 = arith.mulf %84, %1297 : vector<1x1x1xf32>
    %1299 = arith.addf %1295, %1298 : vector<1x1x1xf32>
    %1300 = arith.mulf %1277, %1277 : f32
    %1301 = vector.broadcast %1300 : f32 to vector<1x1x1xf32>
    %1302 = arith.mulf %108, %1301 : vector<1x1x1xf32>
    %1303 = arith.addf %1299, %1302 : vector<1x1x1xf32>
    %1304 = arith.mulf %1281, %1281 : f32
    %1305 = vector.broadcast %1304 : f32 to vector<1x1x1xf32>
    %1306 = arith.mulf %124, %1305 : vector<1x1x1xf32>
    %1307 = arith.addf %1303, %1306 : vector<1x1x1xf32>
    %cst_315 = arith.constant 2.000000e+00 : f32
    %1308 = arith.mulf %cst_315, %1269 : f32
    %1309 = arith.mulf %1308, %1273 : f32
    %1310 = vector.broadcast %1309 : f32 to vector<1x1x1xf32>
    %1311 = arith.mulf %60, %1310 : vector<1x1x1xf32>
    %1312 = arith.addf %1307, %1311 : vector<1x1x1xf32>
    %cst_316 = arith.constant 2.000000e+00 : f32
    %1313 = arith.mulf %cst_316, %1269 : f32
    %1314 = arith.mulf %1313, %1277 : f32
    %1315 = vector.broadcast %1314 : f32 to vector<1x1x1xf32>
    %1316 = arith.mulf %68, %1315 : vector<1x1x1xf32>
    %1317 = arith.addf %1312, %1316 : vector<1x1x1xf32>
    %cst_317 = arith.constant 2.000000e+00 : f32
    %1318 = arith.mulf %cst_317, %1269 : f32
    %1319 = arith.mulf %1318, %1281 : f32
    %1320 = vector.broadcast %1319 : f32 to vector<1x1x1xf32>
    %1321 = arith.mulf %76, %1320 : vector<1x1x1xf32>
    %1322 = arith.addf %1317, %1321 : vector<1x1x1xf32>
    %cst_318 = arith.constant 2.000000e+00 : f32
    %1323 = arith.mulf %cst_318, %1273 : f32
    %1324 = arith.mulf %1323, %1277 : f32
    %1325 = vector.broadcast %1324 : f32 to vector<1x1x1xf32>
    %1326 = arith.mulf %92, %1325 : vector<1x1x1xf32>
    %1327 = arith.addf %1322, %1326 : vector<1x1x1xf32>
    %cst_319 = arith.constant 2.000000e+00 : f32
    %1328 = arith.mulf %cst_319, %1273 : f32
    %1329 = arith.mulf %1328, %1281 : f32
    %1330 = vector.broadcast %1329 : f32 to vector<1x1x1xf32>
    %1331 = arith.mulf %100, %1330 : vector<1x1x1xf32>
    %1332 = arith.addf %1327, %1331 : vector<1x1x1xf32>
    %cst_320 = arith.constant 2.000000e+00 : f32
    %1333 = arith.mulf %cst_320, %1277 : f32
    %1334 = arith.mulf %1333, %1281 : f32
    %1335 = vector.broadcast %1334 : f32 to vector<1x1x1xf32>
    %1336 = arith.mulf %116, %1335 : vector<1x1x1xf32>
    %1337 = arith.addf %1332, %1336 : vector<1x1x1xf32>
    %1338 = arith.index_cast %1265 : i32 to index
    %1339 = memref.load %arg2[%1338] : memref<16xf32, #tpu.memory_space<smem>>
    %cst_321 = arith.constant 9.99999974E-6 : f32
    %1340 = vector.broadcast %cst_321 : f32 to vector<1x1x1xf32>
    %1341 = arith.addf %1337, %1340 : vector<1x1x1xf32>
    %1342 = math.rsqrt %1341 : vector<1x1x1xf32>
    %1343 = vector.broadcast %1339 : f32 to vector<1x1x1xf32>
    %1344 = arith.mulf %1343, %1342 : vector<1x1x1xf32>
    %1345 = vector.broadcast %1344 : vector<1x1x1xf32> to vector<2x16x256xf32>
    %1346 = arith.mulf %1292, %1345 : vector<2x16x256xf32>
    %1347 = arith.index_cast %1265 : i32 to index
    %1348 = memref.load %arg3[%1347] : memref<16xf32, #tpu.memory_space<smem>>
    %1349 = vector.broadcast %1348 : f32 to vector<2x16x256xf32>
    %1350 = arith.addf %1346, %1349 : vector<2x16x256xf32>
    %1351 = vector.extract_strided_slice %1350 {offsets = [0, 0, 0], sizes = [2, 16, 128], strides = [1, 1, 1]} : vector<2x16x256xf32> to vector<2x16x128xf32>
    %c0_322 = arith.constant 0 : index
    %c12 = arith.constant 12 : index
    %c0_323 = arith.constant 0 : index
    %c0_324 = arith.constant 0 : index
    %1352 = vector.load %arg5[%c0_322, %c12, %c0_323, %c0_324] : memref<2x16x16x128xf32, #tpu.memory_space<vmem>>, vector<2x1x16x128xf32>
    %1353 = vector.shape_cast %1352 : vector<2x1x16x128xf32> to vector<2x16x128xf32>
    %1354 = vector.extract_strided_slice %1350 {offsets = [0, 0, 128], sizes = [2, 16, 128], strides = [1, 1, 1]} : vector<2x16x256xf32> to vector<2x16x128xf32>
    %1355 = arith.mulf %1353, %1354 : vector<2x16x128xf32>
    %1356 = arith.addf %1351, %1355 : vector<2x16x128xf32>
    %c0_325 = arith.constant 0 : index
    %c12_326 = arith.constant 12 : index
    %c0_327 = arith.constant 0 : index
    %c0_328 = arith.constant 0 : index
    %1357 = vector.load %arg6[%c0_325, %c12_326, %c0_327, %c0_328] : memref<2x16x16x128xf32, #tpu.memory_space<vmem>>, vector<2x1x16x128xf32>
    %1358 = vector.shape_cast %1357 : vector<2x1x16x128xf32> to vector<2x16x128xf32>
    %1359 = vector.shape_cast %1356 : vector<2x16x128xf32> to vector<2x1x16x128xf32>
    tpu.vector_store %arg6[%c0_325, %c12_326, %c0_327, %c0_328], %1359 {strides = array<i32>} : memref<2x16x16x128xf32, #tpu.memory_space<vmem>>, vector<2x1x16x128xf32>,
    %c13_i32 = arith.constant 13 : i32
    %1360 = arith.addi %0, %c13_i32 : i32
    %c4_i32_329 = arith.constant 4 : i32
    %1361 = arith.muli %1360, %c4_i32_329 : i32
    %c0_i32_330 = arith.constant 0 : i32
    %1362 = arith.addi %1361, %c0_i32_330 : i32
    %1363 = arith.index_cast %1362 : i32 to index
    %1364 = memref.load %arg1[%1363] : memref<64xf32, #tpu.memory_space<smem>>
    %c4_i32_331 = arith.constant 4 : i32
    %1365 = arith.muli %1360, %c4_i32_331 : i32
    %c1_i32_332 = arith.constant 1 : i32
    %1366 = arith.addi %1365, %c1_i32_332 : i32
    %1367 = arith.index_cast %1366 : i32 to index
    %1368 = memref.load %arg1[%1367] : memref<64xf32, #tpu.memory_space<smem>>
    %c4_i32_333 = arith.constant 4 : i32
    %1369 = arith.muli %1360, %c4_i32_333 : i32
    %c2_i32_334 = arith.constant 2 : i32
    %1370 = arith.addi %1369, %c2_i32_334 : i32
    %1371 = arith.index_cast %1370 : i32 to index
    %1372 = memref.load %arg1[%1371] : memref<64xf32, #tpu.memory_space<smem>>
    %c4_i32_335 = arith.constant 4 : i32
    %1373 = arith.muli %1360, %c4_i32_335 : i32
    %c3_i32_336 = arith.constant 3 : i32
    %1374 = arith.addi %1373, %c3_i32_336 : i32
    %1375 = arith.index_cast %1374 : i32 to index
    %1376 = memref.load %arg1[%1375] : memref<64xf32, #tpu.memory_space<smem>>
    %1377 = vector.broadcast %1364 : f32 to vector<2x16x256xf32>
    %1378 = arith.mulf %11, %1377 : vector<2x16x256xf32>
    %1379 = vector.broadcast %1368 : f32 to vector<2x16x256xf32>
    %1380 = arith.mulf %22, %1379 : vector<2x16x256xf32>
    %1381 = arith.addf %1378, %1380 : vector<2x16x256xf32>
    %1382 = vector.broadcast %1372 : f32 to vector<2x16x256xf32>
    %1383 = arith.mulf %33, %1382 : vector<2x16x256xf32>
    %1384 = arith.addf %1381, %1383 : vector<2x16x256xf32>
    %1385 = vector.broadcast %1376 : f32 to vector<2x16x256xf32>
    %1386 = arith.mulf %44, %1385 : vector<2x16x256xf32>
    %1387 = arith.addf %1384, %1386 : vector<2x16x256xf32>
    %1388 = arith.mulf %1364, %1364 : f32
    %1389 = vector.broadcast %1388 : f32 to vector<1x1x1xf32>
    %1390 = arith.mulf %52, %1389 : vector<1x1x1xf32>
    %1391 = arith.mulf %1368, %1368 : f32
    %1392 = vector.broadcast %1391 : f32 to vector<1x1x1xf32>
    %1393 = arith.mulf %84, %1392 : vector<1x1x1xf32>
    %1394 = arith.addf %1390, %1393 : vector<1x1x1xf32>
    %1395 = arith.mulf %1372, %1372 : f32
    %1396 = vector.broadcast %1395 : f32 to vector<1x1x1xf32>
    %1397 = arith.mulf %108, %1396 : vector<1x1x1xf32>
    %1398 = arith.addf %1394, %1397 : vector<1x1x1xf32>
    %1399 = arith.mulf %1376, %1376 : f32
    %1400 = vector.broadcast %1399 : f32 to vector<1x1x1xf32>
    %1401 = arith.mulf %124, %1400 : vector<1x1x1xf32>
    %1402 = arith.addf %1398, %1401 : vector<1x1x1xf32>
    %cst_337 = arith.constant 2.000000e+00 : f32
    %1403 = arith.mulf %cst_337, %1364 : f32
    %1404 = arith.mulf %1403, %1368 : f32
    %1405 = vector.broadcast %1404 : f32 to vector<1x1x1xf32>
    %1406 = arith.mulf %60, %1405 : vector<1x1x1xf32>
    %1407 = arith.addf %1402, %1406 : vector<1x1x1xf32>
    %cst_338 = arith.constant 2.000000e+00 : f32
    %1408 = arith.mulf %cst_338, %1364 : f32
    %1409 = arith.mulf %1408, %1372 : f32
    %1410 = vector.broadcast %1409 : f32 to vector<1x1x1xf32>
    %1411 = arith.mulf %68, %1410 : vector<1x1x1xf32>
    %1412 = arith.addf %1407, %1411 : vector<1x1x1xf32>
    %cst_339 = arith.constant 2.000000e+00 : f32
    %1413 = arith.mulf %cst_339, %1364 : f32
    %1414 = arith.mulf %1413, %1376 : f32
    %1415 = vector.broadcast %1414 : f32 to vector<1x1x1xf32>
    %1416 = arith.mulf %76, %1415 : vector<1x1x1xf32>
    %1417 = arith.addf %1412, %1416 : vector<1x1x1xf32>
    %cst_340 = arith.constant 2.000000e+00 : f32
    %1418 = arith.mulf %cst_340, %1368 : f32
    %1419 = arith.mulf %1418, %1372 : f32
    %1420 = vector.broadcast %1419 : f32 to vector<1x1x1xf32>
    %1421 = arith.mulf %92, %1420 : vector<1x1x1xf32>
    %1422 = arith.addf %1417, %1421 : vector<1x1x1xf32>
    %cst_341 = arith.constant 2.000000e+00 : f32
    %1423 = arith.mulf %cst_341, %1368 : f32
    %1424 = arith.mulf %1423, %1376 : f32
    %1425 = vector.broadcast %1424 : f32 to vector<1x1x1xf32>
    %1426 = arith.mulf %100, %1425 : vector<1x1x1xf32>
    %1427 = arith.addf %1422, %1426 : vector<1x1x1xf32>
    %cst_342 = arith.constant 2.000000e+00 : f32
    %1428 = arith.mulf %cst_342, %1372 : f32
    %1429 = arith.mulf %1428, %1376 : f32
    %1430 = vector.broadcast %1429 : f32 to vector<1x1x1xf32>
    %1431 = arith.mulf %116, %1430 : vector<1x1x1xf32>
    %1432 = arith.addf %1427, %1431 : vector<1x1x1xf32>
    %1433 = arith.index_cast %1360 : i32 to index
    %1434 = memref.load %arg2[%1433] : memref<16xf32, #tpu.memory_space<smem>>
    %cst_343 = arith.constant 9.99999974E-6 : f32
    %1435 = vector.broadcast %cst_343 : f32 to vector<1x1x1xf32>
    %1436 = arith.addf %1432, %1435 : vector<1x1x1xf32>
    %1437 = math.rsqrt %1436 : vector<1x1x1xf32>
    %1438 = vector.broadcast %1434 : f32 to vector<1x1x1xf32>
    %1439 = arith.mulf %1438, %1437 : vector<1x1x1xf32>
    %1440 = vector.broadcast %1439 : vector<1x1x1xf32> to vector<2x16x256xf32>
    %1441 = arith.mulf %1387, %1440 : vector<2x16x256xf32>
    %1442 = arith.index_cast %1360 : i32 to index
    %1443 = memref.load %arg3[%1442] : memref<16xf32, #tpu.memory_space<smem>>
    %1444 = vector.broadcast %1443 : f32 to vector<2x16x256xf32>
    %1445 = arith.addf %1441, %1444 : vector<2x16x256xf32>
    %1446 = vector.extract_strided_slice %1445 {offsets = [0, 0, 0], sizes = [2, 16, 128], strides = [1, 1, 1]} : vector<2x16x256xf32> to vector<2x16x128xf32>
    %c0_344 = arith.constant 0 : index
    %c13 = arith.constant 13 : index
    %c0_345 = arith.constant 0 : index
    %c0_346 = arith.constant 0 : index
    %1447 = vector.load %arg5[%c0_344, %c13, %c0_345, %c0_346] : memref<2x16x16x128xf32, #tpu.memory_space<vmem>>, vector<2x1x16x128xf32>
    %1448 = vector.shape_cast %1447 : vector<2x1x16x128xf32> to vector<2x16x128xf32>
    %1449 = vector.extract_strided_slice %1445 {offsets = [0, 0, 128], sizes = [2, 16, 128], strides = [1, 1, 1]} : vector<2x16x256xf32> to vector<2x16x128xf32>
    %1450 = arith.mulf %1448, %1449 : vector<2x16x128xf32>
    %1451 = arith.addf %1446, %1450 : vector<2x16x128xf32>
    %c0_347 = arith.constant 0 : index
    %c13_348 = arith.constant 13 : index
    %c0_349 = arith.constant 0 : index
    %c0_350 = arith.constant 0 : index
    %1452 = vector.load %arg6[%c0_347, %c13_348, %c0_349, %c0_350] : memref<2x16x16x128xf32, #tpu.memory_space<vmem>>, vector<2x1x16x128xf32>
    %1453 = vector.shape_cast %1452 : vector<2x1x16x128xf32> to vector<2x16x128xf32>
    %1454 = vector.shape_cast %1451 : vector<2x16x128xf32> to vector<2x1x16x128xf32>
    tpu.vector_store %arg6[%c0_347, %c13_348, %c0_349, %c0_350], %1454 {strides = array<i32>} : memref<2x16x16x128xf32, #tpu.memory_space<vmem>>, vector<2x1x16x128xf32>,
    %c14_i32 = arith.constant 14 : i32
    %1455 = arith.addi %0, %c14_i32 : i32
    %c4_i32_351 = arith.constant 4 : i32
    %1456 = arith.muli %1455, %c4_i32_351 : i32
    %c0_i32_352 = arith.constant 0 : i32
    %1457 = arith.addi %1456, %c0_i32_352 : i32
    %1458 = arith.index_cast %1457 : i32 to index
    %1459 = memref.load %arg1[%1458] : memref<64xf32, #tpu.memory_space<smem>>
    %c4_i32_353 = arith.constant 4 : i32
    %1460 = arith.muli %1455, %c4_i32_353 : i32
    %c1_i32_354 = arith.constant 1 : i32
    %1461 = arith.addi %1460, %c1_i32_354 : i32
    %1462 = arith.index_cast %1461 : i32 to index
    %1463 = memref.load %arg1[%1462] : memref<64xf32, #tpu.memory_space<smem>>
    %c4_i32_355 = arith.constant 4 : i32
    %1464 = arith.muli %1455, %c4_i32_355 : i32
    %c2_i32_356 = arith.constant 2 : i32
    %1465 = arith.addi %1464, %c2_i32_356 : i32
    %1466 = arith.index_cast %1465 : i32 to index
    %1467 = memref.load %arg1[%1466] : memref<64xf32, #tpu.memory_space<smem>>
    %c4_i32_357 = arith.constant 4 : i32
    %1468 = arith.muli %1455, %c4_i32_357 : i32
    %c3_i32_358 = arith.constant 3 : i32
    %1469 = arith.addi %1468, %c3_i32_358 : i32
    %1470 = arith.index_cast %1469 : i32 to index
    %1471 = memref.load %arg1[%1470] : memref<64xf32, #tpu.memory_space<smem>>
    %1472 = vector.broadcast %1459 : f32 to vector<2x16x256xf32>
    %1473 = arith.mulf %11, %1472 : vector<2x16x256xf32>
    %1474 = vector.broadcast %1463 : f32 to vector<2x16x256xf32>
    %1475 = arith.mulf %22, %1474 : vector<2x16x256xf32>
    %1476 = arith.addf %1473, %1475 : vector<2x16x256xf32>
    %1477 = vector.broadcast %1467 : f32 to vector<2x16x256xf32>
    %1478 = arith.mulf %33, %1477 : vector<2x16x256xf32>
    %1479 = arith.addf %1476, %1478 : vector<2x16x256xf32>
    %1480 = vector.broadcast %1471 : f32 to vector<2x16x256xf32>
    %1481 = arith.mulf %44, %1480 : vector<2x16x256xf32>
    %1482 = arith.addf %1479, %1481 : vector<2x16x256xf32>
    %1483 = arith.mulf %1459, %1459 : f32
    %1484 = vector.broadcast %1483 : f32 to vector<1x1x1xf32>
    %1485 = arith.mulf %52, %1484 : vector<1x1x1xf32>
    %1486 = arith.mulf %1463, %1463 : f32
    %1487 = vector.broadcast %1486 : f32 to vector<1x1x1xf32>
    %1488 = arith.mulf %84, %1487 : vector<1x1x1xf32>
    %1489 = arith.addf %1485, %1488 : vector<1x1x1xf32>
    %1490 = arith.mulf %1467, %1467 : f32
    %1491 = vector.broadcast %1490 : f32 to vector<1x1x1xf32>
    %1492 = arith.mulf %108, %1491 : vector<1x1x1xf32>
    %1493 = arith.addf %1489, %1492 : vector<1x1x1xf32>
    %1494 = arith.mulf %1471, %1471 : f32
    %1495 = vector.broadcast %1494 : f32 to vector<1x1x1xf32>
    %1496 = arith.mulf %124, %1495 : vector<1x1x1xf32>
    %1497 = arith.addf %1493, %1496 : vector<1x1x1xf32>
    %cst_359 = arith.constant 2.000000e+00 : f32
    %1498 = arith.mulf %cst_359, %1459 : f32
    %1499 = arith.mulf %1498, %1463 : f32
    %1500 = vector.broadcast %1499 : f32 to vector<1x1x1xf32>
    %1501 = arith.mulf %60, %1500 : vector<1x1x1xf32>
    %1502 = arith.addf %1497, %1501 : vector<1x1x1xf32>
    %cst_360 = arith.constant 2.000000e+00 : f32
    %1503 = arith.mulf %cst_360, %1459 : f32
    %1504 = arith.mulf %1503, %1467 : f32
    %1505 = vector.broadcast %1504 : f32 to vector<1x1x1xf32>
    %1506 = arith.mulf %68, %1505 : vector<1x1x1xf32>
    %1507 = arith.addf %1502, %1506 : vector<1x1x1xf32>
    %cst_361 = arith.constant 2.000000e+00 : f32
    %1508 = arith.mulf %cst_361, %1459 : f32
    %1509 = arith.mulf %1508, %1471 : f32
    %1510 = vector.broadcast %1509 : f32 to vector<1x1x1xf32>
    %1511 = arith.mulf %76, %1510 : vector<1x1x1xf32>
    %1512 = arith.addf %1507, %1511 : vector<1x1x1xf32>
    %cst_362 = arith.constant 2.000000e+00 : f32
    %1513 = arith.mulf %cst_362, %1463 : f32
    %1514 = arith.mulf %1513, %1467 : f32
    %1515 = vector.broadcast %1514 : f32 to vector<1x1x1xf32>
    %1516 = arith.mulf %92, %1515 : vector<1x1x1xf32>
    %1517 = arith.addf %1512, %1516 : vector<1x1x1xf32>
    %cst_363 = arith.constant 2.000000e+00 : f32
    %1518 = arith.mulf %cst_363, %1463 : f32
    %1519 = arith.mulf %1518, %1471 : f32
    %1520 = vector.broadcast %1519 : f32 to vector<1x1x1xf32>
    %1521 = arith.mulf %100, %1520 : vector<1x1x1xf32>
    %1522 = arith.addf %1517, %1521 : vector<1x1x1xf32>
    %cst_364 = arith.constant 2.000000e+00 : f32
    %1523 = arith.mulf %cst_364, %1467 : f32
    %1524 = arith.mulf %1523, %1471 : f32
    %1525 = vector.broadcast %1524 : f32 to vector<1x1x1xf32>
    %1526 = arith.mulf %116, %1525 : vector<1x1x1xf32>
    %1527 = arith.addf %1522, %1526 : vector<1x1x1xf32>
    %1528 = arith.index_cast %1455 : i32 to index
    %1529 = memref.load %arg2[%1528] : memref<16xf32, #tpu.memory_space<smem>>
    %cst_365 = arith.constant 9.99999974E-6 : f32
    %1530 = vector.broadcast %cst_365 : f32 to vector<1x1x1xf32>
    %1531 = arith.addf %1527, %1530 : vector<1x1x1xf32>
    %1532 = math.rsqrt %1531 : vector<1x1x1xf32>
    %1533 = vector.broadcast %1529 : f32 to vector<1x1x1xf32>
    %1534 = arith.mulf %1533, %1532 : vector<1x1x1xf32>
    %1535 = vector.broadcast %1534 : vector<1x1x1xf32> to vector<2x16x256xf32>
    %1536 = arith.mulf %1482, %1535 : vector<2x16x256xf32>
    %1537 = arith.index_cast %1455 : i32 to index
    %1538 = memref.load %arg3[%1537] : memref<16xf32, #tpu.memory_space<smem>>
    %1539 = vector.broadcast %1538 : f32 to vector<2x16x256xf32>
    %1540 = arith.addf %1536, %1539 : vector<2x16x256xf32>
    %1541 = vector.extract_strided_slice %1540 {offsets = [0, 0, 0], sizes = [2, 16, 128], strides = [1, 1, 1]} : vector<2x16x256xf32> to vector<2x16x128xf32>
    %c0_366 = arith.constant 0 : index
    %c14 = arith.constant 14 : index
    %c0_367 = arith.constant 0 : index
    %c0_368 = arith.constant 0 : index
    %1542 = vector.load %arg5[%c0_366, %c14, %c0_367, %c0_368] : memref<2x16x16x128xf32, #tpu.memory_space<vmem>>, vector<2x1x16x128xf32>
    %1543 = vector.shape_cast %1542 : vector<2x1x16x128xf32> to vector<2x16x128xf32>
    %1544 = vector.extract_strided_slice %1540 {offsets = [0, 0, 128], sizes = [2, 16, 128], strides = [1, 1, 1]} : vector<2x16x256xf32> to vector<2x16x128xf32>
    %1545 = arith.mulf %1543, %1544 : vector<2x16x128xf32>
    %1546 = arith.addf %1541, %1545 : vector<2x16x128xf32>
    %c0_369 = arith.constant 0 : index
    %c14_370 = arith.constant 14 : index
    %c0_371 = arith.constant 0 : index
    %c0_372 = arith.constant 0 : index
    %1547 = vector.load %arg6[%c0_369, %c14_370, %c0_371, %c0_372] : memref<2x16x16x128xf32, #tpu.memory_space<vmem>>, vector<2x1x16x128xf32>
    %1548 = vector.shape_cast %1547 : vector<2x1x16x128xf32> to vector<2x16x128xf32>
    %1549 = vector.shape_cast %1546 : vector<2x16x128xf32> to vector<2x1x16x128xf32>
    tpu.vector_store %arg6[%c0_369, %c14_370, %c0_371, %c0_372], %1549 {strides = array<i32>} : memref<2x16x16x128xf32, #tpu.memory_space<vmem>>, vector<2x1x16x128xf32>,
    %c15_i32 = arith.constant 15 : i32
    %1550 = arith.addi %0, %c15_i32 : i32
    %c4_i32_373 = arith.constant 4 : i32
    %1551 = arith.muli %1550, %c4_i32_373 : i32
    %c0_i32_374 = arith.constant 0 : i32
    %1552 = arith.addi %1551, %c0_i32_374 : i32
    %1553 = arith.index_cast %1552 : i32 to index
    %1554 = memref.load %arg1[%1553] : memref<64xf32, #tpu.memory_space<smem>>
    %c4_i32_375 = arith.constant 4 : i32
    %1555 = arith.muli %1550, %c4_i32_375 : i32
    %c1_i32_376 = arith.constant 1 : i32
    %1556 = arith.addi %1555, %c1_i32_376 : i32
    %1557 = arith.index_cast %1556 : i32 to index
    %1558 = memref.load %arg1[%1557] : memref<64xf32, #tpu.memory_space<smem>>
    %c4_i32_377 = arith.constant 4 : i32
    %1559 = arith.muli %1550, %c4_i32_377 : i32
    %c2_i32_378 = arith.constant 2 : i32
    %1560 = arith.addi %1559, %c2_i32_378 : i32
    %1561 = arith.index_cast %1560 : i32 to index
    %1562 = memref.load %arg1[%1561] : memref<64xf32, #tpu.memory_space<smem>>
    %c4_i32_379 = arith.constant 4 : i32
    %1563 = arith.muli %1550, %c4_i32_379 : i32
    %c3_i32_380 = arith.constant 3 : i32
    %1564 = arith.addi %1563, %c3_i32_380 : i32
    %1565 = arith.index_cast %1564 : i32 to index
    %1566 = memref.load %arg1[%1565] : memref<64xf32, #tpu.memory_space<smem>>
    %1567 = vector.broadcast %1554 : f32 to vector<2x16x256xf32>
    %1568 = arith.mulf %11, %1567 : vector<2x16x256xf32>
    %1569 = vector.broadcast %1558 : f32 to vector<2x16x256xf32>
    %1570 = arith.mulf %22, %1569 : vector<2x16x256xf32>
    %1571 = arith.addf %1568, %1570 : vector<2x16x256xf32>
    %1572 = vector.broadcast %1562 : f32 to vector<2x16x256xf32>
    %1573 = arith.mulf %33, %1572 : vector<2x16x256xf32>
    %1574 = arith.addf %1571, %1573 : vector<2x16x256xf32>
    %1575 = vector.broadcast %1566 : f32 to vector<2x16x256xf32>
    %1576 = arith.mulf %44, %1575 : vector<2x16x256xf32>
    %1577 = arith.addf %1574, %1576 : vector<2x16x256xf32>
    %1578 = arith.mulf %1554, %1554 : f32
    %1579 = vector.broadcast %1578 : f32 to vector<1x1x1xf32>
    %1580 = arith.mulf %52, %1579 : vector<1x1x1xf32>
    %1581 = arith.mulf %1558, %1558 : f32
    %1582 = vector.broadcast %1581 : f32 to vector<1x1x1xf32>
    %1583 = arith.mulf %84, %1582 : vector<1x1x1xf32>
    %1584 = arith.addf %1580, %1583 : vector<1x1x1xf32>
    %1585 = arith.mulf %1562, %1562 : f32
    %1586 = vector.broadcast %1585 : f32 to vector<1x1x1xf32>
    %1587 = arith.mulf %108, %1586 : vector<1x1x1xf32>
    %1588 = arith.addf %1584, %1587 : vector<1x1x1xf32>
    %1589 = arith.mulf %1566, %1566 : f32
    %1590 = vector.broadcast %1589 : f32 to vector<1x1x1xf32>
    %1591 = arith.mulf %124, %1590 : vector<1x1x1xf32>
    %1592 = arith.addf %1588, %1591 : vector<1x1x1xf32>
    %cst_381 = arith.constant 2.000000e+00 : f32
    %1593 = arith.mulf %cst_381, %1554 : f32
    %1594 = arith.mulf %1593, %1558 : f32
    %1595 = vector.broadcast %1594 : f32 to vector<1x1x1xf32>
    %1596 = arith.mulf %60, %1595 : vector<1x1x1xf32>
    %1597 = arith.addf %1592, %1596 : vector<1x1x1xf32>
    %cst_382 = arith.constant 2.000000e+00 : f32
    %1598 = arith.mulf %cst_382, %1554 : f32
    %1599 = arith.mulf %1598, %1562 : f32
    %1600 = vector.broadcast %1599 : f32 to vector<1x1x1xf32>
    %1601 = arith.mulf %68, %1600 : vector<1x1x1xf32>
    %1602 = arith.addf %1597, %1601 : vector<1x1x1xf32>
    %cst_383 = arith.constant 2.000000e+00 : f32
    %1603 = arith.mulf %cst_383, %1554 : f32
    %1604 = arith.mulf %1603, %1566 : f32
    %1605 = vector.broadcast %1604 : f32 to vector<1x1x1xf32>
    %1606 = arith.mulf %76, %1605 : vector<1x1x1xf32>
    %1607 = arith.addf %1602, %1606 : vector<1x1x1xf32>
    %cst_384 = arith.constant 2.000000e+00 : f32
    %1608 = arith.mulf %cst_384, %1558 : f32
    %1609 = arith.mulf %1608, %1562 : f32
    %1610 = vector.broadcast %1609 : f32 to vector<1x1x1xf32>
    %1611 = arith.mulf %92, %1610 : vector<1x1x1xf32>
    %1612 = arith.addf %1607, %1611 : vector<1x1x1xf32>
    %cst_385 = arith.constant 2.000000e+00 : f32
    %1613 = arith.mulf %cst_385, %1558 : f32
    %1614 = arith.mulf %1613, %1566 : f32
    %1615 = vector.broadcast %1614 : f32 to vector<1x1x1xf32>
    %1616 = arith.mulf %100, %1615 : vector<1x1x1xf32>
    %1617 = arith.addf %1612, %1616 : vector<1x1x1xf32>
    %cst_386 = arith.constant 2.000000e+00 : f32
    %1618 = arith.mulf %cst_386, %1562 : f32
    %1619 = arith.mulf %1618, %1566 : f32
    %1620 = vector.broadcast %1619 : f32 to vector<1x1x1xf32>
    %1621 = arith.mulf %116, %1620 : vector<1x1x1xf32>
    %1622 = arith.addf %1617, %1621 : vector<1x1x1xf32>
    %1623 = arith.index_cast %1550 : i32 to index
    %1624 = memref.load %arg2[%1623] : memref<16xf32, #tpu.memory_space<smem>>
    %cst_387 = arith.constant 9.99999974E-6 : f32
    %1625 = vector.broadcast %cst_387 : f32 to vector<1x1x1xf32>
    %1626 = arith.addf %1622, %1625 : vector<1x1x1xf32>
    %1627 = math.rsqrt %1626 : vector<1x1x1xf32>
    %1628 = vector.broadcast %1624 : f32 to vector<1x1x1xf32>
    %1629 = arith.mulf %1628, %1627 : vector<1x1x1xf32>
    %1630 = vector.broadcast %1629 : vector<1x1x1xf32> to vector<2x16x256xf32>
    %1631 = arith.mulf %1577, %1630 : vector<2x16x256xf32>
    %1632 = arith.index_cast %1550 : i32 to index
    %1633 = memref.load %arg3[%1632] : memref<16xf32, #tpu.memory_space<smem>>
    %1634 = vector.broadcast %1633 : f32 to vector<2x16x256xf32>
    %1635 = arith.addf %1631, %1634 : vector<2x16x256xf32>
    %1636 = vector.extract_strided_slice %1635 {offsets = [0, 0, 0], sizes = [2, 16, 128], strides = [1, 1, 1]} : vector<2x16x256xf32> to vector<2x16x128xf32>
    %c0_388 = arith.constant 0 : index
    %c15 = arith.constant 15 : index
    %c0_389 = arith.constant 0 : index
    %c0_390 = arith.constant 0 : index
    %1637 = vector.load %arg5[%c0_388, %c15, %c0_389, %c0_390] : memref<2x16x16x128xf32, #tpu.memory_space<vmem>>, vector<2x1x16x128xf32>
    %1638 = vector.shape_cast %1637 : vector<2x1x16x128xf32> to vector<2x16x128xf32>
    %1639 = vector.extract_strided_slice %1635 {offsets = [0, 0, 128], sizes = [2, 16, 128], strides = [1, 1, 1]} : vector<2x16x256xf32> to vector<2x16x128xf32>
    %1640 = arith.mulf %1638, %1639 : vector<2x16x128xf32>
    %1641 = arith.addf %1636, %1640 : vector<2x16x128xf32>
    %c0_391 = arith.constant 0 : index
    %c15_392 = arith.constant 15 : index
    %c0_393 = arith.constant 0 : index
    %c0_394 = arith.constant 0 : index
    %1642 = vector.load %arg6[%c0_391, %c15_392, %c0_393, %c0_394] : memref<2x16x16x128xf32, #tpu.memory_space<vmem>>, vector<2x1x16x128xf32>
    %1643 = vector.shape_cast %1642 : vector<2x1x16x128xf32> to vector<2x16x128xf32>
    %1644 = vector.shape_cast %1641 : vector<2x16x128xf32> to vector<2x1x16x128xf32>
    tpu.vector_store %arg6[%c0_391, %c15_392, %c0_393, %c0_394], %1644 {strides = array<i32>} : memref<2x16x16x128xf32, #tpu.memory_space<vmem>>, vector<2x1x16x128xf32>,
    return
  }
  func.func @transform_0(%arg0: i32, %arg1: memref<64xf32, #tpu.memory_space<smem>>, %arg2: memref<16xf32, #tpu.memory_space<smem>>, %arg3: memref<16xf32, #tpu.memory_space<smem>>) -> (i32, i32, i32, i32) {
    %c0_i32 = arith.constant 0 : i32
    %c0_i32_0 = arith.constant 0 : i32
    %c0_i32_1 = arith.constant 0 : i32
    %c0_i32_2 = arith.constant 0 : i32
    %c0_i32_3 = arith.constant 0 : i32
    return %c0_i32, %c0_i32_0, %c0_i32_1, %c0_i32_2 : i32, i32, i32, i32
  }
  func.func @transform_1(%arg0: i32, %arg1: memref<64xf32, #tpu.memory_space<smem>>, %arg2: memref<16xf32, #tpu.memory_space<smem>>, %arg3: memref<16xf32, #tpu.memory_space<smem>>) -> (i32, i32, i32, i32) {
    %c0_i32 = arith.constant 0 : i32
    %c0_i32_0 = arith.constant 0 : i32
    %c0_i32_1 = arith.constant 0 : i32
    %c0_i32_2 = arith.constant 0 : i32
    return %c0_i32, %arg0, %c0_i32_0, %c0_i32_1 : i32, i32, i32, i32
  }
  func.func @transform_2(%arg0: i32, %arg1: memref<64xf32, #tpu.memory_space<smem>>, %arg2: memref<16xf32, #tpu.memory_space<smem>>, %arg3: memref<16xf32, #tpu.memory_space<smem>>) -> (i32, i32, i32, i32) {
    %c0_i32 = arith.constant 0 : i32
    %c0_i32_0 = arith.constant 0 : i32
    %c0_i32_1 = arith.constant 0 : i32
    %c0_i32_2 = arith.constant 0 : i32
    return %c0_i32, %arg0, %c0_i32_0, %c0_i32_1 : i32, i32, i32, i32
  }
}

</mosaic_0001>

<llo_original>
// kernel: tpu_custom_call.1
$region0: #{tpu_custom_call.1}
  #allocation0 [shape = 'u32[]', space=smem, size = 0x4, offset = 0x4, fixed_abs, tag = 'smem constant byte address 0x4 - core index']
  #allocation1 [shape = 'u32[144,128]{1,0:T(1,128)}', space=vmem, size = 0x12000, scoped, tag = 'internal scratch']
  #allocation2 [shape = 's32[1]{0}', space=sflag, size = 0x4, scoped, tag = 'scoped memory for tpu_custom_call.1']
  #allocation3 [shape = 'u8[512]{0}', space=smem, size = 0x200, scoped, tag = 'prefetched SMEM operand 0']
  #allocation4 [shape = 'u8[512]{0}', space=smem, size = 0x200, scoped, tag = 'prefetched SMEM operand 1']
  #allocation5 [shape = 'u8[512]{0}', space=smem, size = 0x200, scoped, tag = 'prefetched SMEM operand 2']
  %s0 = inlined_call_operand.hbm [shape: f32[64], index: 0, kind: input, shape index: {}]
  %s1 = inlined_call_operand.vmem [shape: f32[16], index: 1, kind: input, shape index: {}]
  %s2 = inlined_call_operand.vmem [shape: f32[16], index: 2, kind: input, shape index: {}]
  %s3 = inlined_call_operand.hbm [shape: f32[2,4,16,256], index: 3, kind: input, shape index: {}]
  %s4 = inlined_call_operand.hbm [shape: f32[2,16,16,128], index: 4, kind: input, shape index: {}]
  %s5 = inlined_call_operand.hbm [shape: f32[2,16,16,128], index: 5, kind: output, shape index: {}]
  %s6 = sld [smem:[#allocation0]]
  $region26: #{tpu_custom_call.1} parent=0
    _
  %s8 = ssub.s32 1, %s6
  %s9 = scalar_select 0, %s8, %s6
  %11 = dma.hbm_to_smem %s0, 16, [#allocation3], [#allocation2]
  %s12 = sshll.u32 %s1, 4
  %s13 = int_to_ptr.vmem [resolvable:$true] %s12
  %15 = dma.vmem_to_smem %s13, 16, [#allocation4], [#allocation2]
  %s16 = sshll.u32 %s2, 4
  %s17 = int_to_ptr.vmem [resolvable:$true] %s16
  %19 = dma.vmem_to_smem %s17, 16, [#allocation5], [#allocation2]
  %20 = dma.done [#allocation2], 48
  %21 = sfence
  $region1: #{tpu_custom_call.1} parent=0
    #allocation6 [shape = 'u8[131072]{0}', space=vmem, size = 0x20000, scoped, tag = 'input window, operand 3, single buffered']
    #allocation7 [shape = 's32[1]{0}', space=sflag, size = 0x4, scoped, tag = 'scoped memory for tpu_custom_call.1']
    #allocation8 [shape = 's32[1]{0}', space=sflag, size = 0x4, scoped, tag = 'scoped memory for tpu_custom_call.1']
    #allocation9 [shape = 'u8[262144]{0}', space=vmem, size = 0x40000, scoped, tag = 'input window, operand 4, single buffered']
    #allocation10 [shape = 's32[1]{0}', space=sflag, size = 0x4, scoped, tag = 'scoped memory for tpu_custom_call.1']
    #allocation11 [shape = 'u8[262144]{0}', space=vmem, size = 0x40000, scoped, tag = 'output window, operand 0, single buffered']
    %22 = vsyncpa [#allocation7], 0
    %23 = vsyncpa [#allocation10], 0
    %24 = vsyncpa [#allocation8], 0
    // Predicated region
    $region2: #{tpu_custom_call.1} parent=1 // pred_check
      _
    $region3: #{tpu_custom_call.1} parent=1 // pred_check_branch
      %26 = sbr.rel (0) target = $region5
    $region4: #{tpu_custom_call.1} parent=1 // pred_region
      %s28 = ssub.s32 4096, 4096
      %29 = vsyncadd [#allocation7], %s28
      %s30 = sshll.u32 [#allocation6], 4
      %s31 = int_to_ptr.vmem [resolvable:$true] %s30
      %36 = dma.hbm_to_vmem [thread:$0]  %s3, 4096, %s31, [#allocation7], 256, 256, 16
    $region5: #{tpu_custom_call.1} parent=1 // pred_fallthru
      _
    // Predicated region
    $region6: #{tpu_custom_call.1} parent=1 // pred_check
      _
    $region7: #{tpu_custom_call.1} parent=1 // pred_check_branch
      %38 = sbr.rel (0) target = $region9
    $region8: #{tpu_custom_call.1} parent=1 // pred_region
      %s40 = ssub.s32 8192, 8192
      %41 = vsyncadd [#allocation10], %s40
      %s42 = sshll.u32 [#allocation9], 4
      %s43 = int_to_ptr.vmem [resolvable:$true] %s42
      %48 = dma.hbm_to_vmem [thread:$0]  %s4, 8192, %s43, [#allocation10], 128, 128, 8
    $region9: #{tpu_custom_call.1} parent=1 // pred_fallthru
      _
    // Predicated region
    $region10: #{tpu_custom_call.1} parent=1 // pred_check
      _
    $region11: #{tpu_custom_call.1} parent=1 // pred_check_branch
      %50 = sbr.rel (0) target = $region13
    $region12: #{tpu_custom_call.1} parent=1 // pred_region
      %51 = dma.done [#allocation7], 4096
    $region13: #{tpu_custom_call.1} parent=1 // pred_fallthru
      _
    // Predicated region
    $region14: #{tpu_custom_call.1} parent=1 // pred_check
      _
    $region15: #{tpu_custom_call.1} parent=1 // pred_check_branch
      %53 = sbr.rel (0) target = $region17
    $region16: #{tpu_custom_call.1} parent=1 // pred_region
      %54 = dma.done [#allocation10], 8192
    $region17: #{tpu_custom_call.1} parent=1 // pred_fallthru
      _
    %s55 = smul.u32 0, 16
    %v56 = vld [vmem:[#allocation6] sm:$0xff]
    %v57 = vld [vmem:[#allocation6 + $0x8] sm:$0xff]
    %v58 = vld [vmem:[#allocation6 + $0x10] sm:$0xff]
    %v59 = vld [vmem:[#allocation6 + $0x18] sm:$0xff]
    %v60 = vld [vmem:[#allocation6 + $0x80] sm:$0xff]
    %v61 = vld [vmem:[#allocation6 + $0x88] sm:$0xff]
    %v62 = vld [vmem:[#allocation6 + $0x90] sm:$0xff]
    %v63 = vld [vmem:[#allocation6 + $0x98] sm:$0xff]
    %v64 = vadd.f32 %v56, %v57
    %v65 = vadd.f32 %v64, %v58
    %v66 = vadd.f32 %v65, %v59
    %v67 = vadd.f32 %v66, %v60
    %v68 = vadd.f32 %v67, %v61
    %v69 = vadd.f32 %v68, %v62
    %v70 = vadd.f32 %v69, %v63
    %71 = vadd.xlane.f32.xlu0 %v70
    %v72 = vpop.xlane.xlu0 %71
    %v73 = vrot.slane %v72, 4
    %v74 = vadd.f32 %v72, %v73
    %v75 = vrot.slane %v74, 2
    %v76 = vadd.f32 %v74, %v75
    %v77 = vrot.slane %v76, 1
    %v78 = vadd.f32 %v76, %v77
    %s79 = vtos %v78
    %v80 = vstv %s79
    %v81 = vmul.f32 %v80, 0.00012207031
    %v82 = vsub.f32 %v56, %v81
    %v83 = vsub.f32 %v57, %v81
    %v84 = vsub.f32 %v58, %v81
    %v85 = vsub.f32 %v59, %v81
    %v86 = vsub.f32 %v60, %v81
    %v87 = vsub.f32 %v61, %v81
    %v88 = vsub.f32 %v62, %v81
    %v89 = vsub.f32 %v63, %v81
    %s90 = scalar_lea.vmem [#allocation6], 32
    %v91 = vld [vmem:[%s90] sm:$0xff]
    %v92 = vld [vmem:[%s90 + $0x8] sm:$0xff]
    %v93 = vld [vmem:[%s90 + $0x10] sm:$0xff]
    %v94 = vld [vmem:[%s90 + $0x18] sm:$0xff]
    %v95 = vld [vmem:[%s90 + $0x80] sm:$0xff]
    %v96 = vld [vmem:[%s90 + $0x88] sm:$0xff]
    %v97 = vld [vmem:[%s90 + $0x90] sm:$0xff]
    %v98 = vld [vmem:[%s90 + $0x98] sm:$0xff]
    %v99 = vadd.f32 %v91, %v92
    %v100 = vadd.f32 %v99, %v93
    %v101 = vadd.f32 %v100, %v94
    %v102 = vadd.f32 %v101, %v95
    %v103 = vadd.f32 %v102, %v96
    %v104 = vadd.f32 %v103, %v97
    %v105 = vadd.f32 %v104, %v98
    %106 = vadd.xlane.f32.xlu0 %v105
    %v107 = vpop.xlane.xlu0 %106
    %v108 = vrot.slane %v107, 4
    %v109 = vadd.f32 %v107, %v108
    %v110 = vrot.slane %v109, 2
    %v111 = vadd.f32 %v109, %v110
    %v112 = vrot.slane %v111, 1
    %v113 = vadd.f32 %v111, %v112
    %s114 = vtos %v113
    %v115 = vstv %s114
    %v116 = vmul.f32 %v115, 0.00012207031
    %v117 = vsub.f32 %v91, %v116
    %v118 = vsub.f32 %v92, %v116
    %v119 = vsub.f32 %v93, %v116
    %v120 = vsub.f32 %v94, %v116
    %v121 = vsub.f32 %v95, %v116
    %v122 = vsub.f32 %v96, %v116
    %v123 = vsub.f32 %v97, %v116
    %v124 = vsub.f32 %v98, %v116
    %s125 = scalar_lea.vmem [#allocation6], 64
    %v126 = vld [vmem:[%s125] sm:$0xff]
    %v127 = vld [vmem:[%s125 + $0x8] sm:$0xff]
    %v128 = vld [vmem:[%s125 + $0x10] sm:$0xff]
    %v129 = vld [vmem:[%s125 + $0x18] sm:$0xff]
    %v130 = vld [vmem:[%s125 + $0x80] sm:$0xff]
    %v131 = vld [vmem:[%s125 + $0x88] sm:$0xff]
    %v132 = vld [vmem:[%s125 + $0x90] sm:$0xff]
    %v133 = vld [vmem:[%s125 + $0x98] sm:$0xff]
    %v134 = vadd.f32 %v126, %v127
    %v135 = vadd.f32 %v134, %v128
    %v136 = vadd.f32 %v135, %v129
    %v137 = vadd.f32 %v136, %v130
    %v138 = vadd.f32 %v137, %v131
    %v139 = vadd.f32 %v138, %v132
    %v140 = vadd.f32 %v139, %v133
    %141 = vadd.xlane.f32.xlu0 %v140
    %v142 = vpop.xlane.xlu0 %141
    %v143 = vrot.slane %v142, 4
    %v144 = vadd.f32 %v142, %v143
    %v145 = vrot.slane %v144, 2
    %v146 = vadd.f32 %v144, %v145
    %v147 = vrot.slane %v146, 1
    %v148 = vadd.f32 %v146, %v147
    %s149 = vtos %v148
    %v150 = vstv %s149
    %v151 = vmul.f32 %v150, 0.00012207031
    %v152 = vsub.f32 %v126, %v151
    %v153 = vsub.f32 %v127, %v151
    %v154 = vsub.f32 %v128, %v151
    %v155 = vsub.f32 %v129, %v151
    %v156 = vsub.f32 %v130, %v151
    %v157 = vsub.f32 %v131, %v151
    %v158 = vsub.f32 %v132, %v151
    %v159 = vsub.f32 %v133, %v151
    %s160 = scalar_lea.vmem [#allocation6], 96
    %v161 = vld [vmem:[%s160] sm:$0xff]
    %v162 = vld [vmem:[%s160 + $0x8] sm:$0xff]
    %v163 = vld [vmem:[%s160 + $0x10] sm:$0xff]
    %v164 = vld [vmem:[%s160 + $0x18] sm:$0xff]
    %v165 = vld [vmem:[%s160 + $0x80] sm:$0xff]
    %v166 = vld [vmem:[%s160 + $0x88] sm:$0xff]
    %v167 = vld [vmem:[%s160 + $0x90] sm:$0xff]
    %v168 = vld [vmem:[%s160 + $0x98] sm:$0xff]
    %v169 = vadd.f32 %v161, %v162
    %v170 = vadd.f32 %v169, %v163
    %v171 = vadd.f32 %v170, %v164
    %v172 = vadd.f32 %v171, %v165
    %v173 = vadd.f32 %v172, %v166
    %v174 = vadd.f32 %v173, %v167
    %v175 = vadd.f32 %v174, %v168
    %176 = vadd.xlane.f32.xlu0 %v175
    %v177 = vpop.xlane.xlu0 %176
    %v178 = vrot.slane %v177, 4
    %v179 = vadd.f32 %v177, %v178
    %v180 = vrot.slane %v179, 2
    %v181 = vadd.f32 %v179, %v180
    %v182 = vrot.slane %v181, 1
    %v183 = vadd.f32 %v181, %v182
    %s184 = vtos %v183
    %v185 = vstv %s184
    %v186 = vmul.f32 %v185, 0.00012207031
    %v187 = vsub.f32 %v161, %v186
    %v188 = vsub.f32 %v162, %v186
    %v189 = vsub.f32 %v163, %v186
    %v190 = vsub.f32 %v164, %v186
    %v191 = vsub.f32 %v165, %v186
    %v192 = vsub.f32 %v166, %v186
    %v193 = vsub.f32 %v167, %v186
    %v194 = vsub.f32 %v168, %v186
    %v195 = vmul.f32 %v82, %v82
    %v196 = vmul.f32 %v83, %v83
    %v197 = vmul.f32 %v84, %v84
    %v198 = vmul.f32 %v85, %v85
    %v199 = vmul.f32 %v86, %v86
    %v200 = vmul.f32 %v87, %v87
    %v201 = vmul.f32 %v88, %v88
    %v202 = vmul.f32 %v89, %v89
    %v203 = vadd.f32 %v195, %v196
    %v204 = vadd.f32 %v203, %v197
    %v205 = vadd.f32 %v204, %v198
    %v206 = vadd.f32 %v205, %v199
    %v207 = vadd.f32 %v206, %v200
    %v208 = vadd.f32 %v207, %v201
    %v209 = vadd.f32 %v208, %v202
    %210 = vadd.xlane.f32.xlu0 %v209
    %v211 = vpop.xlane.xlu0 %210
    %v212 = vrot.slane %v211, 4
    %v213 = vadd.f32 %v211, %v212
    %v214 = vrot.slane %v213, 2
    %v215 = vadd.f32 %v213, %v214
    %v216 = vrot.slane %v215, 1
    %v217 = vadd.f32 %v215, %v216
    %s218 = vtos %v217
    %v219 = vstv %s218
    %v220 = vmul.f32 %v219, 0.00012207031
    %v221 = vmul.f32 %v82, %v117
    %v222 = vmul.f32 %v83, %v118
    %v223 = vmul.f32 %v84, %v119
    %v224 = vmul.f32 %v85, %v120
    %v225 = vmul.f32 %v86, %v121
    %v226 = vmul.f32 %v87, %v122
    %v227 = vmul.f32 %v88, %v123
    %v228 = vmul.f32 %v89, %v124
    %v229 = vadd.f32 %v221, %v222
    %v230 = vadd.f32 %v229, %v223
    %v231 = vadd.f32 %v230, %v224
    %v232 = vadd.f32 %v231, %v225
    %v233 = vadd.f32 %v232, %v226
    %v234 = vadd.f32 %v233, %v227
    %v235 = vadd.f32 %v234, %v228
    %236 = vadd.xlane.f32.xlu0 %v235
    %v237 = vpop.xlane.xlu0 %236
    %v238 = vrot.slane %v237, 4
    %v239 = vadd.f32 %v237, %v238
    %v240 = vrot.slane %v239, 2
    %v241 = vadd.f32 %v239, %v240
    %v242 = vrot.slane %v241, 1
    %v243 = vadd.f32 %v241, %v242
    %s244 = vtos %v243
    %v245 = vstv %s244
    %v246 = vmul.f32 %v245, 0.00012207031
    %v247 = vmul.f32 %v82, %v152
    %v248 = vmul.f32 %v83, %v153
    %v249 = vmul.f32 %v84, %v154
    %v250 = vmul.f32 %v85, %v155
    %v251 = vmul.f32 %v86, %v156
    %v252 = vmul.f32 %v87, %v157
    %v253 = vmul.f32 %v88, %v158
    %v254 = vmul.f32 %v89, %v159
    %v255 = vadd.f32 %v247, %v248
    %v256 = vadd.f32 %v255, %v249
    %v257 = vadd.f32 %v256, %v250
    %v258 = vadd.f32 %v257, %v251
    %v259 = vadd.f32 %v258, %v252
    %v260 = vadd.f32 %v259, %v253
    %v261 = vadd.f32 %v260, %v254
    %262 = vadd.xlane.f32.xlu0 %v261
    %v263 = vpop.xlane.xlu0 %262
    %v264 = vrot.slane %v263, 4
    %v265 = vadd.f32 %v263, %v264
    %v266 = vrot.slane %v265, 2
    %v267 = vadd.f32 %v265, %v266
    %v268 = vrot.slane %v267, 1
    %v269 = vadd.f32 %v267, %v268
    %s270 = vtos %v269
    %v271 = vstv %s270
    %v272 = vmul.f32 %v271, 0.00012207031
    %v273 = vmul.f32 %v82, %v187
    %v274 = vmul.f32 %v83, %v188
    %v275 = vmul.f32 %v84, %v189
    %v276 = vmul.f32 %v85, %v190
    %v277 = vmul.f32 %v86, %v191
    %v278 = vmul.f32 %v87, %v192
    %v279 = vmul.f32 %v88, %v193
    %v280 = vmul.f32 %v89, %v194
    %v281 = vadd.f32 %v273, %v274
    %v282 = vadd.f32 %v281, %v275
    %v283 = vadd.f32 %v282, %v276
    %v284 = vadd.f32 %v283, %v277
    %v285 = vadd.f32 %v284, %v278
    %v286 = vadd.f32 %v285, %v279
    %v287 = vadd.f32 %v286, %v280
    %288 = vadd.xlane.f32.xlu0 %v287
    %v289 = vpop.xlane.xlu0 %288
    %v290 = vrot.slane %v289, 4
    %v291 = vadd.f32 %v289, %v290
    %v292 = vrot.slane %v291, 2
    %v293 = vadd.f32 %v291, %v292
    %v294 = vrot.slane %v293, 1
    %v295 = vadd.f32 %v293, %v294
    %s296 = vtos %v295
    %v297 = vstv %s296
    %v298 = vmul.f32 %v297, 0.00012207031
    %v299 = vmul.f32 %v117, %v117
    %v300 = vmul.f32 %v118, %v118
    %v301 = vmul.f32 %v119, %v119
    %v302 = vmul.f32 %v120, %v120
    %v303 = vmul.f32 %v121, %v121
    %v304 = vmul.f32 %v122, %v122
    %v305 = vmul.f32 %v123, %v123
    %v306 = vmul.f32 %v124, %v124
    %v307 = vadd.f32 %v299, %v300
    %v308 = vadd.f32 %v307, %v301
    %v309 = vadd.f32 %v308, %v302
    %v310 = vadd.f32 %v309, %v303
    %v311 = vadd.f32 %v310, %v304
    %v312 = vadd.f32 %v311, %v305
    %v313 = vadd.f32 %v312, %v306
    %314 = vadd.xlane.f32.xlu0 %v313
    %v315 = vpop.xlane.xlu0 %314
    %v316 = vrot.slane %v315, 4
    %v317 = vadd.f32 %v315, %v316
    %v318 = vrot.slane %v317, 2
    %v319 = vadd.f32 %v317, %v318
    %v320 = vrot.slane %v319, 1
    %v321 = vadd.f32 %v319, %v320
    %s322 = vtos %v321
    %v323 = vstv %s322
    %v324 = vmul.f32 %v323, 0.00012207031
    %v325 = vmul.f32 %v117, %v152
    %v326 = vmul.f32 %v118, %v153
    %v327 = vmul.f32 %v119, %v154
    %v328 = vmul.f32 %v120, %v155
    %v329 = vmul.f32 %v121, %v156
    %v330 = vmul.f32 %v122, %v157
    %v331 = vmul.f32 %v123, %v158
    %v332 = vmul.f32 %v124, %v159
    %v333 = vadd.f32 %v325, %v326
    %v334 = vadd.f32 %v333, %v327
    %v335 = vadd.f32 %v334, %v328
    %v336 = vadd.f32 %v335, %v329
    %v337 = vadd.f32 %v336, %v330
    %v338 = vadd.f32 %v337, %v331
    %v339 = vadd.f32 %v338, %v332
    %340 = vadd.xlane.f32.xlu0 %v339
    %v341 = vpop.xlane.xlu0 %340
    %v342 = vrot.slane %v341, 4
    %v343 = vadd.f32 %v341, %v342
    %v344 = vrot.slane %v343, 2
    %v345 = vadd.f32 %v343, %v344
    %v346 = vrot.slane %v345, 1
    %v347 = vadd.f32 %v345, %v346
    %s348 = vtos %v347
    %v349 = vstv %s348
    %v350 = vmul.f32 %v349, 0.00012207031
    %v351 = vmul.f32 %v117, %v187
    %v352 = vmul.f32 %v118, %v188
    %v353 = vmul.f32 %v119, %v189
    %v354 = vmul.f32 %v120, %v190
    %v355 = vmul.f32 %v121, %v191
    %v356 = vmul.f32 %v122, %v192
    %v357 = vmul.f32 %v123, %v193
    %v358 = vmul.f32 %v124, %v194
    %v359 = vadd.f32 %v351, %v352
    %v360 = vadd.f32 %v359, %v353
    %v361 = vadd.f32 %v360, %v354
    %v362 = vadd.f32 %v361, %v355
    %v363 = vadd.f32 %v362, %v356
    %v364 = vadd.f32 %v363, %v357
    %v365 = vadd.f32 %v364, %v358
    %366 = vadd.xlane.f32.xlu0 %v365
    %v367 = vpop.xlane.xlu0 %366
    %v368 = vrot.slane %v367, 4
    %v369 = vadd.f32 %v367, %v368
    %v370 = vrot.slane %v369, 2
    %v371 = vadd.f32 %v369, %v370
    %v372 = vrot.slane %v371, 1
    %v373 = vadd.f32 %v371, %v372
    %s374 = vtos %v373
    %v375 = vstv %s374
    %v376 = vmul.f32 %v375, 0.00012207031
    %v377 = vmul.f32 %v152, %v152
    %v378 = vmul.f32 %v153, %v153
    %v379 = vmul.f32 %v154, %v154
    %v380 = vmul.f32 %v155, %v155
    %v381 = vmul.f32 %v156, %v156
    %v382 = vmul.f32 %v157, %v157
    %v383 = vmul.f32 %v158, %v158
    %v384 = vmul.f32 %v159, %v159
    %v385 = vadd.f32 %v377, %v378
    %v386 = vadd.f32 %v385, %v379
    %v387 = vadd.f32 %v386, %v380
    %v388 = vadd.f32 %v387, %v381
    %v389 = vadd.f32 %v388, %v382
    %v390 = vadd.f32 %v389, %v383
    %v391 = vadd.f32 %v390, %v384
    %392 = vadd.xlane.f32.xlu0 %v391
    %v393 = vpop.xlane.xlu0 %392
    %v394 = vrot.slane %v393, 4
    %v395 = vadd.f32 %v393, %v394
    %v396 = vrot.slane %v395, 2
    %v397 = vadd.f32 %v395, %v396
    %v398 = vrot.slane %v397, 1
    %v399 = vadd.f32 %v397, %v398
    %s400 = vtos %v399
    %v401 = vstv %s400
    %v402 = vmul.f32 %v401, 0.00012207031
    %v403 = vmul.f32 %v152, %v187
    %v404 = vmul.f32 %v153, %v188
    %v405 = vmul.f32 %v154, %v189
    %v406 = vmul.f32 %v155, %v190
    %v407 = vmul.f32 %v156, %v191
    %v408 = vmul.f32 %v157, %v192
    %v409 = vmul.f32 %v158, %v193
    %v410 = vmul.f32 %v159, %v194
    %v411 = vadd.f32 %v403, %v404
    %v412 = vadd.f32 %v411, %v405
    %v413 = vadd.f32 %v412, %v406
    %v414 = vadd.f32 %v413, %v407
    %v415 = vadd.f32 %v414, %v408
    %v416 = vadd.f32 %v415, %v409
    %v417 = vadd.f32 %v416, %v410
    %418 = vadd.xlane.f32.xlu0 %v417
    %v419 = vpop.xlane.xlu0 %418
    %v420 = vrot.slane %v419, 4
    %v421 = vadd.f32 %v419, %v420
    %v422 = vrot.slane %v421, 2
    %v423 = vadd.f32 %v421, %v422
    %v424 = vrot.slane %v423, 1
    %v425 = vadd.f32 %v423, %v424
    %s426 = vtos %v425
    %v427 = vstv %s426
    %v428 = vmul.f32 %v427, 0.00012207031
    %v429 = vmul.f32 %v187, %v187
    %v430 = vmul.f32 %v188, %v188
    %v431 = vmul.f32 %v189, %v189
    %v432 = vmul.f32 %v190, %v190
    %v433 = vmul.f32 %v191, %v191
    %v434 = vmul.f32 %v192, %v192
    %v435 = vmul.f32 %v193, %v193
    %v436 = vmul.f32 %v194, %v194
    %v437 = vadd.f32 %v429, %v430
    %v438 = vadd.f32 %v437, %v431
    %v439 = vadd.f32 %v438, %v432
    %v440 = vadd.f32 %v439, %v433
    %v441 = vadd.f32 %v440, %v434
    %v442 = vadd.f32 %v441, %v435
    %v443 = vadd.f32 %v442, %v436
    %444 = vadd.xlane.f32.xlu0 %v443
    %v445 = vpop.xlane.xlu0 %444
    %v446 = vrot.slane %v445, 4
    %v447 = vadd.f32 %v445, %v446
    %v448 = vrot.slane %v447, 2
    %v449 = vadd.f32 %v447, %v448
    %v450 = vrot.slane %v449, 1
    %v451 = vadd.f32 %v449, %v450
    %s452 = vtos %v451
    %v453 = vstv %s452
    %v454 = vmul.f32 %v453, 0.00012207031
    %s455 = smul.u32 0, 64
    %s456 = sld [smem:[#allocation3 + %s455]]
    %s457 = sadd.s32 %s455, 1
    %s458 = sld [smem:[#allocation3 + %s457]]
    %s459 = sadd.s32 %s455, 2
    %s460 = sld [smem:[#allocation3 + %s459]]
    %s461 = sadd.s32 %s455, 3
    %s462 = sld [smem:[#allocation3 + %s461]]
    %v463 = vstv %s456
    %v464 = vmul.f32 %v82, %v463
    %v465 = vmul.f32 %v83, %v463
    %v466 = vmul.f32 %v84, %v463
    %v467 = vmul.f32 %v85, %v463
    %v468 = vmul.f32 %v86, %v463
    %v469 = vmul.f32 %v87, %v463
    %v470 = vmul.f32 %v88, %v463
    %v471 = vmul.f32 %v89, %v463
    %v472 = vstv %s458
    %v473 = vmul.f32 %v117, %v472
    %v474 = vmul.f32 %v118, %v472
    %v475 = vmul.f32 %v119, %v472
    %v476 = vmul.f32 %v120, %v472
    %v477 = vmul.f32 %v121, %v472
    %v478 = vmul.f32 %v122, %v472
    %v479 = vmul.f32 %v123, %v472
    %v480 = vmul.f32 %v124, %v472
    %v481 = vadd.f32 %v464, %v473
    %v482 = vadd.f32 %v465, %v474
    %v483 = vadd.f32 %v466, %v475
    %v484 = vadd.f32 %v467, %v476
    %v485 = vadd.f32 %v468, %v477
    %v486 = vadd.f32 %v469, %v478
    %v487 = vadd.f32 %v470, %v479
    %v488 = vadd.f32 %v471, %v480
    %v489 = vstv %s460
    %v490 = vmul.f32 %v152, %v489
    %v491 = vmul.f32 %v153, %v489
    %v492 = vmul.f32 %v154, %v489
    %v493 = vmul.f32 %v155, %v489
    %v494 = vmul.f32 %v156, %v489
    %v495 = vmul.f32 %v157, %v489
    %v496 = vmul.f32 %v158, %v489
    %v497 = vmul.f32 %v159, %v489
    %v498 = vadd.f32 %v481, %v490
    %v499 = vadd.f32 %v482, %v491
    %v500 = vadd.f32 %v483, %v492
    %v501 = vadd.f32 %v484, %v493
    %v502 = vadd.f32 %v485, %v494
    %v503 = vadd.f32 %v486, %v495
    %v504 = vadd.f32 %v487, %v496
    %v505 = vadd.f32 %v488, %v497
    %v506 = vstv %s462
    %v507 = vmul.f32 %v187, %v506
    %v508 = vmul.f32 %v188, %v506
    %v509 = vmul.f32 %v189, %v506
    %v510 = vmul.f32 %v190, %v506
    %v511 = vmul.f32 %v191, %v506
    %v512 = vmul.f32 %v192, %v506
    %v513 = vmul.f32 %v193, %v506
    %v514 = vmul.f32 %v194, %v506
    %v515 = vadd.f32 %v498, %v507
    %v516 = vadd.f32 %v499, %v508
    %v517 = vadd.f32 %v500, %v509
    %v518 = vadd.f32 %v501, %v510
    %v519 = vadd.f32 %v502, %v511
    %v520 = vadd.f32 %v503, %v512
    %v521 = vadd.f32 %v504, %v513
    %v522 = vadd.f32 %v505, %v514
    %s523 = smul.f32 %s456, %s456
    %v524 = vstv %s523
    %v525 = vmul.f32 %v220, %v524
    %s526 = smul.f32 %s458, %s458
    %v527 = vstv %s526
    %v528 = vmul.f32 %v324, %v527
    %v529 = vadd.f32 %v525, %v528
    %s530 = smul.f32 %s460, %s460
    %v531 = vstv %s530
    %v532 = vmul.f32 %v402, %v531
    %v533 = vadd.f32 %v529, %v532
    %s534 = smul.f32 %s462, %s462
    %v535 = vstv %s534
    %v536 = vmul.f32 %v454, %v535
    %v537 = vadd.f32 %v533, %v536
    %s538 = smul.f32 %s456, 2.0
    %s539 = smul.f32 %s538, %s458
    %v540 = vstv %s539
    %v541 = vmul.f32 %v246, %v540
    %v542 = vadd.f32 %v537, %v541
    %s543 = smul.f32 %s538, %s460
    %v544 = vstv %s543
    %v545 = vmul.f32 %v272, %v544
    %v546 = vadd.f32 %v542, %v545
    %s547 = smul.f32 %s538, %s462
    %v548 = vstv %s547
    %v549 = vmul.f32 %v298, %v548
    %v550 = vadd.f32 %v546, %v549
    %s551 = smul.f32 %s458, 2.0
    %s552 = smul.f32 %s551, %s460
    %v553 = vstv %s552
    %v554 = vmul.f32 %v350, %v553
    %v555 = vadd.f32 %v550, %v554
    %s556 = smul.f32 %s551, %s462
    %v557 = vstv %s556
    %v558 = vmul.f32 %v376, %v557
    %v559 = vadd.f32 %v555, %v558
    %s560 = smul.f32 %s460, 2.0
    %s561 = smul.f32 %s560, %s462
    %v562 = vstv %s561
    %v563 = vmul.f32 %v428, %v562
    %v564 = vadd.f32 %v559, %v563
    %s565 = sld [smem:[#allocation4 + %s55]]
    %v566 = vadd.f32 %v564, 1e-05
    %v567 = vrsqrt.pop %v566
    %v568 = vstv %s565
    %v569 = vmul.f32 %v568, %v567
    %v570 = vmul.f32 %v515, %v569
    %v571 = vmul.f32 %v516, %v569
    %v572 = vmul.f32 %v517, %v569
    %v573 = vmul.f32 %v518, %v569
    %v574 = vmul.f32 %v519, %v569
    %v575 = vmul.f32 %v520, %v569
    %v576 = vmul.f32 %v521, %v569
    %v577 = vmul.f32 %v522, %v569
    %s578 = sld [smem:[#allocation5 + %s55]]
    %v579 = vstv %s578
    %v580 = vadd.f32 %v570, %v579
    %v581 = vadd.f32 %v571, %v579
    %v582 = vadd.f32 %v572, %v579
    %v583 = vadd.f32 %v573, %v579
    %v584 = vadd.f32 %v574, %v579
    %v585 = vadd.f32 %v575, %v579
    %v586 = vadd.f32 %v576, %v579
    %v587 = vadd.f32 %v577, %v579
    %v588 = vld [vmem:[#allocation9] sm:$0xff]
    %v589 = vld [vmem:[#allocation9 + $0x8] sm:$0xff]
    %v590 = vld [vmem:[#allocation9 + $0x100] sm:$0xff]
    %v591 = vld [vmem:[#allocation9 + $0x108] sm:$0xff]
    %v592 = vmul.f32 %v588, %v581
    %v593 = vmul.f32 %v589, %v583
    %v594 = vmul.f32 %v590, %v585
    %v595 = vmul.f32 %v591, %v587
    %v596 = vadd.f32 %v580, %v592
    %v597 = vadd.f32 %v582, %v593
    %v598 = vadd.f32 %v584, %v594
    %v599 = vadd.f32 %v586, %v595
    %600 = vst [vmem:[#allocation11] sm:$0xff] %v596
    %601 = vst [vmem:[#allocation11 + $0x8] sm:$0xff] %v597
    %602 = vst [vmem:[#allocation11 + $0x100] sm:$0xff] %v598
    %603 = vst [vmem:[#allocation11 + $0x108] sm:$0xff] %v599
    %s604 = sadd.s32 %s55, 1
    %s605 = smul.u32 %s604, 4
    %s606 = sld [smem:[#allocation3 + %s605]]
    %s607 = sadd.s32 %s605, 1
    %s608 = sld [smem:[#allocation3 + %s607]]
    %s609 = sadd.s32 %s605, 2
    %s610 = sld [smem:[#allocation3 + %s609]]
    %s611 = sadd.s32 %s605, 3
    %s612 = sld [smem:[#allocation3 + %s611]]
    %v613 = vstv %s606
    %v614 = vmul.f32 %v82, %v613
    %v615 = vmul.f32 %v83, %v613
    %v616 = vmul.f32 %v84, %v613
    %v617 = vmul.f32 %v85, %v613
    %v618 = vmul.f32 %v86, %v613
    %v619 = vmul.f32 %v87, %v613
    %v620 = vmul.f32 %v88, %v613
    %v621 = vmul.f32 %v89, %v613
    %v622 = vstv %s608
    %v623 = vmul.f32 %v117, %v622
    %v624 = vmul.f32 %v118, %v622
    %v625 = vmul.f32 %v119, %v622
    %v626 = vmul.f32 %v120, %v622
    %v627 = vmul.f32 %v121, %v622
    %v628 = vmul.f32 %v122, %v622
    %v629 = vmul.f32 %v123, %v622
    %v630 = vmul.f32 %v124, %v622
    %v631 = vadd.f32 %v614, %v623
    %v632 = vadd.f32 %v615, %v624
    %v633 = vadd.f32 %v616, %v625
    %v634 = vadd.f32 %v617, %v626
    %v635 = vadd.f32 %v618, %v627
    %v636 = vadd.f32 %v619, %v628
    %v637 = vadd.f32 %v620, %v629
    %v638 = vadd.f32 %v621, %v630
    %v639 = vstv %s610
    %v640 = vmul.f32 %v152, %v639
    %v641 = vmul.f32 %v153, %v639
    %v642 = vmul.f32 %v154, %v639
    %v643 = vmul.f32 %v155, %v639
    %v644 = vmul.f32 %v156, %v639
    %v645 = vmul.f32 %v157, %v639
    %v646 = vmul.f32 %v158, %v639
    %v647 = vmul.f32 %v159, %v639
    %v648 = vadd.f32 %v631, %v640
    %v649 = vadd.f32 %v632, %v641
    %v650 = vadd.f32 %v633, %v642
    %v651 = vadd.f32 %v634, %v643
    %v652 = vadd.f32 %v635, %v644
    %v653 = vadd.f32 %v636, %v645
    %v654 = vadd.f32 %v637, %v646
    %v655 = vadd.f32 %v638, %v647
    %v656 = vstv %s612
    %v657 = vmul.f32 %v187, %v656
    %v658 = vmul.f32 %v188, %v656
    %v659 = vmul.f32 %v189, %v656
    %v660 = vmul.f32 %v190, %v656
    %v661 = vmul.f32 %v191, %v656
    %v662 = vmul.f32 %v192, %v656
    %v663 = vmul.f32 %v193, %v656
    %v664 = vmul.f32 %v194, %v656
    %v665 = vadd.f32 %v648, %v657
    %v666 = vadd.f32 %v649, %v658
    %v667 = vadd.f32 %v650, %v659
    %v668 = vadd.f32 %v651, %v660
    %v669 = vadd.f32 %v652, %v661
    %v670 = vadd.f32 %v653, %v662
    %v671 = vadd.f32 %v654, %v663
    %v672 = vadd.f32 %v655, %v664
    %s673 = smul.f32 %s606, %s606
    %v674 = vstv %s673
    %v675 = vmul.f32 %v220, %v674
    %s676 = smul.f32 %s608, %s608
    %v677 = vstv %s676
    %v678 = vmul.f32 %v324, %v677
    %v679 = vadd.f32 %v675, %v678
    %s680 = smul.f32 %s610, %s610
    %v681 = vstv %s680
    %v682 = vmul.f32 %v402, %v681
    %v683 = vadd.f32 %v679, %v682
    %s684 = smul.f32 %s612, %s612
    %v685 = vstv %s684
    %v686 = vmul.f32 %v454, %v685
    %v687 = vadd.f32 %v683, %v686
    %s688 = smul.f32 %s606, 2.0
    %s689 = smul.f32 %s688, %s608
    %v690 = vstv %s689
    %v691 = vmul.f32 %v246, %v690
    %v692 = vadd.f32 %v687, %v691
    %s693 = smul.f32 %s688, %s610
    %v694 = vstv %s693
    %v695 = vmul.f32 %v272, %v694
    %v696 = vadd.f32 %v692, %v695
    %s697 = smul.f32 %s688, %s612
    %v698 = vstv %s697
    %v699 = vmul.f32 %v298, %v698
    %v700 = vadd.f32 %v696, %v699
    %s701 = smul.f32 %s608, 2.0
    %s702 = smul.f32 %s701, %s610
    %v703 = vstv %s702
    %v704 = vmul.f32 %v350, %v703
    %v705 = vadd.f32 %v700, %v704
    %s706 = smul.f32 %s701, %s612
    %v707 = vstv %s706
    %v708 = vmul.f32 %v376, %v707
    %v709 = vadd.f32 %v705, %v708
    %s710 = smul.f32 %s610, 2.0
    %s711 = smul.f32 %s710, %s612
    %v712 = vstv %s711
    %v713 = vmul.f32 %v428, %v712
    %v714 = vadd.f32 %v709, %v713
    %s715 = sld [smem:[#allocation4 + %s604]]
    %v716 = vadd.f32 %v714, 1e-05
    %v717 = vrsqrt.pop %v716
    %v718 = vstv %s715
    %v719 = vmul.f32 %v718, %v717
    %v720 = vmul.f32 %v665, %v719
    %v721 = vmul.f32 %v666, %v719
    %v722 = vmul.f32 %v667, %v719
    %v723 = vmul.f32 %v668, %v719
    %v724 = vmul.f32 %v669, %v719
    %v725 = vmul.f32 %v670, %v719
    %v726 = vmul.f32 %v671, %v719
    %v727 = vmul.f32 %v672, %v719
    %s728 = sld [smem:[#allocation5 + %s604]]
    %v729 = vstv %s728
    %v730 = vadd.f32 %v720, %v729
    %v731 = vadd.f32 %v721, %v729
    %v732 = vadd.f32 %v722, %v729
    %v733 = vadd.f32 %v723, %v729
    %v734 = vadd.f32 %v724, %v729
    %v735 = vadd.f32 %v725, %v729
    %v736 = vadd.f32 %v726, %v729
    %v737 = vadd.f32 %v727, %v729
    %s738 = scalar_lea.vmem [#allocation9], 16
    %v739 = vld [vmem:[%s738] sm:$0xff]
    %v740 = vld [vmem:[%s738 + $0x8] sm:$0xff]
    %v741 = vld [vmem:[%s738 + $0x100] sm:$0xff]
    %v742 = vld [vmem:[%s738 + $0x108] sm:$0xff]
    %v743 = vmul.f32 %v739, %v731
    %v744 = vmul.f32 %v740, %v733
    %v745 = vmul.f32 %v741, %v735
    %v746 = vmul.f32 %v742, %v737
    %v747 = vadd.f32 %v730, %v743
    %v748 = vadd.f32 %v732, %v744
    %v749 = vadd.f32 %v734, %v745
    %v750 = vadd.f32 %v736, %v746
    %s751 = scalar_lea.vmem [#allocation11], 16
    %752 = vst [vmem:[%s751] sm:$0xff] %v747
    %753 = vst [vmem:[%s751 + $0x8] sm:$0xff] %v748
    %754 = vst [vmem:[%s751 + $0x100] sm:$0xff] %v749
    %755 = vst [vmem:[%s751 + $0x108] sm:$0xff] %v750
    %s756 = sadd.s32 %s55, 2
    %s757 = smul.u32 %s756, 4
    %s758 = sld [smem:[#allocation3 + %s757]]
    %s759 = sadd.s32 %s757, 1
    %s760 = sld [smem:[#allocation3 + %s759]]
    %s761 = sadd.s32 %s757, 2
    %s762 = sld [smem:[#allocation3 + %s761]]
    %s763 = sadd.s32 %s757, 3
    %s764 = sld [smem:[#allocation3 + %s763]]
    %v765 = vstv %s758
    %v766 = vmul.f32 %v82, %v765
    %v767 = vmul.f32 %v83, %v765
    %v768 = vmul.f32 %v84, %v765
    %v769 = vmul.f32 %v85, %v765
    %v770 = vmul.f32 %v86, %v765
    %v771 = vmul.f32 %v87, %v765
    %v772 = vmul.f32 %v88, %v765
    %v773 = vmul.f32 %v89, %v765
    %v774 = vstv %s760
    %v775 = vmul.f32 %v117, %v774
    %v776 = vmul.f32 %v118, %v774
    %v777 = vmul.f32 %v119, %v774
    %v778 = vmul.f32 %v120, %v774
    %v779 = vmul.f32 %v121, %v774
    %v780 = vmul.f32 %v122, %v774
    %v781 = vmul.f32 %v123, %v774
    %v782 = vmul.f32 %v124, %v774
    %v783 = vadd.f32 %v766, %v775
    %v784 = vadd.f32 %v767, %v776
    %v785 = vadd.f32 %v768, %v777
    %v786 = vadd.f32 %v769, %v778
    %v787 = vadd.f32 %v770, %v779
    %v788 = vadd.f32 %v771, %v780
    %v789 = vadd.f32 %v772, %v781
    %v790 = vadd.f32 %v773, %v782
    %v791 = vstv %s762
    %v792 = vmul.f32 %v152, %v791
    %v793 = vmul.f32 %v153, %v791
    %v794 = vmul.f32 %v154, %v791
    %v795 = vmul.f32 %v155, %v791
    %v796 = vmul.f32 %v156, %v791
    %v797 = vmul.f32 %v157, %v791
    %v798 = vmul.f32 %v158, %v791
    %v799 = vmul.f32 %v159, %v791
    %v800 = vadd.f32 %v783, %v792
    %v801 = vadd.f32 %v784, %v793
    %v802 = vadd.f32 %v785, %v794
    %v803 = vadd.f32 %v786, %v795
    %v804 = vadd.f32 %v787, %v796
    %v805 = vadd.f32 %v788, %v797
    %v806 = vadd.f32 %v789, %v798
    %v807 = vadd.f32 %v790, %v799
    %v808 = vstv %s764
    %v809 = vmul.f32 %v187, %v808
    %v810 = vmul.f32 %v188, %v808
    %v811 = vmul.f32 %v189, %v808
    %v812 = vmul.f32 %v190, %v808
    %v813 = vmul.f32 %v191, %v808
    %v814 = vmul.f32 %v192, %v808
    %v815 = vmul.f32 %v193, %v808
    %v816 = vmul.f32 %v194, %v808
    %v817 = vadd.f32 %v800, %v809
    %v818 = vadd.f32 %v801, %v810
    %v819 = vadd.f32 %v802, %v811
    %v820 = vadd.f32 %v803, %v812
    %v821 = vadd.f32 %v804, %v813
    %v822 = vadd.f32 %v805, %v814
    %v823 = vadd.f32 %v806, %v815
    %v824 = vadd.f32 %v807, %v816
    %s825 = smul.f32 %s758, %s758
    %v826 = vstv %s825
    %v827 = vmul.f32 %v220, %v826
    %s828 = smul.f32 %s760, %s760
    %v829 = vstv %s828
    %v830 = vmul.f32 %v324, %v829
    %v831 = vadd.f32 %v827, %v830
    %s832 = smul.f32 %s762, %s762
    %v833 = vstv %s832
    %v834 = vmul.f32 %v402, %v833
    %v835 = vadd.f32 %v831, %v834
    %s836 = smul.f32 %s764, %s764
    %v837 = vstv %s836
    %v838 = vmul.f32 %v454, %v837
    %v839 = vadd.f32 %v835, %v838
    %s840 = smul.f32 %s758, 2.0
    %s841 = smul.f32 %s840, %s760
    %v842 = vstv %s841
    %v843 = vmul.f32 %v246, %v842
    %v844 = vadd.f32 %v839, %v843
    %s845 = smul.f32 %s840, %s762
    %v846 = vstv %s845
    %v847 = vmul.f32 %v272, %v846
    %v848 = vadd.f32 %v844, %v847
    %s849 = smul.f32 %s840, %s764
    %v850 = vstv %s849
    %v851 = vmul.f32 %v298, %v850
    %v852 = vadd.f32 %v848, %v851
    %s853 = smul.f32 %s760, 2.0
    %s854 = smul.f32 %s853, %s762
    %v855 = vstv %s854
    %v856 = vmul.f32 %v350, %v855
    %v857 = vadd.f32 %v852, %v856
    %s858 = smul.f32 %s853, %s764
    %v859 = vstv %s858
    %v860 = vmul.f32 %v376, %v859
    %v861 = vadd.f32 %v857, %v860
    %s862 = smul.f32 %s762, 2.0
    %s863 = smul.f32 %s862, %s764
    %v864 = vstv %s863
    %v865 = vmul.f32 %v428, %v864
    %v866 = vadd.f32 %v861, %v865
    %s867 = sld [smem:[#allocation4 + %s756]]
    %v868 = vadd.f32 %v866, 1e-05
    %v869 = vrsqrt.pop %v868
    %v870 = vstv %s867
    %v871 = vmul.f32 %v870, %v869
    %v872 = vmul.f32 %v817, %v871
    %v873 = vmul.f32 %v818, %v871
    %v874 = vmul.f32 %v819, %v871
    %v875 = vmul.f32 %v820, %v871
    %v876 = vmul.f32 %v821, %v871
    %v877 = vmul.f32 %v822, %v871
    %v878 = vmul.f32 %v823, %v871
    %v879 = vmul.f32 %v824, %v871
    %s880 = sld [smem:[#allocation5 + %s756]]
    %v881 = vstv %s880
    %v882 = vadd.f32 %v872, %v881
    %v883 = vadd.f32 %v873, %v881
    %v884 = vadd.f32 %v874, %v881
    %v885 = vadd.f32 %v875, %v881
    %v886 = vadd.f32 %v876, %v881
    %v887 = vadd.f32 %v877, %v881
    %v888 = vadd.f32 %v878, %v881
    %v889 = vadd.f32 %v879, %v881
    %s890 = scalar_lea.vmem [#allocation9], 32
    %v891 = vld [vmem:[%s890] sm:$0xff]
    %v892 = vld [vmem:[%s890 + $0x8] sm:$0xff]
    %v893 = vld [vmem:[%s890 + $0x100] sm:$0xff]
    %v894 = vld [vmem:[%s890 + $0x108] sm:$0xff]
    %v895 = vmul.f32 %v891, %v883
    %v896 = vmul.f32 %v892, %v885
    %v897 = vmul.f32 %v893, %v887
    %v898 = vmul.f32 %v894, %v889
    %v899 = vadd.f32 %v882, %v895
    %v900 = vadd.f32 %v884, %v896
    %v901 = vadd.f32 %v886, %v897
    %v902 = vadd.f32 %v888, %v898
    %s903 = scalar_lea.vmem [#allocation11], 32
    %904 = vst [vmem:[%s903] sm:$0xff] %v899
    %905 = vst [vmem:[%s903 + $0x8] sm:$0xff] %v900
    %906 = vst [vmem:[%s903 + $0x100] sm:$0xff] %v901
    %907 = vst [vmem:[%s903 + $0x108] sm:$0xff] %v902
    %s908 = sadd.s32 %s55, 3
    %s909 = smul.u32 %s908, 4
    %s910 = sld [smem:[#allocation3 + %s909]]
    %s911 = sadd.s32 %s909, 1
    %s912 = sld [smem:[#allocation3 + %s911]]
    %s913 = sadd.s32 %s909, 2
    %s914 = sld [smem:[#allocation3 + %s913]]
    %s915 = sadd.s32 %s909, 3
    %s916 = sld [smem:[#allocation3 + %s915]]
    %v917 = vstv %s910
    %v918 = vmul.f32 %v82, %v917
    %v919 = vmul.f32 %v83, %v917
    %v920 = vmul.f32 %v84, %v917
    %v921 = vmul.f32 %v85, %v917
    %v922 = vmul.f32 %v86, %v917
    %v923 = vmul.f32 %v87, %v917
    %v924 = vmul.f32 %v88, %v917
    %v925 = vmul.f32 %v89, %v917
    %v926 = vstv %s912
    %v927 = vmul.f32 %v117, %v926
    %v928 = vmul.f32 %v118, %v926
    %v929 = vmul.f32 %v119, %v926
    %v930 = vmul.f32 %v120, %v926
    %v931 = vmul.f32 %v121, %v926
    %v932 = vmul.f32 %v122, %v926
    %v933 = vmul.f32 %v123, %v926
    %v934 = vmul.f32 %v124, %v926
    %v935 = vadd.f32 %v918, %v927
    %v936 = vadd.f32 %v919, %v928
    %v937 = vadd.f32 %v920, %v929
    %v938 = vadd.f32 %v921, %v930
    %v939 = vadd.f32 %v922, %v931
    %v940 = vadd.f32 %v923, %v932
    %v941 = vadd.f32 %v924, %v933
    %v942 = vadd.f32 %v925, %v934
    %v943 = vstv %s914
    %v944 = vmul.f32 %v152, %v943
    %v945 = vmul.f32 %v153, %v943
    %v946 = vmul.f32 %v154, %v943
    %v947 = vmul.f32 %v155, %v943
    %v948 = vmul.f32 %v156, %v943
    %v949 = vmul.f32 %v157, %v943
    %v950 = vmul.f32 %v158, %v943
    %v951 = vmul.f32 %v159, %v943
    %v952 = vadd.f32 %v935, %v944
    %v953 = vadd.f32 %v936, %v945
    %v954 = vadd.f32 %v937, %v946
    %v955 = vadd.f32 %v938, %v947
    %v956 = vadd.f32 %v939, %v948
    %v957 = vadd.f32 %v940, %v949
    %v958 = vadd.f32 %v941, %v950
    %v959 = vadd.f32 %v942, %v951
    %v960 = vstv %s916
    %v961 = vmul.f32 %v187, %v960
    %v962 = vmul.f32 %v188, %v960
    %v963 = vmul.f32 %v189, %v960
    %v964 = vmul.f32 %v190, %v960
    %v965 = vmul.f32 %v191, %v960
    %v966 = vmul.f32 %v192, %v960
    %v967 = vmul.f32 %v193, %v960
    %v968 = vmul.f32 %v194, %v960
    %v969 = vadd.f32 %v952, %v961
    %v970 = vadd.f32 %v953, %v962
    %v971 = vadd.f32 %v954, %v963
    %v972 = vadd.f32 %v955, %v964
    %v973 = vadd.f32 %v956, %v965
    %v974 = vadd.f32 %v957, %v966
    %v975 = vadd.f32 %v958, %v967
    %v976 = vadd.f32 %v959, %v968
    %s977 = smul.f32 %s910, %s910
    %v978 = vstv %s977
    %v979 = vmul.f32 %v220, %v978
    %s980 = smul.f32 %s912, %s912
    %v981 = vstv %s980
    %v982 = vmul.f32 %v324, %v981
    %v983 = vadd.f32 %v979, %v982
    %s984 = smul.f32 %s914, %s914
    %v985 = vstv %s984
    %v986 = vmul.f32 %v402, %v985
    %v987 = vadd.f32 %v983, %v986
    %s988 = smul.f32 %s916, %s916
    %v989 = vstv %s988
    %v990 = vmul.f32 %v454, %v989
    %v991 = vadd.f32 %v987, %v990
    %s992 = smul.f32 %s910, 2.0
    %s993 = smul.f32 %s992, %s912
    %v994 = vstv %s993
    %v995 = vmul.f32 %v246, %v994
    %v996 = vadd.f32 %v991, %v995
    %s997 = smul.f32 %s992, %s914
    %v998 = vstv %s997
    %v999 = vmul.f32 %v272, %v998
    %v1000 = vadd.f32 %v996, %v999
    %s1001 = smul.f32 %s992, %s916
    %v1002 = vstv %s1001
    %v1003 = vmul.f32 %v298, %v1002
    %v1004 = vadd.f32 %v1000, %v1003
    %s1005 = smul.f32 %s912, 2.0
    %s1006 = smul.f32 %s1005, %s914
    %v1007 = vstv %s1006
    %v1008 = vmul.f32 %v350, %v1007
    %v1009 = vadd.f32 %v1004, %v1008
    %s1010 = smul.f32 %s1005, %s916
    %v1011 = vstv %s1010
    %v1012 = vmul.f32 %v376, %v1011
    %v1013 = vadd.f32 %v1009, %v1012
    %s1014 = smul.f32 %s914, 2.0
    %s1015 = smul.f32 %s1014, %s916
    %v1016 = vstv %s1015
    %v1017 = vmul.f32 %v428, %v1016
    %v1018 = vadd.f32 %v1013, %v1017
    %s1019 = sld [smem:[#allocation4 + %s908]]
    %v1020 = vadd.f32 %v1018, 1e-05
    %v1021 = vrsqrt.pop %v1020
    %v1022 = vstv %s1019
    %v1023 = vmul.f32 %v1022, %v1021
    %v1024 = vmul.f32 %v969, %v1023
    %v1025 = vmul.f32 %v970, %v1023
    %v1026 = vmul.f32 %v971, %v1023
    %v1027 = vmul.f32 %v972, %v1023
    %v1028 = vmul.f32 %v973, %v1023
    %v1029 = vmul.f32 %v974, %v1023
    %v1030 = vmul.f32 %v975, %v1023
    %v1031 = vmul.f32 %v976, %v1023
    %s1032 = sld [smem:[#allocation5 + %s908]]
    %v1033 = vstv %s1032
    %v1034 = vadd.f32 %v1024, %v1033
    %v1035 = vadd.f32 %v1025, %v1033
    %v1036 = vadd.f32 %v1026, %v1033
    %v1037 = vadd.f32 %v1027, %v1033
    %v1038 = vadd.f32 %v1028, %v1033
    %v1039 = vadd.f32 %v1029, %v1033
    %v1040 = vadd.f32 %v1030, %v1033
    %v1041 = vadd.f32 %v1031, %v1033
    %s1042 = scalar_lea.vmem [#allocation9], 48
    %v1043 = vld [vmem:[%s1042] sm:$0xff]
    %v1044 = vld [vmem:[%s1042 + $0x8] sm:$0xff]
    %v1045 = vld [vmem:[%s1042 + $0x100] sm:$0xff]
    %v1046 = vld [vmem:[%s1042 + $0x108] sm:$0xff]
    %v1047 = vmul.f32 %v1043, %v1035
    %v1048 = vmul.f32 %v1044, %v1037
    %v1049 = vmul.f32 %v1045, %v1039
    %v1050 = vmul.f32 %v1046, %v1041
    %v1051 = vadd.f32 %v1034, %v1047
    %v1052 = vadd.f32 %v1036, %v1048
    %v1053 = vadd.f32 %v1038, %v1049
    %v1054 = vadd.f32 %v1040, %v1050
    %s1055 = scalar_lea.vmem [#allocation11], 48
    %1056 = vst [vmem:[%s1055] sm:$0xff] %v1051
    %1057 = vst [vmem:[%s1055 + $0x8] sm:$0xff] %v1052
    %1058 = vst [vmem:[%s1055 + $0x100] sm:$0xff] %v1053
    %1059 = vst [vmem:[%s1055 + $0x108] sm:$0xff] %v1054
    %s1060 = sadd.s32 %s55, 4
    %s1061 = smul.u32 %s1060, 4
    %s1062 = sld [smem:[#allocation3 + %s1061]]
    %s1063 = sadd.s32 %s1061, 1
    %s1064 = sld [smem:[#allocation3 + %s1063]]
    %s1065 = sadd.s32 %s1061, 2
    %s1066 = sld [smem:[#allocation3 + %s1065]]
    %s1067 = sadd.s32 %s1061, 3
    %s1068 = sld [smem:[#allocation3 + %s1067]]
    %v1069 = vstv %s1062
    %v1070 = vmul.f32 %v82, %v1069
    %v1071 = vmul.f32 %v83, %v1069
    %v1072 = vmul.f32 %v84, %v1069
    %v1073 = vmul.f32 %v85, %v1069
    %v1074 = vmul.f32 %v86, %v1069
    %v1075 = vmul.f32 %v87, %v1069
    %v1076 = vmul.f32 %v88, %v1069
    %v1077 = vmul.f32 %v89, %v1069
    %v1078 = vstv %s1064
    %v1079 = vmul.f32 %v117, %v1078
    %v1080 = vmul.f32 %v118, %v1078
    %v1081 = vmul.f32 %v119, %v1078
    %v1082 = vmul.f32 %v120, %v1078
    %v1083 = vmul.f32 %v121, %v1078
    %v1084 = vmul.f32 %v122, %v1078
    %v1085 = vmul.f32 %v123, %v1078
    %v1086 = vmul.f32 %v124, %v1078
    %v1087 = vadd.f32 %v1070, %v1079
    %v1088 = vadd.f32 %v1071, %v1080
    %v1089 = vadd.f32 %v1072, %v1081
    %v1090 = vadd.f32 %v1073, %v1082
    %v1091 = vadd.f32 %v1074, %v1083
    %v1092 = vadd.f32 %v1075, %v1084
    %v1093 = vadd.f32 %v1076, %v1085
    %v1094 = vadd.f32 %v1077, %v1086
    %v1095 = vstv %s1066
    %v1096 = vmul.f32 %v152, %v1095
    %v1097 = vmul.f32 %v153, %v1095
    %v1098 = vmul.f32 %v154, %v1095
    %v1099 = vmul.f32 %v155, %v1095
    %v1100 = vmul.f32 %v156, %v1095
    %v1101 = vmul.f32 %v157, %v1095
    %v1102 = vmul.f32 %v158, %v1095
    %v1103 = vmul.f32 %v159, %v1095
    %v1104 = vadd.f32 %v1087, %v1096
    %v1105 = vadd.f32 %v1088, %v1097
    %v1106 = vadd.f32 %v1089, %v1098
    %v1107 = vadd.f32 %v1090, %v1099
    %v1108 = vadd.f32 %v1091, %v1100
    %v1109 = vadd.f32 %v1092, %v1101
    %v1110 = vadd.f32 %v1093, %v1102
    %v1111 = vadd.f32 %v1094, %v1103
    %v1112 = vstv %s1068
    %v1113 = vmul.f32 %v187, %v1112
    %v1114 = vmul.f32 %v188, %v1112
    %v1115 = vmul.f32 %v189, %v1112
    %v1116 = vmul.f32 %v190, %v1112
    %v1117 = vmul.f32 %v191, %v1112
    %v1118 = vmul.f32 %v192, %v1112
    %v1119 = vmul.f32 %v193, %v1112
    %v1120 = vmul.f32 %v194, %v1112
    %v1121 = vadd.f32 %v1104, %v1113
    %v1122 = vadd.f32 %v1105, %v1114
    %v1123 = vadd.f32 %v1106, %v1115
    %v1124 = vadd.f32 %v1107, %v1116
    %v1125 = vadd.f32 %v1108, %v1117
    %v1126 = vadd.f32 %v1109, %v1118
    %v1127 = vadd.f32 %v1110, %v1119
    %v1128 = vadd.f32 %v1111, %v1120
    %s1129 = smul.f32 %s1062, %s1062
    %v1130 = vstv %s1129
    %v1131 = vmul.f32 %v220, %v1130
    %s1132 = smul.f32 %s1064, %s1064
    %v1133 = vstv %s1132
    %v1134 = vmul.f32 %v324, %v1133
    %v1135 = vadd.f32 %v1131, %v1134
    %s1136 = smul.f32 %s1066, %s1066
    %v1137 = vstv %s1136
    %v1138 = vmul.f32 %v402, %v1137
    %v1139 = vadd.f32 %v1135, %v1138
    %s1140 = smul.f32 %s1068, %s1068
    %v1141 = vstv %s1140
    %v1142 = vmul.f32 %v454, %v1141
    %v1143 = vadd.f32 %v1139, %v1142
    %s1144 = smul.f32 %s1062, 2.0
    %s1145 = smul.f32 %s1144, %s1064
    %v1146 = vstv %s1145
    %v1147 = vmul.f32 %v246, %v1146
    %v1148 = vadd.f32 %v1143, %v1147
    %s1149 = smul.f32 %s1144, %s1066
    %v1150 = vstv %s1149
    %v1151 = vmul.f32 %v272, %v1150
    %v1152 = vadd.f32 %v1148, %v1151
    %s1153 = smul.f32 %s1144, %s1068
    %v1154 = vstv %s1153
    %v1155 = vmul.f32 %v298, %v1154
    %v1156 = vadd.f32 %v1152, %v1155
    %s1157 = smul.f32 %s1064, 2.0
    %s1158 = smul.f32 %s1157, %s1066
    %v1159 = vstv %s1158
    %v1160 = vmul.f32 %v350, %v1159
    %v1161 = vadd.f32 %v1156, %v1160
    %s1162 = smul.f32 %s1157, %s1068
    %v1163 = vstv %s1162
    %v1164 = vmul.f32 %v376, %v1163
    %v1165 = vadd.f32 %v1161, %v1164
    %s1166 = smul.f32 %s1066, 2.0
    %s1167 = smul.f32 %s1166, %s1068
    %v1168 = vstv %s1167
    %v1169 = vmul.f32 %v428, %v1168
    %v1170 = vadd.f32 %v1165, %v1169
    %s1171 = sld [smem:[#allocation4 + %s1060]]
    %v1172 = vadd.f32 %v1170, 1e-05
    %v1173 = vrsqrt.pop %v1172
    %v1174 = vstv %s1171
    %v1175 = vmul.f32 %v1174, %v1173
    %v1176 = vmul.f32 %v1121, %v1175
    %v1177 = vmul.f32 %v1122, %v1175
    %v1178 = vmul.f32 %v1123, %v1175
    %v1179 = vmul.f32 %v1124, %v1175
    %v1180 = vmul.f32 %v1125, %v1175
    %v1181 = vmul.f32 %v1126, %v1175
    %v1182 = vmul.f32 %v1127, %v1175
    %v1183 = vmul.f32 %v1128, %v1175
    %s1184 = sld [smem:[#allocation5 + %s1060]]
    %v1185 = vstv %s1184
    %v1186 = vadd.f32 %v1176, %v1185
    %v1187 = vadd.f32 %v1177, %v1185
    %v1188 = vadd.f32 %v1178, %v1185
    %v1189 = vadd.f32 %v1179, %v1185
    %v1190 = vadd.f32 %v1180, %v1185
    %v1191 = vadd.f32 %v1181, %v1185
    %v1192 = vadd.f32 %v1182, %v1185
    %v1193 = vadd.f32 %v1183, %v1185
    %s1194 = scalar_lea.vmem [#allocation9], 64
    %v1195 = vld [vmem:[%s1194] sm:$0xff]
    %v1196 = vld [vmem:[%s1194 + $0x8] sm:$0xff]
    %v1197 = vld [vmem:[%s1194 + $0x100] sm:$0xff]
    %v1198 = vld [vmem:[%s1194 + $0x108] sm:$0xff]
    %v1199 = vmul.f32 %v1195, %v1187
    %v1200 = vmul.f32 %v1196, %v1189
    %v1201 = vmul.f32 %v1197, %v1191
    %v1202 = vmul.f32 %v1198, %v1193
    %v1203 = vadd.f32 %v1186, %v1199
    %v1204 = vadd.f32 %v1188, %v1200
    %v1205 = vadd.f32 %v1190, %v1201
    %v1206 = vadd.f32 %v1192, %v1202
    %s1207 = scalar_lea.vmem [#allocation11], 64
    %1208 = vst [vmem:[%s1207] sm:$0xff] %v1203
    %1209 = vst [vmem:[%s1207 + $0x8] sm:$0xff] %v1204
    %1210 = vst [vmem:[%s1207 + $0x100] sm:$0xff] %v1205
    %1211 = vst [vmem:[%s1207 + $0x108] sm:$0xff] %v1206
    %s1212 = sadd.s32 %s55, 5
    %s1213 = smul.u32 %s1212, 4
    %s1214 = sld [smem:[#allocation3 + %s1213]]
    %s1215 = sadd.s32 %s1213, 1
    %s1216 = sld [smem:[#allocation3 + %s1215]]
    %s1217 = sadd.s32 %s1213, 2
    %s1218 = sld [smem:[#allocation3 + %s1217]]
    %s1219 = sadd.s32 %s1213, 3
    %s1220 = sld [smem:[#allocation3 + %s1219]]
    %v1221 = vstv %s1214
    %v1222 = vmul.f32 %v82, %v1221
    %v1223 = vmul.f32 %v83, %v1221
    %v1224 = vmul.f32 %v84, %v1221
    %v1225 = vmul.f32 %v85, %v1221
    %v1226 = vmul.f32 %v86, %v1221
    %v1227 = vmul.f32 %v87, %v1221
    %v1228 = vmul.f32 %v88, %v1221
    %v1229 = vmul.f32 %v89, %v1221
    %v1230 = vstv %s1216
    %v1231 = vmul.f32 %v117, %v1230
    %v1232 = vmul.f32 %v118, %v1230
    %v1233 = vmul.f32 %v119, %v1230
    %v1234 = vmul.f32 %v120, %v1230
    %v1235 = vmul.f32 %v121, %v1230
    %v1236 = vmul.f32 %v122, %v1230
    %v1237 = vmul.f32 %v123, %v1230
    %v1238 = vmul.f32 %v124, %v1230
    %v1239 = vadd.f32 %v1222, %v1231
    %v1240 = vadd.f32 %v1223, %v1232
    %v1241 = vadd.f32 %v1224, %v1233
    %v1242 = vadd.f32 %v1225, %v1234
    %v1243 = vadd.f32 %v1226, %v1235
    %v1244 = vadd.f32 %v1227, %v1236
    %v1245 = vadd.f32 %v1228, %v1237
    %v1246 = vadd.f32 %v1229, %v1238
    %v1247 = vstv %s1218
    %v1248 = vmul.f32 %v152, %v1247
    %v1249 = vmul.f32 %v153, %v1247
    %v1250 = vmul.f32 %v154, %v1247
    %v1251 = vmul.f32 %v155, %v1247
    %v1252 = vmul.f32 %v156, %v1247
    %v1253 = vmul.f32 %v157, %v1247
    %v1254 = vmul.f32 %v158, %v1247
    %v1255 = vmul.f32 %v159, %v1247
    %v1256 = vadd.f32 %v1239, %v1248
    %v1257 = vadd.f32 %v1240, %v1249
    %v1258 = vadd.f32 %v1241, %v1250
    %v1259 = vadd.f32 %v1242, %v1251
    %v1260 = vadd.f32 %v1243, %v1252
    %v1261 = vadd.f32 %v1244, %v1253
    %v1262 = vadd.f32 %v1245, %v1254
    %v1263 = vadd.f32 %v1246, %v1255
    %v1264 = vstv %s1220
    %v1265 = vmul.f32 %v187, %v1264
    %v1266 = vmul.f32 %v188, %v1264
    %v1267 = vmul.f32 %v189, %v1264
    %v1268 = vmul.f32 %v190, %v1264
    %v1269 = vmul.f32 %v191, %v1264
    %v1270 = vmul.f32 %v192, %v1264
    %v1271 = vmul.f32 %v193, %v1264
    %v1272 = vmul.f32 %v194, %v1264
    %v1273 = vadd.f32 %v1256, %v1265
    %v1274 = vadd.f32 %v1257, %v1266
    %v1275 = vadd.f32 %v1258, %v1267
    %v1276 = vadd.f32 %v1259, %v1268
    %v1277 = vadd.f32 %v1260, %v1269
    %v1278 = vadd.f32 %v1261, %v1270
    %v1279 = vadd.f32 %v1262, %v1271
    %v1280 = vadd.f32 %v1263, %v1272
    %s1281 = smul.f32 %s1214, %s1214
    %v1282 = vstv %s1281
    %v1283 = vmul.f32 %v220, %v1282
    %s1284 = smul.f32 %s1216, %s1216
    %v1285 = vstv %s1284
    %v1286 = vmul.f32 %v324, %v1285
    %v1287 = vadd.f32 %v1283, %v1286
    %s1288 = smul.f32 %s1218, %s1218
    %v1289 = vstv %s1288
    %v1290 = vmul.f32 %v402, %v1289
    %v1291 = vadd.f32 %v1287, %v1290
    %s1292 = smul.f32 %s1220, %s1220
    %v1293 = vstv %s1292
    %v1294 = vmul.f32 %v454, %v1293
    %v1295 = vadd.f32 %v1291, %v1294
    %s1296 = smul.f32 %s1214, 2.0
    %s1297 = smul.f32 %s1296, %s1216
    %v1298 = vstv %s1297
    %v1299 = vmul.f32 %v246, %v1298
    %v1300 = vadd.f32 %v1295, %v1299
    %s1301 = smul.f32 %s1296, %s1218
    %v1302 = vstv %s1301
    %v1303 = vmul.f32 %v272, %v1302
    %v1304 = vadd.f32 %v1300, %v1303
    %s1305 = smul.f32 %s1296, %s1220
    %v1306 = vstv %s1305
    %v1307 = vmul.f32 %v298, %v1306
    %v1308 = vadd.f32 %v1304, %v1307
    %s1309 = smul.f32 %s1216, 2.0
    %s1310 = smul.f32 %s1309, %s1218
    %v1311 = vstv %s1310
    %v1312 = vmul.f32 %v350, %v1311
    %v1313 = vadd.f32 %v1308, %v1312
    %s1314 = smul.f32 %s1309, %s1220
    %v1315 = vstv %s1314
    %v1316 = vmul.f32 %v376, %v1315
    %v1317 = vadd.f32 %v1313, %v1316
    %s1318 = smul.f32 %s1218, 2.0
    %s1319 = smul.f32 %s1318, %s1220
    %v1320 = vstv %s1319
    %v1321 = vmul.f32 %v428, %v1320
    %v1322 = vadd.f32 %v1317, %v1321
    %s1323 = sld [smem:[#allocation4 + %s1212]]
    %v1324 = vadd.f32 %v1322, 1e-05
    %v1325 = vrsqrt.pop %v1324
    %v1326 = vstv %s1323
    %v1327 = vmul.f32 %v1326, %v1325
    %v1328 = vmul.f32 %v1273, %v1327
    %v1329 = vmul.f32 %v1274, %v1327
    %v1330 = vmul.f32 %v1275, %v1327
    %v1331 = vmul.f32 %v1276, %v1327
    %v1332 = vmul.f32 %v1277, %v1327
    %v1333 = vmul.f32 %v1278, %v1327
    %v1334 = vmul.f32 %v1279, %v1327
    %v1335 = vmul.f32 %v1280, %v1327
    %s1336 = sld [smem:[#allocation5 + %s1212]]
    %v1337 = vstv %s1336
    %v1338 = vadd.f32 %v1328, %v1337
    %v1339 = vadd.f32 %v1329, %v1337
    %v1340 = vadd.f32 %v1330, %v1337
    %v1341 = vadd.f32 %v1331, %v1337
    %v1342 = vadd.f32 %v1332, %v1337
    %v1343 = vadd.f32 %v1333, %v1337
    %v1344 = vadd.f32 %v1334, %v1337
    %v1345 = vadd.f32 %v1335, %v1337
    %s1346 = scalar_lea.vmem [#allocation9], 80
    %v1347 = vld [vmem:[%s1346] sm:$0xff]
    %v1348 = vld [vmem:[%s1346 + $0x8] sm:$0xff]
    %v1349 = vld [vmem:[%s1346 + $0x100] sm:$0xff]
    %v1350 = vld [vmem:[%s1346 + $0x108] sm:$0xff]
    %v1351 = vmul.f32 %v1347, %v1339
    %v1352 = vmul.f32 %v1348, %v1341
    %v1353 = vmul.f32 %v1349, %v1343
    %v1354 = vmul.f32 %v1350, %v1345
    %v1355 = vadd.f32 %v1338, %v1351
    %v1356 = vadd.f32 %v1340, %v1352
    %v1357 = vadd.f32 %v1342, %v1353
    %v1358 = vadd.f32 %v1344, %v1354
    %s1359 = scalar_lea.vmem [#allocation11], 80
    %1360 = vst [vmem:[%s1359] sm:$0xff] %v1355
    %1361 = vst [vmem:[%s1359 + $0x8] sm:$0xff] %v1356
    %1362 = vst [vmem:[%s1359 + $0x100] sm:$0xff] %v1357
    %1363 = vst [vmem:[%s1359 + $0x108] sm:$0xff] %v1358
    %s1364 = sadd.s32 %s55, 6
    %s1365 = smul.u32 %s1364, 4
    %s1366 = sld [smem:[#allocation3 + %s1365]]
    %s1367 = sadd.s32 %s1365, 1
    %s1368 = sld [smem:[#allocation3 + %s1367]]
    %s1369 = sadd.s32 %s1365, 2
    %s1370 = sld [smem:[#allocation3 + %s1369]]
    %s1371 = sadd.s32 %s1365, 3
    %s1372 = sld [smem:[#allocation3 + %s1371]]
    %v1373 = vstv %s1366
    %v1374 = vmul.f32 %v82, %v1373
    %v1375 = vmul.f32 %v83, %v1373
    %v1376 = vmul.f32 %v84, %v1373
    %v1377 = vmul.f32 %v85, %v1373
    %v1378 = vmul.f32 %v86, %v1373
    %v1379 = vmul.f32 %v87, %v1373
    %v1380 = vmul.f32 %v88, %v1373
    %v1381 = vmul.f32 %v89, %v1373
    %v1382 = vstv %s1368
    %v1383 = vmul.f32 %v117, %v1382
    %v1384 = vmul.f32 %v118, %v1382
    %v1385 = vmul.f32 %v119, %v1382
    %v1386 = vmul.f32 %v120, %v1382
    %v1387 = vmul.f32 %v121, %v1382
    %v1388 = vmul.f32 %v122, %v1382
    %v1389 = vmul.f32 %v123, %v1382
    %v1390 = vmul.f32 %v124, %v1382
    %v1391 = vadd.f32 %v1374, %v1383
    %v1392 = vadd.f32 %v1375, %v1384
    %v1393 = vadd.f32 %v1376, %v1385
    %v1394 = vadd.f32 %v1377, %v1386
    %v1395 = vadd.f32 %v1378, %v1387
    %v1396 = vadd.f32 %v1379, %v1388
    %v1397 = vadd.f32 %v1380, %v1389
    %v1398 = vadd.f32 %v1381, %v1390
    %v1399 = vstv %s1370
    %v1400 = vmul.f32 %v152, %v1399
    %v1401 = vmul.f32 %v153, %v1399
    %v1402 = vmul.f32 %v154, %v1399
    %v1403 = vmul.f32 %v155, %v1399
    %v1404 = vmul.f32 %v156, %v1399
    %v1405 = vmul.f32 %v157, %v1399
    %v1406 = vmul.f32 %v158, %v1399
    %v1407 = vmul.f32 %v159, %v1399
    %v1408 = vadd.f32 %v1391, %v1400
    %v1409 = vadd.f32 %v1392, %v1401
    %v1410 = vadd.f32 %v1393, %v1402
    %v1411 = vadd.f32 %v1394, %v1403
    %v1412 = vadd.f32 %v1395, %v1404
    %v1413 = vadd.f32 %v1396, %v1405
    %v1414 = vadd.f32 %v1397, %v1406
    %v1415 = vadd.f32 %v1398, %v1407
    %v1416 = vstv %s1372
    %v1417 = vmul.f32 %v187, %v1416
    %v1418 = vmul.f32 %v188, %v1416
    %v1419 = vmul.f32 %v189, %v1416
    %v1420 = vmul.f32 %v190, %v1416
    %v1421 = vmul.f32 %v191, %v1416
    %v1422 = vmul.f32 %v192, %v1416
    %v1423 = vmul.f32 %v193, %v1416
    %v1424 = vmul.f32 %v194, %v1416
    %v1425 = vadd.f32 %v1408, %v1417
    %v1426 = vadd.f32 %v1409, %v1418
    %v1427 = vadd.f32 %v1410, %v1419
    %v1428 = vadd.f32 %v1411, %v1420
    %v1429 = vadd.f32 %v1412, %v1421
    %v1430 = vadd.f32 %v1413, %v1422
    %v1431 = vadd.f32 %v1414, %v1423
    %v1432 = vadd.f32 %v1415, %v1424
    %s1433 = smul.f32 %s1366, %s1366
    %v1434 = vstv %s1433
    %v1435 = vmul.f32 %v220, %v1434
    %s1436 = smul.f32 %s1368, %s1368
    %v1437 = vstv %s1436
    %v1438 = vmul.f32 %v324, %v1437
    %v1439 = vadd.f32 %v1435, %v1438
    %s1440 = smul.f32 %s1370, %s1370
    %v1441 = vstv %s1440
    %v1442 = vmul.f32 %v402, %v1441
    %v1443 = vadd.f32 %v1439, %v1442
    %s1444 = smul.f32 %s1372, %s1372
    %v1445 = vstv %s1444
    %v1446 = vmul.f32 %v454, %v1445
    %v1447 = vadd.f32 %v1443, %v1446
    %s1448 = smul.f32 %s1366, 2.0
    %s1449 = smul.f32 %s1448, %s1368
    %v1450 = vstv %s1449
    %v1451 = vmul.f32 %v246, %v1450
    %v1452 = vadd.f32 %v1447, %v1451
    %s1453 = smul.f32 %s1448, %s1370
    %v1454 = vstv %s1453
    %v1455 = vmul.f32 %v272, %v1454
    %v1456 = vadd.f32 %v1452, %v1455
    %s1457 = smul.f32 %s1448, %s1372
    %v1458 = vstv %s1457
    %v1459 = vmul.f32 %v298, %v1458
    %v1460 = vadd.f32 %v1456, %v1459
    %s1461 = smul.f32 %s1368, 2.0
    %s1462 = smul.f32 %s1461, %s1370
    %v1463 = vstv %s1462
    %v1464 = vmul.f32 %v350, %v1463
    %v1465 = vadd.f32 %v1460, %v1464
    %s1466 = smul.f32 %s1461, %s1372
    %v1467 = vstv %s1466
    %v1468 = vmul.f32 %v376, %v1467
    %v1469 = vadd.f32 %v1465, %v1468
    %s1470 = smul.f32 %s1370, 2.0
    %s1471 = smul.f32 %s1470, %s1372
    %v1472 = vstv %s1471
    %v1473 = vmul.f32 %v428, %v1472
    %v1474 = vadd.f32 %v1469, %v1473
    %s1475 = sld [smem:[#allocation4 + %s1364]]
    %v1476 = vadd.f32 %v1474, 1e-05
    %v1477 = vrsqrt.pop %v1476
    %v1478 = vstv %s1475
    %v1479 = vmul.f32 %v1478, %v1477
    %v1480 = vmul.f32 %v1425, %v1479
    %v1481 = vmul.f32 %v1426, %v1479
    %v1482 = vmul.f32 %v1427, %v1479
    %v1483 = vmul.f32 %v1428, %v1479
    %v1484 = vmul.f32 %v1429, %v1479
    %v1485 = vmul.f32 %v1430, %v1479
    %v1486 = vmul.f32 %v1431, %v1479
    %v1487 = vmul.f32 %v1432, %v1479
    %s1488 = sld [smem:[#allocation5 + %s1364]]
    %v1489 = vstv %s1488
    %v1490 = vadd.f32 %v1480, %v1489
    %v1491 = vadd.f32 %v1481, %v1489
    %v1492 = vadd.f32 %v1482, %v1489
    %v1493 = vadd.f32 %v1483, %v1489
    %v1494 = vadd.f32 %v1484, %v1489
    %v1495 = vadd.f32 %v1485, %v1489
    %v1496 = vadd.f32 %v1486, %v1489
    %v1497 = vadd.f32 %v1487, %v1489
    %s1498 = scalar_lea.vmem [#allocation9], 96
    %v1499 = vld [vmem:[%s1498] sm:$0xff]
    %v1500 = vld [vmem:[%s1498 + $0x8] sm:$0xff]
    %v1501 = vld [vmem:[%s1498 + $0x100] sm:$0xff]
    %v1502 = vld [vmem:[%s1498 + $0x108] sm:$0xff]
    %v1503 = vmul.f32 %v1499, %v1491
    %v1504 = vmul.f32 %v1500, %v1493
    %v1505 = vmul.f32 %v1501, %v1495
    %v1506 = vmul.f32 %v1502, %v1497
    %v1507 = vadd.f32 %v1490, %v1503
    %v1508 = vadd.f32 %v1492, %v1504
    %v1509 = vadd.f32 %v1494, %v1505
    %v1510 = vadd.f32 %v1496, %v1506
    %s1511 = scalar_lea.vmem [#allocation11], 96
    %1512 = vst [vmem:[%s1511] sm:$0xff] %v1507
    %1513 = vst [vmem:[%s1511 + $0x8] sm:$0xff] %v1508
    %1514 = vst [vmem:[%s1511 + $0x100] sm:$0xff] %v1509
    %1515 = vst [vmem:[%s1511 + $0x108] sm:$0xff] %v1510
    %s1516 = sadd.s32 %s55, 7
    %s1517 = smul.u32 %s1516, 4
    %s1518 = sld [smem:[#allocation3 + %s1517]]
    %s1519 = sadd.s32 %s1517, 1
    %s1520 = sld [smem:[#allocation3 + %s1519]]
    %s1521 = sadd.s32 %s1517, 2
    %s1522 = sld [smem:[#allocation3 + %s1521]]
    %s1523 = sadd.s32 %s1517, 3
    %s1524 = sld [smem:[#allocation3 + %s1523]]
    %v1525 = vstv %s1518
    %v1526 = vmul.f32 %v82, %v1525
    %v1527 = vmul.f32 %v83, %v1525
    %v1528 = vmul.f32 %v84, %v1525
    %v1529 = vmul.f32 %v85, %v1525
    %v1530 = vmul.f32 %v86, %v1525
    %v1531 = vmul.f32 %v87, %v1525
    %v1532 = vmul.f32 %v88, %v1525
    %v1533 = vmul.f32 %v89, %v1525
    %v1534 = vstv %s1520
    %v1535 = vmul.f32 %v117, %v1534
    %v1536 = vmul.f32 %v118, %v1534
    %v1537 = vmul.f32 %v119, %v1534
    %v1538 = vmul.f32 %v120, %v1534
    %v1539 = vmul.f32 %v121, %v1534
    %v1540 = vmul.f32 %v122, %v1534
    %v1541 = vmul.f32 %v123, %v1534
    %v1542 = vmul.f32 %v124, %v1534
    %v1543 = vadd.f32 %v1526, %v1535
    %v1544 = vadd.f32 %v1527, %v1536
    %v1545 = vadd.f32 %v1528, %v1537
    %v1546 = vadd.f32 %v1529, %v1538
    %v1547 = vadd.f32 %v1530, %v1539
    %v1548 = vadd.f32 %v1531, %v1540
    %v1549 = vadd.f32 %v1532, %v1541
    %v1550 = vadd.f32 %v1533, %v1542
    %v1551 = vstv %s1522
    %v1552 = vmul.f32 %v152, %v1551
    %v1553 = vmul.f32 %v153, %v1551
    %v1554 = vmul.f32 %v154, %v1551
    %v1555 = vmul.f32 %v155, %v1551
    %v1556 = vmul.f32 %v156, %v1551
    %v1557 = vmul.f32 %v157, %v1551
    %v1558 = vmul.f32 %v158, %v1551
    %v1559 = vmul.f32 %v159, %v1551
    %v1560 = vadd.f32 %v1543, %v1552
    %v1561 = vadd.f32 %v1544, %v1553
    %v1562 = vadd.f32 %v1545, %v1554
    %v1563 = vadd.f32 %v1546, %v1555
    %v1564 = vadd.f32 %v1547, %v1556
    %v1565 = vadd.f32 %v1548, %v1557
    %v1566 = vadd.f32 %v1549, %v1558
    %v1567 = vadd.f32 %v1550, %v1559
    %v1568 = vstv %s1524
    %v1569 = vmul.f32 %v187, %v1568
    %v1570 = vmul.f32 %v188, %v1568
    %v1571 = vmul.f32 %v189, %v1568
    %v1572 = vmul.f32 %v190, %v1568
    %v1573 = vmul.f32 %v191, %v1568
    %v1574 = vmul.f32 %v192, %v1568
    %v1575 = vmul.f32 %v193, %v1568
    %v1576 = vmul.f32 %v194, %v1568
    %v1577 = vadd.f32 %v1560, %v1569
    %v1578 = vadd.f32 %v1561, %v1570
    %v1579 = vadd.f32 %v1562, %v1571
    %v1580 = vadd.f32 %v1563, %v1572
    %v1581 = vadd.f32 %v1564, %v1573
    %v1582 = vadd.f32 %v1565, %v1574
    %v1583 = vadd.f32 %v1566, %v1575
    %v1584 = vadd.f32 %v1567, %v1576
    %s1585 = smul.f32 %s1518, %s1518
    %v1586 = vstv %s1585
    %v1587 = vmul.f32 %v220, %v1586
    %s1588 = smul.f32 %s1520, %s1520
    %v1589 = vstv %s1588
    %v1590 = vmul.f32 %v324, %v1589
    %v1591 = vadd.f32 %v1587, %v1590
    %s1592 = smul.f32 %s1522, %s1522
    %v1593 = vstv %s1592
    %v1594 = vmul.f32 %v402, %v1593
    %v1595 = vadd.f32 %v1591, %v1594
    %s1596 = smul.f32 %s1524, %s1524
    %v1597 = vstv %s1596
    %v1598 = vmul.f32 %v454, %v1597
    %v1599 = vadd.f32 %v1595, %v1598
    %s1600 = smul.f32 %s1518, 2.0
    %s1601 = smul.f32 %s1600, %s1520
    %v1602 = vstv %s1601
    %v1603 = vmul.f32 %v246, %v1602
    %v1604 = vadd.f32 %v1599, %v1603
    %s1605 = smul.f32 %s1600, %s1522
    %v1606 = vstv %s1605
    %v1607 = vmul.f32 %v272, %v1606
    %v1608 = vadd.f32 %v1604, %v1607
    %s1609 = smul.f32 %s1600, %s1524
    %v1610 = vstv %s1609
    %v1611 = vmul.f32 %v298, %v1610
    %v1612 = vadd.f32 %v1608, %v1611
    %s1613 = smul.f32 %s1520, 2.0
    %s1614 = smul.f32 %s1613, %s1522
    %v1615 = vstv %s1614
    %v1616 = vmul.f32 %v350, %v1615
    %v1617 = vadd.f32 %v1612, %v1616
    %s1618 = smul.f32 %s1613, %s1524
    %v1619 = vstv %s1618
    %v1620 = vmul.f32 %v376, %v1619
    %v1621 = vadd.f32 %v1617, %v1620
    %s1622 = smul.f32 %s1522, 2.0
    %s1623 = smul.f32 %s1622, %s1524
    %v1624 = vstv %s1623
    %v1625 = vmul.f32 %v428, %v1624
    %v1626 = vadd.f32 %v1621, %v1625
    %s1627 = sld [smem:[#allocation4 + %s1516]]
    %v1628 = vadd.f32 %v1626, 1e-05
    %v1629 = vrsqrt.pop %v1628
    %v1630 = vstv %s1627
    %v1631 = vmul.f32 %v1630, %v1629
    %v1632 = vmul.f32 %v1577, %v1631
    %v1633 = vmul.f32 %v1578, %v1631
    %v1634 = vmul.f32 %v1579, %v1631
    %v1635 = vmul.f32 %v1580, %v1631
    %v1636 = vmul.f32 %v1581, %v1631
    %v1637 = vmul.f32 %v1582, %v1631
    %v1638 = vmul.f32 %v1583, %v1631
    %v1639 = vmul.f32 %v1584, %v1631
    %s1640 = sld [smem:[#allocation5 + %s1516]]
    %v1641 = vstv %s1640
    %v1642 = vadd.f32 %v1632, %v1641
    %v1643 = vadd.f32 %v1633, %v1641
    %v1644 = vadd.f32 %v1634, %v1641
    %v1645 = vadd.f32 %v1635, %v1641
    %v1646 = vadd.f32 %v1636, %v1641
    %v1647 = vadd.f32 %v1637, %v1641
    %v1648 = vadd.f32 %v1638, %v1641
    %v1649 = vadd.f32 %v1639, %v1641
    %s1650 = scalar_lea.vmem [#allocation9], 112
    %v1651 = vld [vmem:[%s1650] sm:$0xff]
    %v1652 = vld [vmem:[%s1650 + $0x8] sm:$0xff]
    %v1653 = vld [vmem:[%s1650 + $0x100] sm:$0xff]
    %v1654 = vld [vmem:[%s1650 + $0x108] sm:$0xff]
    %v1655 = vmul.f32 %v1651, %v1643
    %v1656 = vmul.f32 %v1652, %v1645
    %v1657 = vmul.f32 %v1653, %v1647
    %v1658 = vmul.f32 %v1654, %v1649
    %v1659 = vadd.f32 %v1642, %v1655
    %v1660 = vadd.f32 %v1644, %v1656
    %v1661 = vadd.f32 %v1646, %v1657
    %v1662 = vadd.f32 %v1648, %v1658
    %s1663 = scalar_lea.vmem [#allocation11], 112
    %1664 = vst [vmem:[%s1663] sm:$0xff] %v1659
    %1665 = vst [vmem:[%s1663 + $0x8] sm:$0xff] %v1660
    %1666 = vst [vmem:[%s1663 + $0x100] sm:$0xff] %v1661
    %1667 = vst [vmem:[%s1663 + $0x108] sm:$0xff] %v1662
    %s1668 = sadd.s32 %s55, 8
    %s1669 = smul.u32 %s1668, 4
    %s1670 = sld [smem:[#allocation3 + %s1669]]
    %s1671 = sadd.s32 %s1669, 1
    %s1672 = sld [smem:[#allocation3 + %s1671]]
    %s1673 = sadd.s32 %s1669, 2
    %s1674 = sld [smem:[#allocation3 + %s1673]]
    %s1675 = sadd.s32 %s1669, 3
    %s1676 = sld [smem:[#allocation3 + %s1675]]
    %v1677 = vstv %s1670
    %v1678 = vmul.f32 %v82, %v1677
    %v1679 = vmul.f32 %v83, %v1677
    %v1680 = vmul.f32 %v84, %v1677
    %v1681 = vmul.f32 %v85, %v1677
    %v1682 = vmul.f32 %v86, %v1677
    %v1683 = vmul.f32 %v87, %v1677
    %v1684 = vmul.f32 %v88, %v1677
    %v1685 = vmul.f32 %v89, %v1677
    %v1686 = vstv %s1672
    %v1687 = vmul.f32 %v117, %v1686
    %v1688 = vmul.f32 %v118, %v1686
    %v1689 = vmul.f32 %v119, %v1686
    %v1690 = vmul.f32 %v120, %v1686
    %v1691 = vmul.f32 %v121, %v1686
    %v1692 = vmul.f32 %v122, %v1686
    %v1693 = vmul.f32 %v123, %v1686
    %v1694 = vmul.f32 %v124, %v1686
    %v1695 = vadd.f32 %v1678, %v1687
    %v1696 = vadd.f32 %v1679, %v1688
    %v1697 = vadd.f32 %v1680, %v1689
    %v1698 = vadd.f32 %v1681, %v1690
    %v1699 = vadd.f32 %v1682, %v1691
    %v1700 = vadd.f32 %v1683, %v1692
    %v1701 = vadd.f32 %v1684, %v1693
    %v1702 = vadd.f32 %v1685, %v1694
    %v1703 = vstv %s1674
    %v1704 = vmul.f32 %v152, %v1703
    %v1705 = vmul.f32 %v153, %v1703
    %v1706 = vmul.f32 %v154, %v1703
    %v1707 = vmul.f32 %v155, %v1703
    %v1708 = vmul.f32 %v156, %v1703
    %v1709 = vmul.f32 %v157, %v1703
    %v1710 = vmul.f32 %v158, %v1703
    %v1711 = vmul.f32 %v159, %v1703
    %v1712 = vadd.f32 %v1695, %v1704
    %v1713 = vadd.f32 %v1696, %v1705
    %v1714 = vadd.f32 %v1697, %v1706
    %v1715 = vadd.f32 %v1698, %v1707
    %v1716 = vadd.f32 %v1699, %v1708
    %v1717 = vadd.f32 %v1700, %v1709
    %v1718 = vadd.f32 %v1701, %v1710
    %v1719 = vadd.f32 %v1702, %v1711
    %v1720 = vstv %s1676
    %v1721 = vmul.f32 %v187, %v1720
    %v1722 = vmul.f32 %v188, %v1720
    %v1723 = vmul.f32 %v189, %v1720
    %v1724 = vmul.f32 %v190, %v1720
    %v1725 = vmul.f32 %v191, %v1720
    %v1726 = vmul.f32 %v192, %v1720
    %v1727 = vmul.f32 %v193, %v1720
    %v1728 = vmul.f32 %v194, %v1720
    %v1729 = vadd.f32 %v1712, %v1721
    %v1730 = vadd.f32 %v1713, %v1722
    %v1731 = vadd.f32 %v1714, %v1723
    %v1732 = vadd.f32 %v1715, %v1724
    %v1733 = vadd.f32 %v1716, %v1725
    %v1734 = vadd.f32 %v1717, %v1726
    %v1735 = vadd.f32 %v1718, %v1727
    %v1736 = vadd.f32 %v1719, %v1728
    %s1737 = smul.f32 %s1670, %s1670
    %v1738 = vstv %s1737
    %v1739 = vmul.f32 %v220, %v1738
    %s1740 = smul.f32 %s1672, %s1672
    %v1741 = vstv %s1740
    %v1742 = vmul.f32 %v324, %v1741
    %v1743 = vadd.f32 %v1739, %v1742
    %s1744 = smul.f32 %s1674, %s1674
    %v1745 = vstv %s1744
    %v1746 = vmul.f32 %v402, %v1745
    %v1747 = vadd.f32 %v1743, %v1746
    %s1748 = smul.f32 %s1676, %s1676
    %v1749 = vstv %s1748
    %v1750 = vmul.f32 %v454, %v1749
    %v1751 = vadd.f32 %v1747, %v1750
    %s1752 = smul.f32 %s1670, 2.0
    %s1753 = smul.f32 %s1752, %s1672
    %v1754 = vstv %s1753
    %v1755 = vmul.f32 %v246, %v1754
    %v1756 = vadd.f32 %v1751, %v1755
    %s1757 = smul.f32 %s1752, %s1674
    %v1758 = vstv %s1757
    %v1759 = vmul.f32 %v272, %v1758
    %v1760 = vadd.f32 %v1756, %v1759
    %s1761 = smul.f32 %s1752, %s1676
    %v1762 = vstv %s1761
    %v1763 = vmul.f32 %v298, %v1762
    %v1764 = vadd.f32 %v1760, %v1763
    %s1765 = smul.f32 %s1672, 2.0
    %s1766 = smul.f32 %s1765, %s1674
    %v1767 = vstv %s1766
    %v1768 = vmul.f32 %v350, %v1767
    %v1769 = vadd.f32 %v1764, %v1768
    %s1770 = smul.f32 %s1765, %s1676
    %v1771 = vstv %s1770
    %v1772 = vmul.f32 %v376, %v1771
    %v1773 = vadd.f32 %v1769, %v1772
    %s1774 = smul.f32 %s1674, 2.0
    %s1775 = smul.f32 %s1774, %s1676
    %v1776 = vstv %s1775
    %v1777 = vmul.f32 %v428, %v1776
    %v1778 = vadd.f32 %v1773, %v1777
    %s1779 = sld [smem:[#allocation4 + %s1668]]
    %v1780 = vadd.f32 %v1778, 1e-05
    %v1781 = vrsqrt.pop %v1780
    %v1782 = vstv %s1779
    %v1783 = vmul.f32 %v1782, %v1781
    %v1784 = vmul.f32 %v1729, %v1783
    %v1785 = vmul.f32 %v1730, %v1783
    %v1786 = vmul.f32 %v1731, %v1783
    %v1787 = vmul.f32 %v1732, %v1783
    %v1788 = vmul.f32 %v1733, %v1783
    %v1789 = vmul.f32 %v1734, %v1783
    %v1790 = vmul.f32 %v1735, %v1783
    %v1791 = vmul.f32 %v1736, %v1783
    %s1792 = sld [smem:[#allocation5 + %s1668]]
    %v1793 = vstv %s1792
    %v1794 = vadd.f32 %v1784, %v1793
    %v1795 = vadd.f32 %v1785, %v1793
    %v1796 = vadd.f32 %v1786, %v1793
    %v1797 = vadd.f32 %v1787, %v1793
    %v1798 = vadd.f32 %v1788, %v1793
    %v1799 = vadd.f32 %v1789, %v1793
    %v1800 = vadd.f32 %v1790, %v1793
    %v1801 = vadd.f32 %v1791, %v1793
    %s1802 = scalar_lea.vmem [#allocation9], 128
    %v1803 = vld [vmem:[%s1802] sm:$0xff]
    %v1804 = vld [vmem:[%s1802 + $0x8] sm:$0xff]
    %v1805 = vld [vmem:[%s1802 + $0x100] sm:$0xff]
    %v1806 = vld [vmem:[%s1802 + $0x108] sm:$0xff]
    %v1807 = vmul.f32 %v1803, %v1795
    %v1808 = vmul.f32 %v1804, %v1797
    %v1809 = vmul.f32 %v1805, %v1799
    %v1810 = vmul.f32 %v1806, %v1801
    %v1811 = vadd.f32 %v1794, %v1807
    %v1812 = vadd.f32 %v1796, %v1808
    %v1813 = vadd.f32 %v1798, %v1809
    %v1814 = vadd.f32 %v1800, %v1810
    %s1815 = scalar_lea.vmem [#allocation11], 128
    %1816 = vst [vmem:[%s1815] sm:$0xff] %v1811
    %1817 = vst [vmem:[%s1815 + $0x8] sm:$0xff] %v1812
    %1818 = vst [vmem:[%s1815 + $0x100] sm:$0xff] %v1813
    %1819 = vst [vmem:[%s1815 + $0x108] sm:$0xff] %v1814
    %s1820 = sadd.s32 %s55, 9
    %s1821 = smul.u32 %s1820, 4
    %s1822 = sld [smem:[#allocation3 + %s1821]]
    %s1823 = sadd.s32 %s1821, 1
    %s1824 = sld [smem:[#allocation3 + %s1823]]
    %s1825 = sadd.s32 %s1821, 2
    %s1826 = sld [smem:[#allocation3 + %s1825]]
    %s1827 = sadd.s32 %s1821, 3
    %s1828 = sld [smem:[#allocation3 + %s1827]]
    %v1829 = vstv %s1822
    %v1830 = vmul.f32 %v82, %v1829
    %v1831 = vmul.f32 %v83, %v1829
    %v1832 = vmul.f32 %v84, %v1829
    %v1833 = vmul.f32 %v85, %v1829
    %v1834 = vmul.f32 %v86, %v1829
    %v1835 = vmul.f32 %v87, %v1829
    %v1836 = vmul.f32 %v88, %v1829
    %v1837 = vmul.f32 %v89, %v1829
    %v1838 = vstv %s1824
    %v1839 = vmul.f32 %v117, %v1838
    %v1840 = vmul.f32 %v118, %v1838
    %v1841 = vmul.f32 %v119, %v1838
    %v1842 = vmul.f32 %v120, %v1838
    %v1843 = vmul.f32 %v121, %v1838
    %v1844 = vmul.f32 %v122, %v1838
    %v1845 = vmul.f32 %v123, %v1838
    %v1846 = vmul.f32 %v124, %v1838
    %v1847 = vadd.f32 %v1830, %v1839
    %v1848 = vadd.f32 %v1831, %v1840
    %v1849 = vadd.f32 %v1832, %v1841
    %v1850 = vadd.f32 %v1833, %v1842
    %v1851 = vadd.f32 %v1834, %v1843
    %v1852 = vadd.f32 %v1835, %v1844
    %v1853 = vadd.f32 %v1836, %v1845
    %v1854 = vadd.f32 %v1837, %v1846
    %v1855 = vstv %s1826
    %v1856 = vmul.f32 %v152, %v1855
    %v1857 = vmul.f32 %v153, %v1855
    %v1858 = vmul.f32 %v154, %v1855
    %v1859 = vmul.f32 %v155, %v1855
    %v1860 = vmul.f32 %v156, %v1855
    %v1861 = vmul.f32 %v157, %v1855
    %v1862 = vmul.f32 %v158, %v1855
    %v1863 = vmul.f32 %v159, %v1855
    %v1864 = vadd.f32 %v1847, %v1856
    %v1865 = vadd.f32 %v1848, %v1857
    %v1866 = vadd.f32 %v1849, %v1858
    %v1867 = vadd.f32 %v1850, %v1859
    %v1868 = vadd.f32 %v1851, %v1860
    %v1869 = vadd.f32 %v1852, %v1861
    %v1870 = vadd.f32 %v1853, %v1862
    %v1871 = vadd.f32 %v1854, %v1863
    %v1872 = vstv %s1828
    %v1873 = vmul.f32 %v187, %v1872
    %v1874 = vmul.f32 %v188, %v1872
    %v1875 = vmul.f32 %v189, %v1872
    %v1876 = vmul.f32 %v190, %v1872
    %v1877 = vmul.f32 %v191, %v1872
    %v1878 = vmul.f32 %v192, %v1872
    %v1879 = vmul.f32 %v193, %v1872
    %v1880 = vmul.f32 %v194, %v1872
    %v1881 = vadd.f32 %v1864, %v1873
    %v1882 = vadd.f32 %v1865, %v1874
    %v1883 = vadd.f32 %v1866, %v1875
    %v1884 = vadd.f32 %v1867, %v1876
    %v1885 = vadd.f32 %v1868, %v1877
    %v1886 = vadd.f32 %v1869, %v1878
    %v1887 = vadd.f32 %v1870, %v1879
    %v1888 = vadd.f32 %v1871, %v1880
    %s1889 = smul.f32 %s1822, %s1822
    %v1890 = vstv %s1889
    %v1891 = vmul.f32 %v220, %v1890
    %s1892 = smul.f32 %s1824, %s1824
    %v1893 = vstv %s1892
    %v1894 = vmul.f32 %v324, %v1893
    %v1895 = vadd.f32 %v1891, %v1894
    %s1896 = smul.f32 %s1826, %s1826
    %v1897 = vstv %s1896
    %v1898 = vmul.f32 %v402, %v1897
    %v1899 = vadd.f32 %v1895, %v1898
    %s1900 = smul.f32 %s1828, %s1828
    %v1901 = vstv %s1900
    %v1902 = vmul.f32 %v454, %v1901
    %v1903 = vadd.f32 %v1899, %v1902
    %s1904 = smul.f32 %s1822, 2.0
    %s1905 = smul.f32 %s1904, %s1824
    %v1906 = vstv %s1905
    %v1907 = vmul.f32 %v246, %v1906
    %v1908 = vadd.f32 %v1903, %v1907
    %s1909 = smul.f32 %s1904, %s1826
    %v1910 = vstv %s1909
    %v1911 = vmul.f32 %v272, %v1910
    %v1912 = vadd.f32 %v1908, %v1911
    %s1913 = smul.f32 %s1904, %s1828
    %v1914 = vstv %s1913
    %v1915 = vmul.f32 %v298, %v1914
    %v1916 = vadd.f32 %v1912, %v1915
    %s1917 = smul.f32 %s1824, 2.0
    %s1918 = smul.f32 %s1917, %s1826
    %v1919 = vstv %s1918
    %v1920 = vmul.f32 %v350, %v1919
    %v1921 = vadd.f32 %v1916, %v1920
    %s1922 = smul.f32 %s1917, %s1828
    %v1923 = vstv %s1922
    %v1924 = vmul.f32 %v376, %v1923
    %v1925 = vadd.f32 %v1921, %v1924
    %s1926 = smul.f32 %s1826, 2.0
    %s1927 = smul.f32 %s1926, %s1828
    %v1928 = vstv %s1927
    %v1929 = vmul.f32 %v428, %v1928
    %v1930 = vadd.f32 %v1925, %v1929
    %s1931 = sld [smem:[#allocation4 + %s1820]]
    %v1932 = vadd.f32 %v1930, 1e-05
    %v1933 = vrsqrt.pop %v1932
    %v1934 = vstv %s1931
    %v1935 = vmul.f32 %v1934, %v1933
    %v1936 = vmul.f32 %v1881, %v1935
    %v1937 = vmul.f32 %v1882, %v1935
    %v1938 = vmul.f32 %v1883, %v1935
    %v1939 = vmul.f32 %v1884, %v1935
    %v1940 = vmul.f32 %v1885, %v1935
    %v1941 = vmul.f32 %v1886, %v1935
    %v1942 = vmul.f32 %v1887, %v1935
    %v1943 = vmul.f32 %v1888, %v1935
    %s1944 = sld [smem:[#allocation5 + %s1820]]
    %v1945 = vstv %s1944
    %v1946 = vadd.f32 %v1936, %v1945
    %v1947 = vadd.f32 %v1937, %v1945
    %v1948 = vadd.f32 %v1938, %v1945
    %v1949 = vadd.f32 %v1939, %v1945
    %v1950 = vadd.f32 %v1940, %v1945
    %v1951 = vadd.f32 %v1941, %v1945
    %v1952 = vadd.f32 %v1942, %v1945
    %v1953 = vadd.f32 %v1943, %v1945
    %s1954 = scalar_lea.vmem [#allocation9], 144
    %v1955 = vld [vmem:[%s1954] sm:$0xff]
    %v1956 = vld [vmem:[%s1954 + $0x8] sm:$0xff]
    %v1957 = vld [vmem:[%s1954 + $0x100] sm:$0xff]
    %v1958 = vld [vmem:[%s1954 + $0x108] sm:$0xff]
    %v1959 = vmul.f32 %v1955, %v1947
    %v1960 = vmul.f32 %v1956, %v1949
    %v1961 = vmul.f32 %v1957, %v1951
    %v1962 = vmul.f32 %v1958, %v1953
    %v1963 = vadd.f32 %v1946, %v1959
    %v1964 = vadd.f32 %v1948, %v1960
    %v1965 = vadd.f32 %v1950, %v1961
    %v1966 = vadd.f32 %v1952, %v1962
    %s1967 = scalar_lea.vmem [#allocation11], 144
    %1968 = vst [vmem:[%s1967] sm:$0xff] %v1963
    %1969 = vst [vmem:[%s1967 + $0x8] sm:$0xff] %v1964
    %1970 = vst [vmem:[%s1967 + $0x100] sm:$0xff] %v1965
    %1971 = vst [vmem:[%s1967 + $0x108] sm:$0xff] %v1966
    %s1972 = sadd.s32 %s55, 10
    %s1973 = smul.u32 %s1972, 4
    %s1974 = sld [smem:[#allocation3 + %s1973]]
    %s1975 = sadd.s32 %s1973, 1
    %s1976 = sld [smem:[#allocation3 + %s1975]]
    %s1977 = sadd.s32 %s1973, 2
    %s1978 = sld [smem:[#allocation3 + %s1977]]
    %s1979 = sadd.s32 %s1973, 3
    %s1980 = sld [smem:[#allocation3 + %s1979]]
    %v1981 = vstv %s1974
    %v1982 = vmul.f32 %v82, %v1981
    %v1983 = vmul.f32 %v83, %v1981
    %v1984 = vmul.f32 %v84, %v1981
    %v1985 = vmul.f32 %v85, %v1981
    %v1986 = vmul.f32 %v86, %v1981
    %v1987 = vmul.f32 %v87, %v1981
    %v1988 = vmul.f32 %v88, %v1981
    %v1989 = vmul.f32 %v89, %v1981
    %v1990 = vstv %s1976
    %v1991 = vmul.f32 %v117, %v1990
    %v1992 = vmul.f32 %v118, %v1990
    %v1993 = vmul.f32 %v119, %v1990
    %v1994 = vmul.f32 %v120, %v1990
    %v1995 = vmul.f32 %v121, %v1990
    %v1996 = vmul.f32 %v122, %v1990
    %v1997 = vmul.f32 %v123, %v1990
    %v1998 = vmul.f32 %v124, %v1990
    %v1999 = vadd.f32 %v1982, %v1991
    %v2000 = vadd.f32 %v1983, %v1992
    %v2001 = vadd.f32 %v1984, %v1993
    %v2002 = vadd.f32 %v1985, %v1994
    %v2003 = vadd.f32 %v1986, %v1995
    %v2004 = vadd.f32 %v1987, %v1996
    %v2005 = vadd.f32 %v1988, %v1997
    %v2006 = vadd.f32 %v1989, %v1998
    %v2007 = vstv %s1978
    %v2008 = vmul.f32 %v152, %v2007
    %v2009 = vmul.f32 %v153, %v2007
    %v2010 = vmul.f32 %v154, %v2007
    %v2011 = vmul.f32 %v155, %v2007
    %v2012 = vmul.f32 %v156, %v2007
    %v2013 = vmul.f32 %v157, %v2007
    %v2014 = vmul.f32 %v158, %v2007
    %v2015 = vmul.f32 %v159, %v2007
    %v2016 = vadd.f32 %v1999, %v2008
    %v2017 = vadd.f32 %v2000, %v2009
    %v2018 = vadd.f32 %v2001, %v2010
    %v2019 = vadd.f32 %v2002, %v2011
    %v2020 = vadd.f32 %v2003, %v2012
    %v2021 = vadd.f32 %v2004, %v2013
    %v2022 = vadd.f32 %v2005, %v2014
    %v2023 = vadd.f32 %v2006, %v2015
    %v2024 = vstv %s1980
    %v2025 = vmul.f32 %v187, %v2024
    %v2026 = vmul.f32 %v188, %v2024
    %v2027 = vmul.f32 %v189, %v2024
    %v2028 = vmul.f32 %v190, %v2024
    %v2029 = vmul.f32 %v191, %v2024
    %v2030 = vmul.f32 %v192, %v2024
    %v2031 = vmul.f32 %v193, %v2024
    %v2032 = vmul.f32 %v194, %v2024
    %v2033 = vadd.f32 %v2016, %v2025
    %v2034 = vadd.f32 %v2017, %v2026
    %v2035 = vadd.f32 %v2018, %v2027
    %v2036 = vadd.f32 %v2019, %v2028
    %v2037 = vadd.f32 %v2020, %v2029
    %v2038 = vadd.f32 %v2021, %v2030
    %v2039 = vadd.f32 %v2022, %v2031
    %v2040 = vadd.f32 %v2023, %v2032
    %s2041 = smul.f32 %s1974, %s1974
    %v2042 = vstv %s2041
    %v2043 = vmul.f32 %v220, %v2042
    %s2044 = smul.f32 %s1976, %s1976
    %v2045 = vstv %s2044
    %v2046 = vmul.f32 %v324, %v2045
    %v2047 = vadd.f32 %v2043, %v2046
    %s2048 = smul.f32 %s1978, %s1978
    %v2049 = vstv %s2048
    %v2050 = vmul.f32 %v402, %v2049
    %v2051 = vadd.f32 %v2047, %v2050
    %s2052 = smul.f32 %s1980, %s1980
    %v2053 = vstv %s2052
    %v2054 = vmul.f32 %v454, %v2053
    %v2055 = vadd.f32 %v2051, %v2054
    %s2056 = smul.f32 %s1974, 2.0
    %s2057 = smul.f32 %s2056, %s1976
    %v2058 = vstv %s2057
    %v2059 = vmul.f32 %v246, %v2058
    %v2060 = vadd.f32 %v2055, %v2059
    %s2061 = smul.f32 %s2056, %s1978
    %v2062 = vstv %s2061
    %v2063 = vmul.f32 %v272, %v2062
    %v2064 = vadd.f32 %v2060, %v2063
    %s2065 = smul.f32 %s2056, %s1980
    %v2066 = vstv %s2065
    %v2067 = vmul.f32 %v298, %v2066
    %v2068 = vadd.f32 %v2064, %v2067
    %s2069 = smul.f32 %s1976, 2.0
    %s2070 = smul.f32 %s2069, %s1978
    %v2071 = vstv %s2070
    %v2072 = vmul.f32 %v350, %v2071
    %v2073 = vadd.f32 %v2068, %v2072
    %s2074 = smul.f32 %s2069, %s1980
    %v2075 = vstv %s2074
    %v2076 = vmul.f32 %v376, %v2075
    %v2077 = vadd.f32 %v2073, %v2076
    %s2078 = smul.f32 %s1978, 2.0
    %s2079 = smul.f32 %s2078, %s1980
    %v2080 = vstv %s2079
    %v2081 = vmul.f32 %v428, %v2080
    %v2082 = vadd.f32 %v2077, %v2081
    %s2083 = sld [smem:[#allocation4 + %s1972]]
    %v2084 = vadd.f32 %v2082, 1e-05
    %v2085 = vrsqrt.pop %v2084
    %v2086 = vstv %s2083
    %v2087 = vmul.f32 %v2086, %v2085
    %v2088 = vmul.f32 %v2033, %v2087
    %v2089 = vmul.f32 %v2034, %v2087
    %v2090 = vmul.f32 %v2035, %v2087
    %v2091 = vmul.f32 %v2036, %v2087
    %v2092 = vmul.f32 %v2037, %v2087
    %v2093 = vmul.f32 %v2038, %v2087
    %v2094 = vmul.f32 %v2039, %v2087
    %v2095 = vmul.f32 %v2040, %v2087
    %s2096 = sld [smem:[#allocation5 + %s1972]]
    %v2097 = vstv %s2096
    %v2098 = vadd.f32 %v2088, %v2097
    %v2099 = vadd.f32 %v2089, %v2097
    %v2100 = vadd.f32 %v2090, %v2097
    %v2101 = vadd.f32 %v2091, %v2097
    %v2102 = vadd.f32 %v2092, %v2097
    %v2103 = vadd.f32 %v2093, %v2097
    %v2104 = vadd.f32 %v2094, %v2097
    %v2105 = vadd.f32 %v2095, %v2097
    %s2106 = scalar_lea.vmem [#allocation9], 160
    %v2107 = vld [vmem:[%s2106] sm:$0xff]
    %v2108 = vld [vmem:[%s2106 + $0x8] sm:$0xff]
    %v2109 = vld [vmem:[%s2106 + $0x100] sm:$0xff]
    %v2110 = vld [vmem:[%s2106 + $0x108] sm:$0xff]
    %v2111 = vmul.f32 %v2107, %v2099
    %v2112 = vmul.f32 %v2108, %v2101
    %v2113 = vmul.f32 %v2109, %v2103
    %v2114 = vmul.f32 %v2110, %v2105
    %v2115 = vadd.f32 %v2098, %v2111
    %v2116 = vadd.f32 %v2100, %v2112
    %v2117 = vadd.f32 %v2102, %v2113
    %v2118 = vadd.f32 %v2104, %v2114
    %s2119 = scalar_lea.vmem [#allocation11], 160
    %2120 = vst [vmem:[%s2119] sm:$0xff] %v2115
    %2121 = vst [vmem:[%s2119 + $0x8] sm:$0xff] %v2116
    %2122 = vst [vmem:[%s2119 + $0x100] sm:$0xff] %v2117
    %2123 = vst [vmem:[%s2119 + $0x108] sm:$0xff] %v2118
    %s2124 = sadd.s32 %s55, 11
    %s2125 = smul.u32 %s2124, 4
    %s2126 = sld [smem:[#allocation3 + %s2125]]
    %s2127 = sadd.s32 %s2125, 1
    %s2128 = sld [smem:[#allocation3 + %s2127]]
    %s2129 = sadd.s32 %s2125, 2
    %s2130 = sld [smem:[#allocation3 + %s2129]]
    %s2131 = sadd.s32 %s2125, 3
    %s2132 = sld [smem:[#allocation3 + %s2131]]
    %v2133 = vstv %s2126
    %v2134 = vmul.f32 %v82, %v2133
    %v2135 = vmul.f32 %v83, %v2133
    %v2136 = vmul.f32 %v84, %v2133
    %v2137 = vmul.f32 %v85, %v2133
    %v2138 = vmul.f32 %v86, %v2133
    %v2139 = vmul.f32 %v87, %v2133
    %v2140 = vmul.f32 %v88, %v2133
    %v2141 = vmul.f32 %v89, %v2133
    %v2142 = vstv %s2128
    %v2143 = vmul.f32 %v117, %v2142
    %v2144 = vmul.f32 %v118, %v2142
    %v2145 = vmul.f32 %v119, %v2142
    %v2146 = vmul.f32 %v120, %v2142
    %v2147 = vmul.f32 %v121, %v2142
    %v2148 = vmul.f32 %v122, %v2142
    %v2149 = vmul.f32 %v123, %v2142
    %v2150 = vmul.f32 %v124, %v2142
    %v2151 = vadd.f32 %v2134, %v2143
    %v2152 = vadd.f32 %v2135, %v2144
    %v2153 = vadd.f32 %v2136, %v2145
    %v2154 = vadd.f32 %v2137, %v2146
    %v2155 = vadd.f32 %v2138, %v2147
    %v2156 = vadd.f32 %v2139, %v2148
    %v2157 = vadd.f32 %v2140, %v2149
    %v2158 = vadd.f32 %v2141, %v2150
    %v2159 = vstv %s2130
    %v2160 = vmul.f32 %v152, %v2159
    %v2161 = vmul.f32 %v153, %v2159
    %v2162 = vmul.f32 %v154, %v2159
    %v2163 = vmul.f32 %v155, %v2159
    %v2164 = vmul.f32 %v156, %v2159
    %v2165 = vmul.f32 %v157, %v2159
    %v2166 = vmul.f32 %v158, %v2159
    %v2167 = vmul.f32 %v159, %v2159
    %v2168 = vadd.f32 %v2151, %v2160
    %v2169 = vadd.f32 %v2152, %v2161
    %v2170 = vadd.f32 %v2153, %v2162
    %v2171 = vadd.f32 %v2154, %v2163
    %v2172 = vadd.f32 %v2155, %v2164
    %v2173 = vadd.f32 %v2156, %v2165
    %v2174 = vadd.f32 %v2157, %v2166
    %v2175 = vadd.f32 %v2158, %v2167
    %v2176 = vstv %s2132
    %v2177 = vmul.f32 %v187, %v2176
    %v2178 = vmul.f32 %v188, %v2176
    %v2179 = vmul.f32 %v189, %v2176
    %v2180 = vmul.f32 %v190, %v2176
    %v2181 = vmul.f32 %v191, %v2176
    %v2182 = vmul.f32 %v192, %v2176
    %v2183 = vmul.f32 %v193, %v2176
    %v2184 = vmul.f32 %v194, %v2176
    %v2185 = vadd.f32 %v2168, %v2177
    %v2186 = vadd.f32 %v2169, %v2178
    %v2187 = vadd.f32 %v2170, %v2179
    %v2188 = vadd.f32 %v2171, %v2180
    %v2189 = vadd.f32 %v2172, %v2181
    %v2190 = vadd.f32 %v2173, %v2182
    %v2191 = vadd.f32 %v2174, %v2183
    %v2192 = vadd.f32 %v2175, %v2184
    %s2193 = smul.f32 %s2126, %s2126
    %v2194 = vstv %s2193
    %v2195 = vmul.f32 %v220, %v2194
    %s2196 = smul.f32 %s2128, %s2128
    %v2197 = vstv %s2196
    %v2198 = vmul.f32 %v324, %v2197
    %v2199 = vadd.f32 %v2195, %v2198
    %s2200 = smul.f32 %s2130, %s2130
    %v2201 = vstv %s2200
    %v2202 = vmul.f32 %v402, %v2201
    %v2203 = vadd.f32 %v2199, %v2202
    %s2204 = smul.f32 %s2132, %s2132
    %v2205 = vstv %s2204
    %v2206 = vmul.f32 %v454, %v2205
    %v2207 = vadd.f32 %v2203, %v2206
    %s2208 = smul.f32 %s2126, 2.0
    %s2209 = smul.f32 %s2208, %s2128
    %v2210 = vstv %s2209
    %v2211 = vmul.f32 %v246, %v2210
    %v2212 = vadd.f32 %v2207, %v2211
    %s2213 = smul.f32 %s2208, %s2130
    %v2214 = vstv %s2213
    %v2215 = vmul.f32 %v272, %v2214
    %v2216 = vadd.f32 %v2212, %v2215
    %s2217 = smul.f32 %s2208, %s2132
    %v2218 = vstv %s2217
    %v2219 = vmul.f32 %v298, %v2218
    %v2220 = vadd.f32 %v2216, %v2219
    %s2221 = smul.f32 %s2128, 2.0
    %s2222 = smul.f32 %s2221, %s2130
    %v2223 = vstv %s2222
    %v2224 = vmul.f32 %v350, %v2223
    %v2225 = vadd.f32 %v2220, %v2224
    %s2226 = smul.f32 %s2221, %s2132
    %v2227 = vstv %s2226
    %v2228 = vmul.f32 %v376, %v2227
    %v2229 = vadd.f32 %v2225, %v2228
    %s2230 = smul.f32 %s2130, 2.0
    %s2231 = smul.f32 %s2230, %s2132
    %v2232 = vstv %s2231
    %v2233 = vmul.f32 %v428, %v2232
    %v2234 = vadd.f32 %v2229, %v2233
    %s2235 = sld [smem:[#allocation4 + %s2124]]
    %v2236 = vadd.f32 %v2234, 1e-05
    %v2237 = vrsqrt.pop %v2236
    %v2238 = vstv %s2235
    %v2239 = vmul.f32 %v2238, %v2237
    %v2240 = vmul.f32 %v2185, %v2239
    %v2241 = vmul.f32 %v2186, %v2239
    %v2242 = vmul.f32 %v2187, %v2239
    %v2243 = vmul.f32 %v2188, %v2239
    %v2244 = vmul.f32 %v2189, %v2239
    %v2245 = vmul.f32 %v2190, %v2239
    %v2246 = vmul.f32 %v2191, %v2239
    %v2247 = vmul.f32 %v2192, %v2239
    %s2248 = sld [smem:[#allocation5 + %s2124]]
    %v2249 = vstv %s2248
    %v2250 = vadd.f32 %v2240, %v2249
    %v2251 = vadd.f32 %v2241, %v2249
    %v2252 = vadd.f32 %v2242, %v2249
    %v2253 = vadd.f32 %v2243, %v2249
    %v2254 = vadd.f32 %v2244, %v2249
    %v2255 = vadd.f32 %v2245, %v2249
    %v2256 = vadd.f32 %v2246, %v2249
    %v2257 = vadd.f32 %v2247, %v2249
    %s2258 = scalar_lea.vmem [#allocation9], 176
    %v2259 = vld [vmem:[%s2258] sm:$0xff]
    %v2260 = vld [vmem:[%s2258 + $0x8] sm:$0xff]
    %v2261 = vld [vmem:[%s2258 + $0x100] sm:$0xff]
    %v2262 = vld [vmem:[%s2258 + $0x108] sm:$0xff]
    %v2263 = vmul.f32 %v2259, %v2251
    %v2264 = vmul.f32 %v2260, %v2253
    %v2265 = vmul.f32 %v2261, %v2255
    %v2266 = vmul.f32 %v2262, %v2257
    %v2267 = vadd.f32 %v2250, %v2263
    %v2268 = vadd.f32 %v2252, %v2264
    %v2269 = vadd.f32 %v2254, %v2265
    %v2270 = vadd.f32 %v2256, %v2266
    %s2271 = scalar_lea.vmem [#allocation11], 176
    %2272 = vst [vmem:[%s2271] sm:$0xff] %v2267
    %2273 = vst [vmem:[%s2271 + $0x8] sm:$0xff] %v2268
    %2274 = vst [vmem:[%s2271 + $0x100] sm:$0xff] %v2269
    %2275 = vst [vmem:[%s2271 + $0x108] sm:$0xff] %v2270
    %s2276 = sadd.s32 %s55, 12
    %s2277 = smul.u32 %s2276, 4
    %s2278 = sld [smem:[#allocation3 + %s2277]]
    %s2279 = sadd.s32 %s2277, 1
    %s2280 = sld [smem:[#allocation3 + %s2279]]
    %s2281 = sadd.s32 %s2277, 2
    %s2282 = sld [smem:[#allocation3 + %s2281]]
    %s2283 = sadd.s32 %s2277, 3
    %s2284 = sld [smem:[#allocation3 + %s2283]]
    %v2285 = vstv %s2278
    %v2286 = vmul.f32 %v82, %v2285
    %v2287 = vmul.f32 %v83, %v2285
    %v2288 = vmul.f32 %v84, %v2285
    %v2289 = vmul.f32 %v85, %v2285
    %v2290 = vmul.f32 %v86, %v2285
    %v2291 = vmul.f32 %v87, %v2285
    %v2292 = vmul.f32 %v88, %v2285
    %v2293 = vmul.f32 %v89, %v2285
    %v2294 = vstv %s2280
    %v2295 = vmul.f32 %v117, %v2294
    %v2296 = vmul.f32 %v118, %v2294
    %v2297 = vmul.f32 %v119, %v2294
    %v2298 = vmul.f32 %v120, %v2294
    %v2299 = vmul.f32 %v121, %v2294
    %v2300 = vmul.f32 %v122, %v2294
    %v2301 = vmul.f32 %v123, %v2294
    %v2302 = vmul.f32 %v124, %v2294
    %v2303 = vadd.f32 %v2286, %v2295
    %v2304 = vadd.f32 %v2287, %v2296
    %v2305 = vadd.f32 %v2288, %v2297
    %v2306 = vadd.f32 %v2289, %v2298
    %v2307 = vadd.f32 %v2290, %v2299
    %v2308 = vadd.f32 %v2291, %v2300
    %v2309 = vadd.f32 %v2292, %v2301
    %v2310 = vadd.f32 %v2293, %v2302
    %v2311 = vstv %s2282
    %v2312 = vmul.f32 %v152, %v2311
    %v2313 = vmul.f32 %v153, %v2311
    %v2314 = vmul.f32 %v154, %v2311
    %v2315 = vmul.f32 %v155, %v2311
    %v2316 = vmul.f32 %v156, %v2311
    %v2317 = vmul.f32 %v157, %v2311
    %v2318 = vmul.f32 %v158, %v2311
    %v2319 = vmul.f32 %v159, %v2311
    %v2320 = vadd.f32 %v2303, %v2312
    %v2321 = vadd.f32 %v2304, %v2313
    %v2322 = vadd.f32 %v2305, %v2314
    %v2323 = vadd.f32 %v2306, %v2315
    %v2324 = vadd.f32 %v2307, %v2316
    %v2325 = vadd.f32 %v2308, %v2317
    %v2326 = vadd.f32 %v2309, %v2318
    %v2327 = vadd.f32 %v2310, %v2319
    %v2328 = vstv %s2284
    %v2329 = vmul.f32 %v187, %v2328
    %v2330 = vmul.f32 %v188, %v2328
    %v2331 = vmul.f32 %v189, %v2328
    %v2332 = vmul.f32 %v190, %v2328
    %v2333 = vmul.f32 %v191, %v2328
    %v2334 = vmul.f32 %v192, %v2328
    %v2335 = vmul.f32 %v193, %v2328
    %v2336 = vmul.f32 %v194, %v2328
    %v2337 = vadd.f32 %v2320, %v2329
    %v2338 = vadd.f32 %v2321, %v2330
    %v2339 = vadd.f32 %v2322, %v2331
    %v2340 = vadd.f32 %v2323, %v2332
    %v2341 = vadd.f32 %v2324, %v2333
    %v2342 = vadd.f32 %v2325, %v2334
    %v2343 = vadd.f32 %v2326, %v2335
    %v2344 = vadd.f32 %v2327, %v2336
    %s2345 = smul.f32 %s2278, %s2278
    %v2346 = vstv %s2345
    %v2347 = vmul.f32 %v220, %v2346
    %s2348 = smul.f32 %s2280, %s2280
    %v2349 = vstv %s2348
    %v2350 = vmul.f32 %v324, %v2349
    %v2351 = vadd.f32 %v2347, %v2350
    %s2352 = smul.f32 %s2282, %s2282
    %v2353 = vstv %s2352
    %v2354 = vmul.f32 %v402, %v2353
    %v2355 = vadd.f32 %v2351, %v2354
    %s2356 = smul.f32 %s2284, %s2284
    %v2357 = vstv %s2356
    %v2358 = vmul.f32 %v454, %v2357
    %v2359 = vadd.f32 %v2355, %v2358
    %s2360 = smul.f32 %s2278, 2.0
    %s2361 = smul.f32 %s2360, %s2280
    %v2362 = vstv %s2361
    %v2363 = vmul.f32 %v246, %v2362
    %v2364 = vadd.f32 %v2359, %v2363
    %s2365 = smul.f32 %s2360, %s2282
    %v2366 = vstv %s2365
    %v2367 = vmul.f32 %v272, %v2366
    %v2368 = vadd.f32 %v2364, %v2367
    %s2369 = smul.f32 %s2360, %s2284
    %v2370 = vstv %s2369
    %v2371 = vmul.f32 %v298, %v2370
    %v2372 = vadd.f32 %v2368, %v2371
    %s2373 = smul.f32 %s2280, 2.0
    %s2374 = smul.f32 %s2373, %s2282
    %v2375 = vstv %s2374
    %v2376 = vmul.f32 %v350, %v2375
    %v2377 = vadd.f32 %v2372, %v2376
    %s2378 = smul.f32 %s2373, %s2284
    %v2379 = vstv %s2378
    %v2380 = vmul.f32 %v376, %v2379
    %v2381 = vadd.f32 %v2377, %v2380
    %s2382 = smul.f32 %s2282, 2.0
    %s2383 = smul.f32 %s2382, %s2284
    %v2384 = vstv %s2383
    %v2385 = vmul.f32 %v428, %v2384
    %v2386 = vadd.f32 %v2381, %v2385
    %s2387 = sld [smem:[#allocation4 + %s2276]]
    %v2388 = vadd.f32 %v2386, 1e-05
    %v2389 = vrsqrt.pop %v2388
    %v2390 = vstv %s2387
    %v2391 = vmul.f32 %v2390, %v2389
    %v2392 = vmul.f32 %v2337, %v2391
    %v2393 = vmul.f32 %v2338, %v2391
    %v2394 = vmul.f32 %v2339, %v2391
    %v2395 = vmul.f32 %v2340, %v2391
    %v2396 = vmul.f32 %v2341, %v2391
    %v2397 = vmul.f32 %v2342, %v2391
    %v2398 = vmul.f32 %v2343, %v2391
    %v2399 = vmul.f32 %v2344, %v2391
    %s2400 = sld [smem:[#allocation5 + %s2276]]
    %v2401 = vstv %s2400
    %v2402 = vadd.f32 %v2392, %v2401
    %v2403 = vadd.f32 %v2393, %v2401
    %v2404 = vadd.f32 %v2394, %v2401
    %v2405 = vadd.f32 %v2395, %v2401
    %v2406 = vadd.f32 %v2396, %v2401
    %v2407 = vadd.f32 %v2397, %v2401
    %v2408 = vadd.f32 %v2398, %v2401
    %v2409 = vadd.f32 %v2399, %v2401
    %s2410 = scalar_lea.vmem [#allocation9], 192
    %v2411 = vld [vmem:[%s2410] sm:$0xff]
    %v2412 = vld [vmem:[%s2410 + $0x8] sm:$0xff]
    %v2413 = vld [vmem:[%s2410 + $0x100] sm:$0xff]
    %v2414 = vld [vmem:[%s2410 + $0x108] sm:$0xff]
    %v2415 = vmul.f32 %v2411, %v2403
    %v2416 = vmul.f32 %v2412, %v2405
    %v2417 = vmul.f32 %v2413, %v2407
    %v2418 = vmul.f32 %v2414, %v2409
    %v2419 = vadd.f32 %v2402, %v2415
    %v2420 = vadd.f32 %v2404, %v2416
    %v2421 = vadd.f32 %v2406, %v2417
    %v2422 = vadd.f32 %v2408, %v2418
    %s2423 = scalar_lea.vmem [#allocation11], 192
    %2424 = vst [vmem:[%s2423] sm:$0xff] %v2419
    %2425 = vst [vmem:[%s2423 + $0x8] sm:$0xff] %v2420
    %2426 = vst [vmem:[%s2423 + $0x100] sm:$0xff] %v2421
    %2427 = vst [vmem:[%s2423 + $0x108] sm:$0xff] %v2422
    %s2428 = sadd.s32 %s55, 13
    %s2429 = smul.u32 %s2428, 4
    %s2430 = sld [smem:[#allocation3 + %s2429]]
    %s2431 = sadd.s32 %s2429, 1
    %s2432 = sld [smem:[#allocation3 + %s2431]]
    %s2433 = sadd.s32 %s2429, 2
    %s2434 = sld [smem:[#allocation3 + %s2433]]
    %s2435 = sadd.s32 %s2429, 3
    %s2436 = sld [smem:[#allocation3 + %s2435]]
    %v2437 = vstv %s2430
    %v2438 = vmul.f32 %v82, %v2437
    %v2439 = vmul.f32 %v83, %v2437
    %v2440 = vmul.f32 %v84, %v2437
    %v2441 = vmul.f32 %v85, %v2437
    %v2442 = vmul.f32 %v86, %v2437
    %v2443 = vmul.f32 %v87, %v2437
    %v2444 = vmul.f32 %v88, %v2437
    %v2445 = vmul.f32 %v89, %v2437
    %v2446 = vstv %s2432
    %v2447 = vmul.f32 %v117, %v2446
    %v2448 = vmul.f32 %v118, %v2446
    %v2449 = vmul.f32 %v119, %v2446
    %v2450 = vmul.f32 %v120, %v2446
    %v2451 = vmul.f32 %v121, %v2446
    %v2452 = vmul.f32 %v122, %v2446
    %v2453 = vmul.f32 %v123, %v2446
    %v2454 = vmul.f32 %v124, %v2446
    %v2455 = vadd.f32 %v2438, %v2447
    %v2456 = vadd.f32 %v2439, %v2448
    %v2457 = vadd.f32 %v2440, %v2449
    %v2458 = vadd.f32 %v2441, %v2450
    %v2459 = vadd.f32 %v2442, %v2451
    %v2460 = vadd.f32 %v2443, %v2452
    %v2461 = vadd.f32 %v2444, %v2453
    %v2462 = vadd.f32 %v2445, %v2454
    %v2463 = vstv %s2434
    %v2464 = vmul.f32 %v152, %v2463
    %v2465 = vmul.f32 %v153, %v2463
    %v2466 = vmul.f32 %v154, %v2463
    %v2467 = vmul.f32 %v155, %v2463
    %v2468 = vmul.f32 %v156, %v2463
    %v2469 = vmul.f32 %v157, %v2463
    %v2470 = vmul.f32 %v158, %v2463
    %v2471 = vmul.f32 %v159, %v2463
    %v2472 = vadd.f32 %v2455, %v2464
    %v2473 = vadd.f32 %v2456, %v2465
    %v2474 = vadd.f32 %v2457, %v2466
    %v2475 = vadd.f32 %v2458, %v2467
    %v2476 = vadd.f32 %v2459, %v2468
    %v2477 = vadd.f32 %v2460, %v2469
    %v2478 = vadd.f32 %v2461, %v2470
    %v2479 = vadd.f32 %v2462, %v2471
    %v2480 = vstv %s2436
    %v2481 = vmul.f32 %v187, %v2480
    %v2482 = vmul.f32 %v188, %v2480
    %v2483 = vmul.f32 %v189, %v2480
    %v2484 = vmul.f32 %v190, %v2480
    %v2485 = vmul.f32 %v191, %v2480
    %v2486 = vmul.f32 %v192, %v2480
    %v2487 = vmul.f32 %v193, %v2480
    %v2488 = vmul.f32 %v194, %v2480
    %v2489 = vadd.f32 %v2472, %v2481
    %v2490 = vadd.f32 %v2473, %v2482
    %v2491 = vadd.f32 %v2474, %v2483
    %v2492 = vadd.f32 %v2475, %v2484
    %v2493 = vadd.f32 %v2476, %v2485
    %v2494 = vadd.f32 %v2477, %v2486
    %v2495 = vadd.f32 %v2478, %v2487
    %v2496 = vadd.f32 %v2479, %v2488
    %s2497 = smul.f32 %s2430, %s2430
    %v2498 = vstv %s2497
    %v2499 = vmul.f32 %v220, %v2498
    %s2500 = smul.f32 %s2432, %s2432
    %v2501 = vstv %s2500
    %v2502 = vmul.f32 %v324, %v2501
    %v2503 = vadd.f32 %v2499, %v2502
    %s2504 = smul.f32 %s2434, %s2434
    %v2505 = vstv %s2504
    %v2506 = vmul.f32 %v402, %v2505
    %v2507 = vadd.f32 %v2503, %v2506
    %s2508 = smul.f32 %s2436, %s2436
    %v2509 = vstv %s2508
    %v2510 = vmul.f32 %v454, %v2509
    %v2511 = vadd.f32 %v2507, %v2510
    %s2512 = smul.f32 %s2430, 2.0
    %s2513 = smul.f32 %s2512, %s2432
    %v2514 = vstv %s2513
    %v2515 = vmul.f32 %v246, %v2514
    %v2516 = vadd.f32 %v2511, %v2515
    %s2517 = smul.f32 %s2512, %s2434
    %v2518 = vstv %s2517
    %v2519 = vmul.f32 %v272, %v2518
    %v2520 = vadd.f32 %v2516, %v2519
    %s2521 = smul.f32 %s2512, %s2436
    %v2522 = vstv %s2521
    %v2523 = vmul.f32 %v298, %v2522
    %v2524 = vadd.f32 %v2520, %v2523
    %s2525 = smul.f32 %s2432, 2.0
    %s2526 = smul.f32 %s2525, %s2434
    %v2527 = vstv %s2526
    %v2528 = vmul.f32 %v350, %v2527
    %v2529 = vadd.f32 %v2524, %v2528
    %s2530 = smul.f32 %s2525, %s2436
    %v2531 = vstv %s2530
    %v2532 = vmul.f32 %v376, %v2531
    %v2533 = vadd.f32 %v2529, %v2532
    %s2534 = smul.f32 %s2434, 2.0
    %s2535 = smul.f32 %s2534, %s2436
    %v2536 = vstv %s2535
    %v2537 = vmul.f32 %v428, %v2536
    %v2538 = vadd.f32 %v2533, %v2537
    %s2539 = sld [smem:[#allocation4 + %s2428]]
    %v2540 = vadd.f32 %v2538, 1e-05
    %v2541 = vrsqrt.pop %v2540
    %v2542 = vstv %s2539
    %v2543 = vmul.f32 %v2542, %v2541
    %v2544 = vmul.f32 %v2489, %v2543
    %v2545 = vmul.f32 %v2490, %v2543
    %v2546 = vmul.f32 %v2491, %v2543
    %v2547 = vmul.f32 %v2492, %v2543
    %v2548 = vmul.f32 %v2493, %v2543
    %v2549 = vmul.f32 %v2494, %v2543
    %v2550 = vmul.f32 %v2495, %v2543
    %v2551 = vmul.f32 %v2496, %v2543
    %s2552 = sld [smem:[#allocation5 + %s2428]]
    %v2553 = vstv %s2552
    %v2554 = vadd.f32 %v2544, %v2553
    %v2555 = vadd.f32 %v2545, %v2553
    %v2556 = vadd.f32 %v2546, %v2553
    %v2557 = vadd.f32 %v2547, %v2553
    %v2558 = vadd.f32 %v2548, %v2553
    %v2559 = vadd.f32 %v2549, %v2553
    %v2560 = vadd.f32 %v2550, %v2553
    %v2561 = vadd.f32 %v2551, %v2553
    %s2562 = scalar_lea.vmem [#allocation9], 208
    %v2563 = vld [vmem:[%s2562] sm:$0xff]
    %v2564 = vld [vmem:[%s2562 + $0x8] sm:$0xff]
    %v2565 = vld [vmem:[%s2562 + $0x100] sm:$0xff]
    %v2566 = vld [vmem:[%s2562 + $0x108] sm:$0xff]
    %v2567 = vmul.f32 %v2563, %v2555
    %v2568 = vmul.f32 %v2564, %v2557
    %v2569 = vmul.f32 %v2565, %v2559
    %v2570 = vmul.f32 %v2566, %v2561
    %v2571 = vadd.f32 %v2554, %v2567
    %v2572 = vadd.f32 %v2556, %v2568
    %v2573 = vadd.f32 %v2558, %v2569
    %v2574 = vadd.f32 %v2560, %v2570
    %s2575 = scalar_lea.vmem [#allocation11], 208
    %2576 = vst [vmem:[%s2575] sm:$0xff] %v2571
    %2577 = vst [vmem:[%s2575 + $0x8] sm:$0xff] %v2572
    %2578 = vst [vmem:[%s2575 + $0x100] sm:$0xff] %v2573
    %2579 = vst [vmem:[%s2575 + $0x108] sm:$0xff] %v2574
    %s2580 = sadd.s32 %s55, 14
    %s2581 = smul.u32 %s2580, 4
    %s2582 = sld [smem:[#allocation3 + %s2581]]
    %s2583 = sadd.s32 %s2581, 1
    %s2584 = sld [smem:[#allocation3 + %s2583]]
    %s2585 = sadd.s32 %s2581, 2
    %s2586 = sld [smem:[#allocation3 + %s2585]]
    %s2587 = sadd.s32 %s2581, 3
    %s2588 = sld [smem:[#allocation3 + %s2587]]
    %v2589 = vstv %s2582
    %v2590 = vmul.f32 %v82, %v2589
    %v2591 = vmul.f32 %v83, %v2589
    %v2592 = vmul.f32 %v84, %v2589
    %v2593 = vmul.f32 %v85, %v2589
    %v2594 = vmul.f32 %v86, %v2589
    %v2595 = vmul.f32 %v87, %v2589
    %v2596 = vmul.f32 %v88, %v2589
    %v2597 = vmul.f32 %v89, %v2589
    %v2598 = vstv %s2584
    %v2599 = vmul.f32 %v117, %v2598
    %v2600 = vmul.f32 %v118, %v2598
    %v2601 = vmul.f32 %v119, %v2598
    %v2602 = vmul.f32 %v120, %v2598
    %v2603 = vmul.f32 %v121, %v2598
    %v2604 = vmul.f32 %v122, %v2598
    %v2605 = vmul.f32 %v123, %v2598
    %v2606 = vmul.f32 %v124, %v2598
    %v2607 = vadd.f32 %v2590, %v2599
    %v2608 = vadd.f32 %v2591, %v2600
    %v2609 = vadd.f32 %v2592, %v2601
    %v2610 = vadd.f32 %v2593, %v2602
    %v2611 = vadd.f32 %v2594, %v2603
    %v2612 = vadd.f32 %v2595, %v2604
    %v2613 = vadd.f32 %v2596, %v2605
    %v2614 = vadd.f32 %v2597, %v2606
    %v2615 = vstv %s2586
    %v2616 = vmul.f32 %v152, %v2615
    %v2617 = vmul.f32 %v153, %v2615
    %v2618 = vmul.f32 %v154, %v2615
    %v2619 = vmul.f32 %v155, %v2615
    %v2620 = vmul.f32 %v156, %v2615
    %v2621 = vmul.f32 %v157, %v2615
    %v2622 = vmul.f32 %v158, %v2615
    %v2623 = vmul.f32 %v159, %v2615
    %v2624 = vadd.f32 %v2607, %v2616
    %v2625 = vadd.f32 %v2608, %v2617
    %v2626 = vadd.f32 %v2609, %v2618
    %v2627 = vadd.f32 %v2610, %v2619
    %v2628 = vadd.f32 %v2611, %v2620
    %v2629 = vadd.f32 %v2612, %v2621
    %v2630 = vadd.f32 %v2613, %v2622
    %v2631 = vadd.f32 %v2614, %v2623
    %v2632 = vstv %s2588
    %v2633 = vmul.f32 %v187, %v2632
    %v2634 = vmul.f32 %v188, %v2632
    %v2635 = vmul.f32 %v189, %v2632
    %v2636 = vmul.f32 %v190, %v2632
    %v2637 = vmul.f32 %v191, %v2632
    %v2638 = vmul.f32 %v192, %v2632
    %v2639 = vmul.f32 %v193, %v2632
    %v2640 = vmul.f32 %v194, %v2632
    %v2641 = vadd.f32 %v2624, %v2633
    %v2642 = vadd.f32 %v2625, %v2634
    %v2643 = vadd.f32 %v2626, %v2635
    %v2644 = vadd.f32 %v2627, %v2636
    %v2645 = vadd.f32 %v2628, %v2637
    %v2646 = vadd.f32 %v2629, %v2638
    %v2647 = vadd.f32 %v2630, %v2639
    %v2648 = vadd.f32 %v2631, %v2640
    %s2649 = smul.f32 %s2582, %s2582
    %v2650 = vstv %s2649
    %v2651 = vmul.f32 %v220, %v2650
    %s2652 = smul.f32 %s2584, %s2584
    %v2653 = vstv %s2652
    %v2654 = vmul.f32 %v324, %v2653
    %v2655 = vadd.f32 %v2651, %v2654
    %s2656 = smul.f32 %s2586, %s2586
    %v2657 = vstv %s2656
    %v2658 = vmul.f32 %v402, %v2657
    %v2659 = vadd.f32 %v2655, %v2658
    %s2660 = smul.f32 %s2588, %s2588
    %v2661 = vstv %s2660
    %v2662 = vmul.f32 %v454, %v2661
    %v2663 = vadd.f32 %v2659, %v2662
    %s2664 = smul.f32 %s2582, 2.0
    %s2665 = smul.f32 %s2664, %s2584
    %v2666 = vstv %s2665
    %v2667 = vmul.f32 %v246, %v2666
    %v2668 = vadd.f32 %v2663, %v2667
    %s2669 = smul.f32 %s2664, %s2586
    %v2670 = vstv %s2669
    %v2671 = vmul.f32 %v272, %v2670
    %v2672 = vadd.f32 %v2668, %v2671
    %s2673 = smul.f32 %s2664, %s2588
    %v2674 = vstv %s2673
    %v2675 = vmul.f32 %v298, %v2674
    %v2676 = vadd.f32 %v2672, %v2675
    %s2677 = smul.f32 %s2584, 2.0
    %s2678 = smul.f32 %s2677, %s2586
    %v2679 = vstv %s2678
    %v2680 = vmul.f32 %v350, %v2679
    %v2681 = vadd.f32 %v2676, %v2680
    %s2682 = smul.f32 %s2677, %s2588
    %v2683 = vstv %s2682
    %v2684 = vmul.f32 %v376, %v2683
    %v2685 = vadd.f32 %v2681, %v2684
    %s2686 = smul.f32 %s2586, 2.0
    %s2687 = smul.f32 %s2686, %s2588
    %v2688 = vstv %s2687
    %v2689 = vmul.f32 %v428, %v2688
    %v2690 = vadd.f32 %v2685, %v2689
    %s2691 = sld [smem:[#allocation4 + %s2580]]
    %v2692 = vadd.f32 %v2690, 1e-05
    %v2693 = vrsqrt.pop %v2692
    %v2694 = vstv %s2691
    %v2695 = vmul.f32 %v2694, %v2693
    %v2696 = vmul.f32 %v2641, %v2695
    %v2697 = vmul.f32 %v2642, %v2695
    %v2698 = vmul.f32 %v2643, %v2695
    %v2699 = vmul.f32 %v2644, %v2695
    %v2700 = vmul.f32 %v2645, %v2695
    %v2701 = vmul.f32 %v2646, %v2695
    %v2702 = vmul.f32 %v2647, %v2695
    %v2703 = vmul.f32 %v2648, %v2695
    %s2704 = sld [smem:[#allocation5 + %s2580]]
    %v2705 = vstv %s2704
    %v2706 = vadd.f32 %v2696, %v2705
    %v2707 = vadd.f32 %v2697, %v2705
    %v2708 = vadd.f32 %v2698, %v2705
    %v2709 = vadd.f32 %v2699, %v2705
    %v2710 = vadd.f32 %v2700, %v2705
    %v2711 = vadd.f32 %v2701, %v2705
    %v2712 = vadd.f32 %v2702, %v2705
    %v2713 = vadd.f32 %v2703, %v2705
    %s2714 = scalar_lea.vmem [#allocation9], 224
    %v2715 = vld [vmem:[%s2714] sm:$0xff]
    %v2716 = vld [vmem:[%s2714 + $0x8] sm:$0xff]
    %v2717 = vld [vmem:[%s2714 + $0x100] sm:$0xff]
    %v2718 = vld [vmem:[%s2714 + $0x108] sm:$0xff]
    %v2719 = vmul.f32 %v2715, %v2707
    %v2720 = vmul.f32 %v2716, %v2709
    %v2721 = vmul.f32 %v2717, %v2711
    %v2722 = vmul.f32 %v2718, %v2713
    %v2723 = vadd.f32 %v2706, %v2719
    %v2724 = vadd.f32 %v2708, %v2720
    %v2725 = vadd.f32 %v2710, %v2721
    %v2726 = vadd.f32 %v2712, %v2722
    %s2727 = scalar_lea.vmem [#allocation11], 224
    %2728 = vst [vmem:[%s2727] sm:$0xff] %v2723
    %2729 = vst [vmem:[%s2727 + $0x8] sm:$0xff] %v2724
    %2730 = vst [vmem:[%s2727 + $0x100] sm:$0xff] %v2725
    %2731 = vst [vmem:[%s2727 + $0x108] sm:$0xff] %v2726
    %s2732 = sadd.s32 %s55, 15
    %s2733 = smul.u32 %s2732, 4
    %s2734 = sld [smem:[#allocation3 + %s2733]]
    %s2735 = sadd.s32 %s2733, 1
    %s2736 = sld [smem:[#allocation3 + %s2735]]
    %s2737 = sadd.s32 %s2733, 2
    %s2738 = sld [smem:[#allocation3 + %s2737]]
    %s2739 = sadd.s32 %s2733, 3
    %s2740 = sld [smem:[#allocation3 + %s2739]]
    %v2741 = vstv %s2734
    %v2742 = vmul.f32 %v82, %v2741
    %v2743 = vmul.f32 %v83, %v2741
    %v2744 = vmul.f32 %v84, %v2741
    %v2745 = vmul.f32 %v85, %v2741
    %v2746 = vmul.f32 %v86, %v2741
    %v2747 = vmul.f32 %v87, %v2741
    %v2748 = vmul.f32 %v88, %v2741
    %v2749 = vmul.f32 %v89, %v2741
    %v2750 = vstv %s2736
    %v2751 = vmul.f32 %v117, %v2750
    %v2752 = vmul.f32 %v118, %v2750
    %v2753 = vmul.f32 %v119, %v2750
    %v2754 = vmul.f32 %v120, %v2750
    %v2755 = vmul.f32 %v121, %v2750
    %v2756 = vmul.f32 %v122, %v2750
    %v2757 = vmul.f32 %v123, %v2750
    %v2758 = vmul.f32 %v124, %v2750
    %v2759 = vadd.f32 %v2742, %v2751
    %v2760 = vadd.f32 %v2743, %v2752
    %v2761 = vadd.f32 %v2744, %v2753
    %v2762 = vadd.f32 %v2745, %v2754
    %v2763 = vadd.f32 %v2746, %v2755
    %v2764 = vadd.f32 %v2747, %v2756
    %v2765 = vadd.f32 %v2748, %v2757
    %v2766 = vadd.f32 %v2749, %v2758
    %v2767 = vstv %s2738
    %v2768 = vmul.f32 %v152, %v2767
    %v2769 = vmul.f32 %v153, %v2767
    %v2770 = vmul.f32 %v154, %v2767
    %v2771 = vmul.f32 %v155, %v2767
    %v2772 = vmul.f32 %v156, %v2767
    %v2773 = vmul.f32 %v157, %v2767
    %v2774 = vmul.f32 %v158, %v2767
    %v2775 = vmul.f32 %v159, %v2767
    %v2776 = vadd.f32 %v2759, %v2768
    %v2777 = vadd.f32 %v2760, %v2769
    %v2778 = vadd.f32 %v2761, %v2770
    %v2779 = vadd.f32 %v2762, %v2771
    %v2780 = vadd.f32 %v2763, %v2772
    %v2781 = vadd.f32 %v2764, %v2773
    %v2782 = vadd.f32 %v2765, %v2774
    %v2783 = vadd.f32 %v2766, %v2775
    %v2784 = vstv %s2740
    %v2785 = vmul.f32 %v187, %v2784
    %v2786 = vmul.f32 %v188, %v2784
    %v2787 = vmul.f32 %v189, %v2784
    %v2788 = vmul.f32 %v190, %v2784
    %v2789 = vmul.f32 %v191, %v2784
    %v2790 = vmul.f32 %v192, %v2784
    %v2791 = vmul.f32 %v193, %v2784
    %v2792 = vmul.f32 %v194, %v2784
    %v2793 = vadd.f32 %v2776, %v2785
    %v2794 = vadd.f32 %v2777, %v2786
    %v2795 = vadd.f32 %v2778, %v2787
    %v2796 = vadd.f32 %v2779, %v2788
    %v2797 = vadd.f32 %v2780, %v2789
    %v2798 = vadd.f32 %v2781, %v2790
    %v2799 = vadd.f32 %v2782, %v2791
    %v2800 = vadd.f32 %v2783, %v2792
    %s2801 = smul.f32 %s2734, %s2734
    %v2802 = vstv %s2801
    %v2803 = vmul.f32 %v220, %v2802
    %s2804 = smul.f32 %s2736, %s2736
    %v2805 = vstv %s2804
    %v2806 = vmul.f32 %v324, %v2805
    %v2807 = vadd.f32 %v2803, %v2806
    %s2808 = smul.f32 %s2738, %s2738
    %v2809 = vstv %s2808
    %v2810 = vmul.f32 %v402, %v2809
    %v2811 = vadd.f32 %v2807, %v2810
    %s2812 = smul.f32 %s2740, %s2740
    %v2813 = vstv %s2812
    %v2814 = vmul.f32 %v454, %v2813
    %v2815 = vadd.f32 %v2811, %v2814
    %s2816 = smul.f32 %s2734, 2.0
    %s2817 = smul.f32 %s2816, %s2736
    %v2818 = vstv %s2817
    %v2819 = vmul.f32 %v246, %v2818
    %v2820 = vadd.f32 %v2815, %v2819
    %s2821 = smul.f32 %s2816, %s2738
    %v2822 = vstv %s2821
    %v2823 = vmul.f32 %v272, %v2822
    %v2824 = vadd.f32 %v2820, %v2823
    %s2825 = smul.f32 %s2816, %s2740
    %v2826 = vstv %s2825
    %v2827 = vmul.f32 %v298, %v2826
    %v2828 = vadd.f32 %v2824, %v2827
    %s2829 = smul.f32 %s2736, 2.0
    %s2830 = smul.f32 %s2829, %s2738
    %v2831 = vstv %s2830
    %v2832 = vmul.f32 %v350, %v2831
    %v2833 = vadd.f32 %v2828, %v2832
    %s2834 = smul.f32 %s2829, %s2740
    %v2835 = vstv %s2834
    %v2836 = vmul.f32 %v376, %v2835
    %v2837 = vadd.f32 %v2833, %v2836
    %s2838 = smul.f32 %s2738, 2.0
    %s2839 = smul.f32 %s2838, %s2740
    %v2840 = vstv %s2839
    %v2841 = vmul.f32 %v428, %v2840
    %v2842 = vadd.f32 %v2837, %v2841
    %s2843 = sld [smem:[#allocation4 + %s2732]]
    %v2844 = vadd.f32 %v2842, 1e-05
    %v2845 = vrsqrt.pop %v2844
    %v2846 = vstv %s2843
    %v2847 = vmul.f32 %v2846, %v2845
    %v2848 = vmul.f32 %v2793, %v2847
    %v2849 = vmul.f32 %v2794, %v2847
    %v2850 = vmul.f32 %v2795, %v2847
    %v2851 = vmul.f32 %v2796, %v2847
    %v2852 = vmul.f32 %v2797, %v2847
    %v2853 = vmul.f32 %v2798, %v2847
    %v2854 = vmul.f32 %v2799, %v2847
    %v2855 = vmul.f32 %v2800, %v2847
    %s2856 = sld [smem:[#allocation5 + %s2732]]
    %v2857 = vstv %s2856
    %v2858 = vadd.f32 %v2848, %v2857
    %v2859 = vadd.f32 %v2849, %v2857
    %v2860 = vadd.f32 %v2850, %v2857
    %v2861 = vadd.f32 %v2851, %v2857
    %v2862 = vadd.f32 %v2852, %v2857
    %v2863 = vadd.f32 %v2853, %v2857
    %v2864 = vadd.f32 %v2854, %v2857
    %v2865 = vadd.f32 %v2855, %v2857
    %s2866 = scalar_lea.vmem [#allocation9], 240
    %v2867 = vld [vmem:[%s2866] sm:$0xff]
    %v2868 = vld [vmem:[%s2866 + $0x8] sm:$0xff]
    %v2869 = vld [vmem:[%s2866 + $0x100] sm:$0xff]
    %v2870 = vld [vmem:[%s2866 + $0x108] sm:$0xff]
    %v2871 = vmul.f32 %v2867, %v2859
    %v2872 = vmul.f32 %v2868, %v2861
    %v2873 = vmul.f32 %v2869, %v2863
    %v2874 = vmul.f32 %v2870, %v2865
    %v2875 = vadd.f32 %v2858, %v2871
    %v2876 = vadd.f32 %v2860, %v2872
    %v2877 = vadd.f32 %v2862, %v2873
    %v2878 = vadd.f32 %v2864, %v2874
    %s2879 = scalar_lea.vmem [#allocation11], 240
    %2880 = vst [vmem:[%s2879] sm:$0xff] %v2875
    %2881 = vst [vmem:[%s2879 + $0x8] sm:$0xff] %v2876
    %2882 = vst [vmem:[%s2879 + $0x100] sm:$0xff] %v2877
    %2883 = vst [vmem:[%s2879 + $0x108] sm:$0xff] %v2878
    // Predicated region
    $region18: #{tpu_custom_call.1} parent=1 // pred_check
      _
    $region19: #{tpu_custom_call.1} parent=1 // pred_check_branch
      %2885 = sbr.rel (0) target = $region21
    $region20: #{tpu_custom_call.1} parent=1 // pred_region
      %s2887 = ssub.s32 8192, 8192
      %2888 = vsyncadd [#allocation8], %s2887
      %s2889 = sshll.u32 [#allocation11], 4
      %s2890 = int_to_ptr.vmem [resolvable:$true] %s2889
      %2895 = dma.vmem_to_hbm [thread:$0]  %s2890, 8192, %s5, [#allocation8], 128, 128, 8
    $region21: #{tpu_custom_call.1} parent=1 // pred_fallthru
      _
    // Predicated region
    $region22: #{tpu_custom_call.1} parent=1 // pred_check
      _
    $region23: #{tpu_custom_call.1} parent=1 // pred_check_branch
      %2897 = sbr.rel (0) target = $region25
    $region24: #{tpu_custom_call.1} parent=1 // pred_region
      %2898 = dma.done [#allocation8], 8192
    $region25: #{tpu_custom_call.1} parent=1 // pred_fallthru
      _
    %2899 = vsyncpa [#allocation7], 1
    %2900 = vsyncpa [#allocation10], 1
    %2901 = vsyncpa [#allocation8], 1

</llo_original>
